<compile_context>
chip_gen: v6e
topology: v6e:2x2x1
jax: 0.10.0
libtpu: 0.0.40
codegen_flags: <defaults>
</compile_context>

<pallas_src>
import functools

import numpy as np

import jax
import jax.numpy as jnp
from jax import lax
from jax.experimental import pallas as pl
from jax.experimental.pallas import tpu as pltpu

# ---- architecture constants (from the torch module) -------------------------
D_MODEL = 128
NUM_HEADS = 8
DEPTH = D_MODEL // NUM_HEADS
DFF = 512
NUM_LAYERS = 4
# small / test-friendly sizes for the synthetic run
INPUT_VOCAB_SIZE = 128
MAX_POSITION = 64

PARAM_ORDER = ("wqkv", "bqkv", "wo", "bo", "ln1_g", "ln1_b",
               "w1", "b1", "w2", "b2", "ln2_g", "ln2_b")


# ---- positional encoding (glue, mirrors the torch code) ---------------------
def positional_encoding(position, d_model):
    pos = np.arange(position, dtype=np.float32)[:, None]
    i = np.arange(d_model, dtype=np.float32)[None, :]
    angle_rates = 1.0 / np.power(10000.0, (2.0 * (i // 2)) / float(d_model))
    angle_rads = pos * angle_rates
    angle_rads[:, 0::2] = np.sin(angle_rads[:, 0::2])
    angle_rads[:, 1::2] = np.cos(angle_rads[:, 1::2])
    return jnp.asarray(angle_rads[None, ...], dtype=jnp.float32)  # (1, P, D)


# ---- fused Pallas kernel -----------------------------------------------------
def _encoder_kernel(Bb, S,
                    x_ref, mask_ref,
                    wqkv_ref, bqkv_ref, wo_ref, bo_ref,
                    ln1g_ref, ln1b_ref,
                    w1_ref, b1_ref, w2_ref, b2_ref,
                    ln2g_ref, ln2b_ref,
                    out_ref):
    l = pl.program_id(1)
    H, dh, D = NUM_HEADS, DEPTH, D_MODEL
    N = Bb * S

    # Load the residual stream into the VMEM-resident output block at layer 0
    # (out_ref's block index is constant along the layer axis -> resident).
    @pl.when(l == 0)
    def _load_input():
        out_ref[...] = x_ref[...]

    x = out_ref[...]                                     # (N, D) f32
    xb = x.astype(jnp.bfloat16)

    # padding mask for this batch block, expanded to the merged (head*batch)
    # dot-batch dimension used below (hoisted out of the head math)
    neg = mask_ref[...] * jnp.float32(-1e9)              # (Bb, 1, S)
    neg_hb = jnp.broadcast_to(neg[None], (H, Bb, 1, S)).reshape(H * Bb, 1, S)

    # ---- fused QKV projection: one lane-dense (N,128)x(128,384) matmul ------
    wqkv = wqkv_ref[l]                                   # (D, 3D) bf16
    bqkv = bqkv_ref[l]                                   # (1, 3D) f32
    qkv = jnp.dot(xb, wqkv, preferred_element_type=jnp.float32) + bqkv
    qkvb = qkv.astype(jnp.bfloat16)                      # cast once

    # head split: static lane slices stacked along a leading head axis, then
    # (head, batch) folded into one dot batch dim of size H*Bb.
    def split_heads(off):
        parts = [qkvb[:, off + h * dh: off + (h + 1) * dh] for h in range(H)]
        return jnp.stack(parts, axis=0).reshape(H * Bb, S, dh)

    q = split_heads(0)            # (H*Bb, S, dh); 1/sqrt(dh) folded into W_q
    k = split_heads(D)
    v = split_heads(2 * D)

    dn_logit = (((2,), (2,)), ((0,), (0,)))   # (HB,S,dh) x (HB,S,dh) -> (HB,S,S)
    dn_attn = (((2,), (1,)), ((0,), (0,)))    # (HB,S,S)  x (HB,S,dh) -> (HB,S,dh)
    dn_proj = (((2,), (1,)), ((0,), (0,)))    # (H,N,dh)  x (H,dh,D)  -> (H,N,D)

    logits = lax.dot_general(q, k, dn_logit,
                             preferred_element_type=jnp.float32)   # (HB,S,S)
    logits = logits + neg_hb

    # TODO(synk): for small S only S/128 lanes carry data through the softmax;
    # acceptable at these test shapes.
    m = jnp.max(logits, axis=-1, keepdims=True)
    p = jnp.exp(logits - m)
    denom = jnp.sum(p, axis=-1, keepdims=True)
    p = p * pl.reciprocal(denom, approx=True)

    attn = lax.dot_general(p.astype(jnp.bfloat16), v, dn_attn,
                           preferred_element_type=jnp.float32)     # (HB,S,dh)

    # ---- output projection (head-batched dot + head-sum) --------------------
    # TODO(synk): a single (N,128)x(128,128) joint contraction over (head,dh)
    # would fully fill the MXU K dim, but needs a lane-axis head concat /
    # generalized transpose whose Mosaic lowering is not guaranteed for
    # 16-lane pieces; keep the robust head-batched form (K=dh) and merge
    # heads with one sum.
    attn_h = attn.reshape(H, N, dh).astype(jnp.bfloat16)
    o_h = lax.dot_general(attn_h, wo_ref[l], dn_proj,
                          preferred_element_type=jnp.float32)      # (H, N, D)
    attn_out = jnp.sum(o_h, axis=0) + bo_ref[l]                    # (N, D)

    # ---- residual + layernorm 1 (f32) ----
    y = x + attn_out
    mu = jnp.mean(y, axis=-1, keepdims=True)
    var = jnp.mean((y - mu) ** 2, axis=-1, keepdims=True)
    out1 = (y - mu) * lax.rsqrt(var + 1e-6) * ln1g_ref[l] + ln1b_ref[l]

    # ---- feed-forward (Linear -> ReLU -> Linear), bf16 operands ----
    h1 = jnp.dot(out1.astype(jnp.bfloat16), w1_ref[l],
                 preferred_element_type=jnp.float32) + b1_ref[l]
    h1 = jnp.maximum(h1, 0.0)
    ffn = jnp.dot(h1.astype(jnp.bfloat16), w2_ref[l],
                  preferred_element_type=jnp.float32) + b2_ref[l]

    # ---- residual + layernorm 2 (f32) ----
    y2 = out1 + ffn
    mu2 = jnp.mean(y2, axis=-1, keepdims=True)
    var2 = jnp.mean((y2 - mu2) ** 2, axis=-1, keepdims=True)
    out2 = (y2 - mu2) * lax.rsqrt(var2 + 1e-6) * ln2g_ref[l] + ln2b_ref[l]

    # carry the residual stream to the next layer step; HBM writeback happens
    # only when the batch-block index changes (i.e. after the last layer).
    out_ref[...] = out2


def _pick_batch_block(B, S, row_cap=2048):
    """Largest divisor Bb of B with Bb*S <= row_cap and a legal TPU block,
    preferring >= 2 batch blocks so the 'parallel' axis can span both v7x
    TensorCores."""
    divisors = [c for c in range(1, B + 1) if B % c == 0]

    def legal(c):
        return (c * S) % 8 == 0 or c == B

    legal_divs = [c for c in divisors if legal(c)]
    under_cap = [c for c in legal_divs if c * S <= row_cap]
    pool = under_cap or legal_divs or [B]
    two_blocks = [c for c in pool if B // c >= 2]
    return max(two_blocks or pool)


def fused_encoder_pallas(x, mask, sp):
    """x: (B,S,D) f32, mask: (B,1,S) f32 (1 = masked), sp: stacked params."""
    B, S, D = x.shape
    Bb = _pick_batch_block(B, S)
    nb = B // Bb
    rows = Bb * S
    L = sp["wqkv"].shape[0]

    x2d = x.reshape(B * S, D)                             # lane-dense token rows

    act_spec = pl.BlockSpec((rows, D), lambda b, l: (b, 0))
    mask_spec = pl.BlockSpec((Bb, 1, S), lambda b, l: (b, 0, 0))

    def resident_spec(arr):
        zeros = (0,) * arr.ndim
        # full-array block, constant index map -> DMA'd once, VMEM-resident
        return pl.BlockSpec(tuple(arr.shape), lambda b, l: zeros)

    in_specs = [act_spec, mask_spec] + [resident_spec(sp[k]) for k in PARAM_ORDER]

    # cost estimate: weights fetched once; activations read + written once.
    tokens = B * S
    flops = L * (2 * tokens * (D * 3 * D + D * D + 2 * D * DFF)
                 + 4 * B * NUM_HEADS * S * S * DEPTH)
    transc = L * (B * NUM_HEADS * S * S + B * NUM_HEADS * S + 2 * tokens)
    weight_bytes = sum(int(v.size) * v.dtype.itemsize for v in sp.values())
    bytes_acc = weight_bytes + 2 * tokens * D * 4 + int(mask.size) * 4
    cost = pl.CostEstimate(flops=int(flops), transcendentals=int(transc),
                           bytes_accessed=int(bytes_acc))

    # VMEM budget: resident weights (x2 buffers) + in/out activation blocks
    # (double-buffered) + main f32 intermediates (qkv, h1, per-head logits).
    inter_bytes = rows * (3 * D + DFF + D) * 4 + 2 * Bb * NUM_HEADS * S * S * 4
    est = 2 * weight_bytes + 4 * rows * D * 4 + inter_bytes
    vmem_limit = int(min(56 * 2 ** 20, max(32 * 2 ** 20, 2 * est)))

    kernel = functools.partial(_encoder_kernel, Bb, S)

    out2d = pl.pallas_call(
        kernel,
        out_shape=jax.ShapeDtypeStruct((B * S, D), jnp.float32),
        grid=(nb, L),
        in_specs=in_specs,
        out_specs=act_spec,
        compiler_params=pltpu.CompilerParams(
            dimension_semantics=("parallel", "arbitrary"),
            vmem_limit_bytes=vmem_limit),
        cost_estimate=cost,
    )(x2d, mask, *[sp[k] for k in PARAM_ORDER])
    return out2d.reshape(B, S, D)


# ---- full encoder forward (embedding/pos-enc glue + fused Pallas layers) ----
@jax.jit
def transformer_encoder_forward(tokens, mask, embedding, pos_encoding, stacked):
    S = tokens.shape[1]
    x = jnp.take(embedding, tokens, axis=0) * jnp.sqrt(jnp.float32(D_MODEL))
    x = x + pos_encoding[:, :S, :]
    # dropout == identity (eval mode)
    return fused_encoder_pallas(x, mask, stacked)


# ---- pure-JAX f32 reference (same math, no Pallas) ---------------------------
def _ref_layer(x, mask, lp):
    B, S, D = x.shape

    def lin(a, w, b):
        return a @ w + b[0]

    q = lin(x, lp["wq"], lp["bq"]).reshape(B, S, NUM_HEADS, DEPTH).transpose(0, 2, 1, 3)
    k = lin(x, lp["wk"], lp["bk"]).reshape(B, S, NUM_HEADS, DEPTH).transpose(0, 2, 1, 3)
    v = lin(x, lp["wv"], lp["bv"]).reshape(B, S, NUM_HEADS, DEPTH).transpose(0, 2, 1, 3)
    logits = jnp.einsum("bhqd,bhkd->bhqk", q, k) / jnp.sqrt(jnp.float32(DEPTH))
    logits = logits + mask[:, None, :, :] * (-1e9)
    attnw = jax.nn.softmax(logits, axis=-1)
    attn = jnp.einsum("bhqk,bhkd->bhqd", attnw, v).transpose(0, 2, 1, 3).reshape(B, S, D)
    attn_out = lin(attn, lp["wo"], lp["bo"])

    def ln(y, g, b):
        mu = jnp.mean(y, axis=-1, keepdims=True)
        var = jnp.mean((y - mu) ** 2, axis=-1, keepdims=True)
        return (y - mu) / jnp.sqrt(var + 1e-6) * g[0] + b[0]

    out1 = ln(x + attn_out, lp["ln1_g"], lp["ln1_b"])
    ffn = lin(jnp.maximum(lin(out1, lp["w1"], lp["b1"]), 0.0), lp["w2"], lp["b2"])
    return ln(out1 + ffn, lp["ln2_g"], lp["ln2_b"])


def _ref_forward(tokens, mask, params):
    S = tokens.shape[1]
    x = jnp.take(params["embedding"], tokens, axis=0) * jnp.sqrt(jnp.float32(D_MODEL))
    x = x + params["pos_encoding"][:, :S, :]
    for lp in params["layers"]:
        x = _ref_layer(x, mask, lp)
    return x


# ---- deterministic parameter init --------------------------------------------
def init_params(key):
    keys = jax.random.split(key, 2 + NUM_LAYERS)
    params = {
        "embedding": jax.random.normal(keys[0], (INPUT_VOCAB_SIZE, D_MODEL),
                                       jnp.float32) * 0.02,
        "pos_encoding": positional_encoding(MAX_POSITION, D_MODEL),
        "layers": [],
    }
    for li in range(NUM_LAYERS):
        lk = jax.random.split(keys[2 + li], 12)

        def w(k, shape, scale=0.02):
            return jax.random.normal(k, shape, jnp.float32) * scale

        lp = {
            "wq": w(lk[0], (D_MODEL, D_MODEL)), "bq": w(lk[1], (1, D_MODEL)),
            "wk": w(lk[2], (D_MODEL, D_MODEL)), "bk": w(lk[3], (1, D_MODEL)),
            "wv": w(lk[4], (D_MODEL, D_MODEL)), "bv": w(lk[5], (1, D_MODEL)),
            "wo": w(lk[6], (D_MODEL, D_MODEL)), "bo": w(lk[7], (1, D_MODEL)),
            "ln1_g": jnp.ones((1, D_MODEL), jnp.float32),
            "ln1_b": jnp.zeros((1, D_MODEL), jnp.float32),
            "w1": w(lk[8], (D_MODEL, DFF)), "b1": w(lk[9], (1, DFF)),
            "w2": w(lk[10], (DFF, D_MODEL)), "b2": w(lk[11], (1, D_MODEL)),
            "ln2_g": jnp.ones((1, D_MODEL), jnp.float32),
            "ln2_b": jnp.zeros((1, D_MODEL), jnp.float32),
        }
        params["layers"].append(lp)
    return params


def stack_layer_params(layers):
    """Stack per-layer params with a leading layer dim in kernel-friendly
    layouts: fused (D, 3D) QKV weights (1/sqrt(dh) folded into the Q part),
    head-major output projection (H, dh, D).  Matmul weights bf16; biases/LN
    stay f32."""
    L = len(layers)
    scale = 1.0 / float(np.sqrt(DEPTH))

    def stk(name):
        return jnp.stack([lp[name] for lp in layers], axis=0)

    wqkv = jnp.concatenate([stk("wq") * scale, stk("wk"), stk("wv")],
                           axis=-1).astype(jnp.bfloat16)       # (L, D, 3D)
    bqkv = jnp.concatenate([stk("bq") * scale, stk("bk"), stk("bv")],
                           axis=-1).astype(jnp.float32)         # (L, 1, 3D)
    wo = stk("wo").reshape(L, NUM_HEADS, DEPTH, D_MODEL).astype(jnp.bfloat16)

    return {
        "wqkv": wqkv, "bqkv": bqkv,
        "wo": wo, "bo": stk("bo"),
        "ln1_g": stk("ln1_g"), "ln1_b": stk("ln1_b"),
        "w1": stk("w1").astype(jnp.bfloat16), "b1": stk("b1"),
        "w2": stk("w2").astype(jnp.bfloat16), "b2": stk("b2"),
        "ln2_g": stk("ln2_g"), "ln2_b": stk("ln2_b"),
    }


if __name__ == "__main__":
    B, S = 2, 8
    key = jax.random.PRNGKey(0)
    pkey, tkey = jax.random.split(key)
    params = init_params(pkey)
    stacked = stack_layer_params(params["layers"])

    tokens = jax.random.randint(tkey, (B, S), 0, INPUT_VOCAB_SIZE, dtype=jnp.int32)
    # padding mask, torch convention: 1 = masked position; broadcasts over queries
    mask_np = np.zeros((B, 1, S), dtype=np.float32)
    mask_np[1, 0, S - 2:] = 1.0
    mask = jnp.asarray(mask_np)

    out = transformer_encoder_forward(tokens, mask, params["embedding"],
                                      params["pos_encoding"], stacked)
    out = jax.block_until_ready(out)

    ref = jax.block_until_ready(_ref_forward(tokens, mask, params))
    assert out.shape == (B, S, D_MODEL)
    # bf16 matmul operands + approx reciprocal vs. f32 reference -> 2e-2 tol.
    np.testing.assert_allclose(np.asarray(out), np.asarray(ref),
                               rtol=2e-2, atol=2e-2)
    print("KERNEL_OK")
</pallas_src>

<mosaic_0001>
module attributes {stable_mosaic.version = 11 : i64} {
  func.func @_encoder_kernel(%arg0: i32, %arg1: i32, %arg2: memref<8x128xf32, #tpu.memory_space<vmem>>, %arg3: memref<1x1x8xf32, #tpu.memory_space<vmem>>, %arg4: memref<4x128x384xbf16, #tpu.memory_space<vmem>>, %arg5: memref<4x1x384xf32, #tpu.memory_space<vmem>>, %arg6: memref<4x8x16x128xbf16, #tpu.memory_space<vmem>>, %arg7: memref<4x1x128xf32, #tpu.memory_space<vmem>>, %arg8: memref<4x1x128xf32, #tpu.memory_space<vmem>>, %arg9: memref<4x1x128xf32, #tpu.memory_space<vmem>>, %arg10: memref<4x128x512xbf16, #tpu.memory_space<vmem>>, %arg11: memref<4x1x512xf32, #tpu.memory_space<vmem>>, %arg12: memref<4x512x128xbf16, #tpu.memory_space<vmem>>, %arg13: memref<4x1x128xf32, #tpu.memory_space<vmem>>, %arg14: memref<4x1x128xf32, #tpu.memory_space<vmem>>, %arg15: memref<4x1x128xf32, #tpu.memory_space<vmem>>, %arg16: memref<8x128xf32, #tpu.memory_space<vmem>>) attributes {dimension_semantics = [#tpu.dimension_semantics<parallel>, #tpu.dimension_semantics<arbitrary>], iteration_bounds = array<i64: 2, 4>, scalar_prefetch = 0 : i64, scratch_operands = 0 : i64, tpu.core_type = #tpu.core_type<tc>, window_params = [{transform_indices = @transform_0, window_bounds = array<i64: 8, 128>}, {transform_indices = @transform_1, window_bounds = array<i64: 1, 1, 8>}, {pipeline_mode = #tpu.pipeline_mode<synchronous>, transform_indices = @transform_2, window_bounds = array<i64: 4, 128, 384>}, {pipeline_mode = #tpu.pipeline_mode<synchronous>, transform_indices = @transform_3, window_bounds = array<i64: 4, 1, 384>}, {pipeline_mode = #tpu.pipeline_mode<synchronous>, transform_indices = @transform_4, window_bounds = array<i64: 4, 8, 16, 128>}, {pipeline_mode = #tpu.pipeline_mode<synchronous>, transform_indices = @transform_5, window_bounds = array<i64: 4, 1, 128>}, {pipeline_mode = #tpu.pipeline_mode<synchronous>, transform_indices = @transform_6, window_bounds = array<i64: 4, 1, 128>}, {pipeline_mode = #tpu.pipeline_mode<synchronous>, transform_indices = @transform_7, window_bounds = array<i64: 4, 1, 128>}, {pipeline_mode = #tpu.pipeline_mode<synchronous>, transform_indices = @transform_8, window_bounds = array<i64: 4, 128, 512>}, {pipeline_mode = #tpu.pipeline_mode<synchronous>, transform_indices = @transform_9, window_bounds = array<i64: 4, 1, 512>}, {pipeline_mode = #tpu.pipeline_mode<synchronous>, transform_indices = @transform_10, window_bounds = array<i64: 4, 512, 128>}, {pipeline_mode = #tpu.pipeline_mode<synchronous>, transform_indices = @transform_11, window_bounds = array<i64: 4, 1, 128>}, {pipeline_mode = #tpu.pipeline_mode<synchronous>, transform_indices = @transform_12, window_bounds = array<i64: 4, 1, 128>}, {pipeline_mode = #tpu.pipeline_mode<synchronous>, transform_indices = @transform_13, window_bounds = array<i64: 4, 1, 128>}, {transform_indices = @transform_14, window_bounds = array<i64: 8, 128>}]} {
    %c0_i32 = arith.constant 0 : i32
    %0 = arith.cmpi eq, %arg1, %c0_i32 : i32
    %1 = arith.extui %0 : i1 to i32
    %c0_i32_0 = arith.constant 0 : i32
    %2 = arith.cmpi ne, %1, %c0_i32_0 : i32
    scf.if %2 {
      %c0_52 = arith.constant 0 : index
      %c0_53 = arith.constant 0 : index
      %180 = vector.load %arg2[%c0_52, %c0_53] : memref<8x128xf32, #tpu.memory_space<vmem>>, vector<8x128xf32>
      %c0_54 = arith.constant 0 : index
      %c0_55 = arith.constant 0 : index
      %181 = vector.load %arg16[%c0_54, %c0_55] : memref<8x128xf32, #tpu.memory_space<vmem>>, vector<8x128xf32>
      tpu.vector_store %arg16[%c0_54, %c0_55], %180 {strides = array<i32>} : memref<8x128xf32, #tpu.memory_space<vmem>>, vector<8x128xf32>,
    } else {
    }
    %c0 = arith.constant 0 : index
    %c0_1 = arith.constant 0 : index
    %3 = vector.load %arg16[%c0, %c0_1] : memref<8x128xf32, #tpu.memory_space<vmem>>, vector<8x128xf32>
    %4 = arith.truncf %3 : vector<8x128xf32> to vector<8x128xbf16>
    %c0_2 = arith.constant 0 : index
    %c0_3 = arith.constant 0 : index
    %c0_4 = arith.constant 0 : index
    %5 = vector.load %arg3[%c0_2, %c0_3, %c0_4] : memref<1x1x8xf32, #tpu.memory_space<vmem>>, vector<1x1x8xf32>
    %cst = arith.constant -1.000000e+09 : f32
    %6 = vector.broadcast %cst : f32 to vector<1x1x8xf32>
    %7 = arith.mulf %5, %6 : vector<1x1x8xf32>
    %8 = vector.shape_cast %7 : vector<1x1x8xf32> to vector<1x1x1x8xf32>
    %9 = vector.shape_cast %8 : vector<1x1x1x8xf32> to vector<1x1x1x8xf32>
    %10 = vector.broadcast %9 : vector<1x1x1x8xf32> to vector<8x1x1x8xf32>
    %11 = vector.shape_cast %10 : vector<8x1x1x8xf32> to vector<8x1x8xf32>
    %12 = arith.index_cast %arg1 : i32 to index
    %c0_5 = arith.constant 0 : index
    %c0_6 = arith.constant 0 : index
    %13 = vector.load %arg4[%12, %c0_5, %c0_6] : memref<4x128x384xbf16, #tpu.memory_space<vmem>>, vector<1x128x384xbf16>
    %14 = vector.shape_cast %13 : vector<1x128x384xbf16> to vector<128x384xbf16>
    %15 = arith.index_cast %arg1 : i32 to index
    %c0_7 = arith.constant 0 : index
    %c0_8 = arith.constant 0 : index
    %16 = vector.load %arg5[%15, %c0_7, %c0_8] : memref<4x1x384xf32, #tpu.memory_space<vmem>>, vector<1x1x384xf32>
    %17 = vector.shape_cast %16 : vector<1x1x384xf32> to vector<1x384xf32>
    %cst_9 = arith.constant dense<0.000000e+00> : vector<8x384xf32>
    %18 = tpu.matmul %4, %14, %cst_9 {dimension_numbers = #tpu.dot_dimension_numbers<[1], [0], [0], [1], [0, 0, 1, 1], [], []>} : vector<8x128xbf16>, vector<128x384xbf16>, vector<8x384xf32> -> vector<8x384xf32>
    %19 = vector.broadcast %17 : vector<1x384xf32> to vector<8x384xf32>
    %20 = arith.addf %18, %19 : vector<8x384xf32>
    %21 = arith.truncf %20 : vector<8x384xf32> to vector<8x384xbf16>
    %22 = vector.extract_strided_slice %21 {offsets = [0, 0], sizes = [8, 16], strides = [1, 1]} : vector<8x384xbf16> to vector<8x16xbf16>
    %23 = vector.extract_strided_slice %21 {offsets = [0, 16], sizes = [8, 16], strides = [1, 1]} : vector<8x384xbf16> to vector<8x16xbf16>
    %24 = vector.extract_strided_slice %21 {offsets = [0, 32], sizes = [8, 16], strides = [1, 1]} : vector<8x384xbf16> to vector<8x16xbf16>
    %25 = vector.extract_strided_slice %21 {offsets = [0, 48], sizes = [8, 16], strides = [1, 1]} : vector<8x384xbf16> to vector<8x16xbf16>
    %26 = vector.extract_strided_slice %21 {offsets = [0, 64], sizes = [8, 16], strides = [1, 1]} : vector<8x384xbf16> to vector<8x16xbf16>
    %27 = vector.extract_strided_slice %21 {offsets = [0, 80], sizes = [8, 16], strides = [1, 1]} : vector<8x384xbf16> to vector<8x16xbf16>
    %28 = vector.extract_strided_slice %21 {offsets = [0, 96], sizes = [8, 16], strides = [1, 1]} : vector<8x384xbf16> to vector<8x16xbf16>
    %29 = vector.extract_strided_slice %21 {offsets = [0, 112], sizes = [8, 16], strides = [1, 1]} : vector<8x384xbf16> to vector<8x16xbf16>
    %30 = vector.shape_cast %22 : vector<8x16xbf16> to vector<1x8x16xbf16>
    %31 = vector.shape_cast %23 : vector<8x16xbf16> to vector<1x8x16xbf16>
    %32 = vector.shape_cast %24 : vector<8x16xbf16> to vector<1x8x16xbf16>
    %33 = vector.shape_cast %25 : vector<8x16xbf16> to vector<1x8x16xbf16>
    %34 = vector.shape_cast %26 : vector<8x16xbf16> to vector<1x8x16xbf16>
    %35 = vector.shape_cast %27 : vector<8x16xbf16> to vector<1x8x16xbf16>
    %36 = vector.shape_cast %28 : vector<8x16xbf16> to vector<1x8x16xbf16>
    %37 = vector.shape_cast %29 : vector<8x16xbf16> to vector<1x8x16xbf16>
    %38 = tpu.concatenate %30, %31, %32, %33, %34, %35, %36, %37 in 0 : vector<1x8x16xbf16>, vector<1x8x16xbf16>, vector<1x8x16xbf16>, vector<1x8x16xbf16>, vector<1x8x16xbf16>, vector<1x8x16xbf16>, vector<1x8x16xbf16>, vector<1x8x16xbf16> -> vector<8x8x16xbf16>
    %39 = vector.extract_strided_slice %21 {offsets = [0, 128], sizes = [8, 16], strides = [1, 1]} : vector<8x384xbf16> to vector<8x16xbf16>
    %40 = vector.extract_strided_slice %21 {offsets = [0, 144], sizes = [8, 16], strides = [1, 1]} : vector<8x384xbf16> to vector<8x16xbf16>
    %41 = vector.extract_strided_slice %21 {offsets = [0, 160], sizes = [8, 16], strides = [1, 1]} : vector<8x384xbf16> to vector<8x16xbf16>
    %42 = vector.extract_strided_slice %21 {offsets = [0, 176], sizes = [8, 16], strides = [1, 1]} : vector<8x384xbf16> to vector<8x16xbf16>
    %43 = vector.extract_strided_slice %21 {offsets = [0, 192], sizes = [8, 16], strides = [1, 1]} : vector<8x384xbf16> to vector<8x16xbf16>
    %44 = vector.extract_strided_slice %21 {offsets = [0, 208], sizes = [8, 16], strides = [1, 1]} : vector<8x384xbf16> to vector<8x16xbf16>
    %45 = vector.extract_strided_slice %21 {offsets = [0, 224], sizes = [8, 16], strides = [1, 1]} : vector<8x384xbf16> to vector<8x16xbf16>
    %46 = vector.extract_strided_slice %21 {offsets = [0, 240], sizes = [8, 16], strides = [1, 1]} : vector<8x384xbf16> to vector<8x16xbf16>
    %47 = vector.shape_cast %39 : vector<8x16xbf16> to vector<1x8x16xbf16>
    %48 = vector.shape_cast %40 : vector<8x16xbf16> to vector<1x8x16xbf16>
    %49 = vector.shape_cast %41 : vector<8x16xbf16> to vector<1x8x16xbf16>
    %50 = vector.shape_cast %42 : vector<8x16xbf16> to vector<1x8x16xbf16>
    %51 = vector.shape_cast %43 : vector<8x16xbf16> to vector<1x8x16xbf16>
    %52 = vector.shape_cast %44 : vector<8x16xbf16> to vector<1x8x16xbf16>
    %53 = vector.shape_cast %45 : vector<8x16xbf16> to vector<1x8x16xbf16>
    %54 = vector.shape_cast %46 : vector<8x16xbf16> to vector<1x8x16xbf16>
    %55 = tpu.concatenate %47, %48, %49, %50, %51, %52, %53, %54 in 0 : vector<1x8x16xbf16>, vector<1x8x16xbf16>, vector<1x8x16xbf16>, vector<1x8x16xbf16>, vector<1x8x16xbf16>, vector<1x8x16xbf16>, vector<1x8x16xbf16>, vector<1x8x16xbf16> -> vector<8x8x16xbf16>
    %56 = vector.extract_strided_slice %21 {offsets = [0, 256], sizes = [8, 16], strides = [1, 1]} : vector<8x384xbf16> to vector<8x16xbf16>
    %57 = vector.extract_strided_slice %21 {offsets = [0, 272], sizes = [8, 16], strides = [1, 1]} : vector<8x384xbf16> to vector<8x16xbf16>
    %58 = vector.extract_strided_slice %21 {offsets = [0, 288], sizes = [8, 16], strides = [1, 1]} : vector<8x384xbf16> to vector<8x16xbf16>
    %59 = vector.extract_strided_slice %21 {offsets = [0, 304], sizes = [8, 16], strides = [1, 1]} : vector<8x384xbf16> to vector<8x16xbf16>
    %60 = vector.extract_strided_slice %21 {offsets = [0, 320], sizes = [8, 16], strides = [1, 1]} : vector<8x384xbf16> to vector<8x16xbf16>
    %61 = vector.extract_strided_slice %21 {offsets = [0, 336], sizes = [8, 16], strides = [1, 1]} : vector<8x384xbf16> to vector<8x16xbf16>
    %62 = vector.extract_strided_slice %21 {offsets = [0, 352], sizes = [8, 16], strides = [1, 1]} : vector<8x384xbf16> to vector<8x16xbf16>
    %63 = vector.extract_strided_slice %21 {offsets = [0, 368], sizes = [8, 16], strides = [1, 1]} : vector<8x384xbf16> to vector<8x16xbf16>
    %64 = vector.shape_cast %56 : vector<8x16xbf16> to vector<1x8x16xbf16>
    %65 = vector.shape_cast %57 : vector<8x16xbf16> to vector<1x8x16xbf16>
    %66 = vector.shape_cast %58 : vector<8x16xbf16> to vector<1x8x16xbf16>
    %67 = vector.shape_cast %59 : vector<8x16xbf16> to vector<1x8x16xbf16>
    %68 = vector.shape_cast %60 : vector<8x16xbf16> to vector<1x8x16xbf16>
    %69 = vector.shape_cast %61 : vector<8x16xbf16> to vector<1x8x16xbf16>
    %70 = vector.shape_cast %62 : vector<8x16xbf16> to vector<1x8x16xbf16>
    %71 = vector.shape_cast %63 : vector<8x16xbf16> to vector<1x8x16xbf16>
    %72 = tpu.concatenate %64, %65, %66, %67, %68, %69, %70, %71 in 0 : vector<1x8x16xbf16>, vector<1x8x16xbf16>, vector<1x8x16xbf16>, vector<1x8x16xbf16>, vector<1x8x16xbf16>, vector<1x8x16xbf16>, vector<1x8x16xbf16>, vector<1x8x16xbf16> -> vector<8x8x16xbf16>
    %cst_10 = arith.constant dense<0.000000e+00> : vector<8x8x8xf32>
    %73 = tpu.matmul %38, %55, %cst_10 {dimension_numbers = #tpu.dot_dimension_numbers<[2], [2], [1], [1], [0, 0, 0, 1, 1, 1], [0], [0]>} : vector<8x8x16xbf16>, vector<8x8x16xbf16>, vector<8x8x8xf32> -> vector<8x8x8xf32>
    %74 = vector.broadcast %11 : vector<8x1x8xf32> to vector<8x8x8xf32>
    %75 = arith.addf %73, %74 : vector<8x8x8xf32>
    %cst_11 = arith.constant dense<0xFF800000> : vector<8x8xf32>
    %76 = vector.multi_reduction <maximumf>, %75, %cst_11 [2] : vector<8x8x8xf32> to vector<8x8xf32>
    %77 = vector.shape_cast %76 : vector<8x8xf32> to vector<8x8x1xf32>
    %78 = vector.broadcast %77 : vector<8x8x1xf32> to vector<8x8x8xf32>
    %79 = arith.subf %75, %78 : vector<8x8x8xf32>
    %80 = math.exp %79 : vector<8x8x8xf32>
    %cst_12 = arith.constant dense<0.000000e+00> : vector<8x8xf32>
    %81 = vector.multi_reduction <add>, %80, %cst_12 [2] : vector<8x8x8xf32> to vector<8x8xf32>
    %82 = vector.shape_cast %81 : vector<8x8xf32> to vector<8x8x1xf32>
    %83 = tpu.reciprocal %82 {approx = true} : vector<8x8x1xf32> -> vector<8x8x1xf32>
    %84 = vector.broadcast %83 : vector<8x8x1xf32> to vector<8x8x8xf32>
    %85 = arith.mulf %80, %84 : vector<8x8x8xf32>
    %86 = arith.truncf %85 : vector<8x8x8xf32> to vector<8x8x8xbf16>
    %cst_13 = arith.constant dense<0.000000e+00> : vector<8x8x16xf32>
    %87 = tpu.matmul %86, %72, %cst_13 {dimension_numbers = #tpu.dot_dimension_numbers<[2], [1], [1], [2], [0, 0, 0, 1, 1, 2], [0], [0]>} : vector<8x8x8xbf16>, vector<8x8x16xbf16>, vector<8x8x16xf32> -> vector<8x8x16xf32>
    %88 = arith.truncf %87 : vector<8x8x16xf32> to vector<8x8x16xbf16>
    %89 = arith.index_cast %arg1 : i32 to index
    %c0_14 = arith.constant 0 : index
    %c0_15 = arith.constant 0 : index
    %c0_16 = arith.constant 0 : index
    %90 = vector.load %arg6[%89, %c0_14, %c0_15, %c0_16] : memref<4x8x16x128xbf16, #tpu.memory_space<vmem>>, vector<1x8x16x128xbf16>
    %91 = vector.shape_cast %90 : vector<1x8x16x128xbf16> to vector<8x16x128xbf16>
    %cst_17 = arith.constant dense<0.000000e+00> : vector<8x8x128xf32>
    %92 = tpu.matmul %88, %91, %cst_17 {dimension_numbers = #tpu.dot_dimension_numbers<[2], [1], [1], [2], [0, 0, 0, 1, 1, 2], [0], [0]>} : vector<8x8x16xbf16>, vector<8x16x128xbf16>, vector<8x8x128xf32> -> vector<8x8x128xf32>
    %cst_18 = arith.constant dense<0.000000e+00> : vector<8x128xf32>
    %93 = vector.multi_reduction <add>, %92, %cst_18 [0] : vector<8x8x128xf32> to vector<8x128xf32>
    %94 = arith.index_cast %arg1 : i32 to index
    %c0_19 = arith.constant 0 : index
    %c0_20 = arith.constant 0 : index
    %95 = vector.load %arg7[%94, %c0_19, %c0_20] : memref<4x1x128xf32, #tpu.memory_space<vmem>>, vector<1x1x128xf32>
    %96 = vector.shape_cast %95 : vector<1x1x128xf32> to vector<1x128xf32>
    %97 = vector.broadcast %96 : vector<1x128xf32> to vector<8x128xf32>
    %98 = arith.addf %93, %97 : vector<8x128xf32>
    %99 = arith.addf %3, %98 : vector<8x128xf32>
    %cst_21 = arith.constant dense<0.000000e+00> : vector<8xf32>
    %100 = vector.multi_reduction <add>, %99, %cst_21 [1] : vector<8x128xf32> to vector<8xf32>
    %101 = vector.shape_cast %100 : vector<8xf32> to vector<8x1xf32>
    %cst_22 = arith.constant 1.280000e+02 : f32
    %102 = vector.broadcast %cst_22 : f32 to vector<8x1xf32>
    %103 = arith.divf %101, %102 : vector<8x1xf32>
    %104 = vector.broadcast %103 : vector<8x1xf32> to vector<8x128xf32>
    %105 = arith.subf %99, %104 : vector<8x128xf32>
    %106 = arith.mulf %105, %105 : vector<8x128xf32>
    %cst_23 = arith.constant dense<0.000000e+00> : vector<8xf32>
    %107 = vector.multi_reduction <add>, %106, %cst_23 [1] : vector<8x128xf32> to vector<8xf32>
    %108 = vector.shape_cast %107 : vector<8xf32> to vector<8x1xf32>
    %cst_24 = arith.constant 1.280000e+02 : f32
    %109 = vector.broadcast %cst_24 : f32 to vector<8x1xf32>
    %110 = arith.divf %108, %109 : vector<8x1xf32>
    %111 = vector.broadcast %103 : vector<8x1xf32> to vector<8x128xf32>
    %112 = arith.subf %99, %111 : vector<8x128xf32>
    %cst_25 = arith.constant 9.99999997E-7 : f32
    %113 = vector.broadcast %cst_25 : f32 to vector<8x1xf32>
    %114 = arith.addf %110, %113 : vector<8x1xf32>
    %115 = math.rsqrt %114 : vector<8x1xf32>
    %116 = vector.broadcast %115 : vector<8x1xf32> to vector<8x128xf32>
    %117 = arith.mulf %112, %116 : vector<8x128xf32>
    %118 = arith.index_cast %arg1 : i32 to index
    %c0_26 = arith.constant 0 : index
    %c0_27 = arith.constant 0 : index
    %119 = vector.load %arg8[%118, %c0_26, %c0_27] : memref<4x1x128xf32, #tpu.memory_space<vmem>>, vector<1x1x128xf32>
    %120 = vector.shape_cast %119 : vector<1x1x128xf32> to vector<1x128xf32>
    %121 = vector.broadcast %120 : vector<1x128xf32> to vector<8x128xf32>
    %122 = arith.mulf %117, %121 : vector<8x128xf32>
    %123 = arith.index_cast %arg1 : i32 to index
    %c0_28 = arith.constant 0 : index
    %c0_29 = arith.constant 0 : index
    %124 = vector.load %arg9[%123, %c0_28, %c0_29] : memref<4x1x128xf32, #tpu.memory_space<vmem>>, vector<1x1x128xf32>
    %125 = vector.shape_cast %124 : vector<1x1x128xf32> to vector<1x128xf32>
    %126 = vector.broadcast %125 : vector<1x128xf32> to vector<8x128xf32>
    %127 = arith.addf %122, %126 : vector<8x128xf32>
    %128 = arith.truncf %127 : vector<8x128xf32> to vector<8x128xbf16>
    %129 = arith.index_cast %arg1 : i32 to index
    %c0_30 = arith.constant 0 : index
    %c0_31 = arith.constant 0 : index
    %130 = vector.load %arg10[%129, %c0_30, %c0_31] : memref<4x128x512xbf16, #tpu.memory_space<vmem>>, vector<1x128x512xbf16>
    %131 = vector.shape_cast %130 : vector<1x128x512xbf16> to vector<128x512xbf16>
    %cst_32 = arith.constant dense<0.000000e+00> : vector<8x512xf32>
    %132 = tpu.matmul %128, %131, %cst_32 {dimension_numbers = #tpu.dot_dimension_numbers<[1], [0], [0], [1], [0, 0, 1, 1], [], []>} : vector<8x128xbf16>, vector<128x512xbf16>, vector<8x512xf32> -> vector<8x512xf32>
    %133 = arith.index_cast %arg1 : i32 to index
    %c0_33 = arith.constant 0 : index
    %c0_34 = arith.constant 0 : index
    %134 = vector.load %arg11[%133, %c0_33, %c0_34] : memref<4x1x512xf32, #tpu.memory_space<vmem>>, vector<1x1x512xf32>
    %135 = vector.shape_cast %134 : vector<1x1x512xf32> to vector<1x512xf32>
    %136 = vector.broadcast %135 : vector<1x512xf32> to vector<8x512xf32>
    %137 = arith.addf %132, %136 : vector<8x512xf32>
    %cst_35 = arith.constant 0.000000e+00 : f32
    %138 = vector.broadcast %cst_35 : f32 to vector<8x512xf32>
    %139 = arith.maximumf %137, %138 : vector<8x512xf32>
    %140 = arith.truncf %139 : vector<8x512xf32> to vector<8x512xbf16>
    %141 = arith.index_cast %arg1 : i32 to index
    %c0_36 = arith.constant 0 : index
    %c0_37 = arith.constant 0 : index
    %142 = vector.load %arg12[%141, %c0_36, %c0_37] : memref<4x512x128xbf16, #tpu.memory_space<vmem>>, vector<1x512x128xbf16>
    %143 = vector.shape_cast %142 : vector<1x512x128xbf16> to vector<512x128xbf16>
    %cst_38 = arith.constant dense<0.000000e+00> : vector<8x128xf32>
    %144 = tpu.matmul %140, %143, %cst_38 {dimension_numbers = #tpu.dot_dimension_numbers<[1], [0], [0], [1], [0, 0, 1, 1], [], []>} : vector<8x512xbf16>, vector<512x128xbf16>, vector<8x128xf32> -> vector<8x128xf32>
    %145 = arith.index_cast %arg1 : i32 to index
    %c0_39 = arith.constant 0 : index
    %c0_40 = arith.constant 0 : index
    %146 = vector.load %arg13[%145, %c0_39, %c0_40] : memref<4x1x128xf32, #tpu.memory_space<vmem>>, vector<1x1x128xf32>
    %147 = vector.shape_cast %146 : vector<1x1x128xf32> to vector<1x128xf32>
    %148 = vector.broadcast %147 : vector<1x128xf32> to vector<8x128xf32>
    %149 = arith.addf %144, %148 : vector<8x128xf32>
    %150 = arith.addf %127, %149 : vector<8x128xf32>
    %cst_41 = arith.constant dense<0.000000e+00> : vector<8xf32>
    %151 = vector.multi_reduction <add>, %150, %cst_41 [1] : vector<8x128xf32> to vector<8xf32>
    %152 = vector.shape_cast %151 : vector<8xf32> to vector<8x1xf32>
    %cst_42 = arith.constant 1.280000e+02 : f32
    %153 = vector.broadcast %cst_42 : f32 to vector<8x1xf32>
    %154 = arith.divf %152, %153 : vector<8x1xf32>
    %155 = vector.broadcast %154 : vector<8x1xf32> to vector<8x128xf32>
    %156 = arith.subf %150, %155 : vector<8x128xf32>
    %157 = arith.mulf %156, %156 : vector<8x128xf32>
    %cst_43 = arith.constant dense<0.000000e+00> : vector<8xf32>
    %158 = vector.multi_reduction <add>, %157, %cst_43 [1] : vector<8x128xf32> to vector<8xf32>
    %159 = vector.shape_cast %158 : vector<8xf32> to vector<8x1xf32>
    %cst_44 = arith.constant 1.280000e+02 : f32
    %160 = vector.broadcast %cst_44 : f32 to vector<8x1xf32>
    %161 = arith.divf %159, %160 : vector<8x1xf32>
    %162 = vector.broadcast %154 : vector<8x1xf32> to vector<8x128xf32>
    %163 = arith.subf %150, %162 : vector<8x128xf32>
    %cst_45 = arith.constant 9.99999997E-7 : f32
    %164 = vector.broadcast %cst_45 : f32 to vector<8x1xf32>
    %165 = arith.addf %161, %164 : vector<8x1xf32>
    %166 = math.rsqrt %165 : vector<8x1xf32>
    %167 = vector.broadcast %166 : vector<8x1xf32> to vector<8x128xf32>
    %168 = arith.mulf %163, %167 : vector<8x128xf32>
    %169 = arith.index_cast %arg1 : i32 to index
    %c0_46 = arith.constant 0 : index
    %c0_47 = arith.constant 0 : index
    %170 = vector.load %arg14[%169, %c0_46, %c0_47] : memref<4x1x128xf32, #tpu.memory_space<vmem>>, vector<1x1x128xf32>
    %171 = vector.shape_cast %170 : vector<1x1x128xf32> to vector<1x128xf32>
    %172 = vector.broadcast %171 : vector<1x128xf32> to vector<8x128xf32>
    %173 = arith.mulf %168, %172 : vector<8x128xf32>
    %174 = arith.index_cast %arg1 : i32 to index
    %c0_48 = arith.constant 0 : index
    %c0_49 = arith.constant 0 : index
    %175 = vector.load %arg15[%174, %c0_48, %c0_49] : memref<4x1x128xf32, #tpu.memory_space<vmem>>, vector<1x1x128xf32>
    %176 = vector.shape_cast %175 : vector<1x1x128xf32> to vector<1x128xf32>
    %177 = vector.broadcast %176 : vector<1x128xf32> to vector<8x128xf32>
    %178 = arith.addf %173, %177 : vector<8x128xf32>
    %c0_50 = arith.constant 0 : index
    %c0_51 = arith.constant 0 : index
    %179 = vector.load %arg16[%c0_50, %c0_51] : memref<8x128xf32, #tpu.memory_space<vmem>>, vector<8x128xf32>
    tpu.vector_store %arg16[%c0_50, %c0_51], %178 {strides = array<i32>} : memref<8x128xf32, #tpu.memory_space<vmem>>, vector<8x128xf32>,
    return
  }
  func.func @transform_0(%arg0: i32, %arg1: i32) -> (i32, i32) {
    %c0_i32 = arith.constant 0 : i32
    %c0_i32_0 = arith.constant 0 : i32
    return %arg0, %c0_i32 : i32, i32
  }
  func.func @transform_1(%arg0: i32, %arg1: i32) -> (i32, i32, i32) {
    %c0_i32 = arith.constant 0 : i32
    %c0_i32_0 = arith.constant 0 : i32
    %c0_i32_1 = arith.constant 0 : i32
    return %arg0, %c0_i32, %c0_i32_0 : i32, i32, i32
  }
  func.func @transform_2(%arg0: i32, %arg1: i32) -> (i32, i32, i32) {
    %c0_i32 = arith.constant 0 : i32
    %c0_i32_0 = arith.constant 0 : i32
    %c0_i32_1 = arith.constant 0 : i32
    %c0_i32_2 = arith.constant 0 : i32
    return %c0_i32, %c0_i32_0, %c0_i32_1 : i32, i32, i32
  }
  func.func @transform_3(%arg0: i32, %arg1: i32) -> (i32, i32, i32) {
    %c0_i32 = arith.constant 0 : i32
    %c0_i32_0 = arith.constant 0 : i32
    %c0_i32_1 = arith.constant 0 : i32
    %c0_i32_2 = arith.constant 0 : i32
    return %c0_i32, %c0_i32_0, %c0_i32_1 : i32, i32, i32
  }
  func.func @transform_4(%arg0: i32, %arg1: i32) -> (i32, i32, i32, i32) {
    %c0_i32 = arith.constant 0 : i32
    %c0_i32_0 = arith.constant 0 : i32
    %c0_i32_1 = arith.constant 0 : i32
    %c0_i32_2 = arith.constant 0 : i32
    %c0_i32_3 = arith.constant 0 : i32
    return %c0_i32, %c0_i32_0, %c0_i32_1, %c0_i32_2 : i32, i32, i32, i32
  }
  func.func @transform_5(%arg0: i32, %arg1: i32) -> (i32, i32, i32) {
    %c0_i32 = arith.constant 0 : i32
    %c0_i32_0 = arith.constant 0 : i32
    %c0_i32_1 = arith.constant 0 : i32
    %c0_i32_2 = arith.constant 0 : i32
    return %c0_i32, %c0_i32_0, %c0_i32_1 : i32, i32, i32
  }
  func.func @transform_6(%arg0: i32, %arg1: i32) -> (i32, i32, i32) {
    %c0_i32 = arith.constant 0 : i32
    %c0_i32_0 = arith.constant 0 : i32
    %c0_i32_1 = arith.constant 0 : i32
    %c0_i32_2 = arith.constant 0 : i32
    return %c0_i32, %c0_i32_0, %c0_i32_1 : i32, i32, i32
  }
  func.func @transform_7(%arg0: i32, %arg1: i32) -> (i32, i32, i32) {
    %c0_i32 = arith.constant 0 : i32
    %c0_i32_0 = arith.constant 0 : i32
    %c0_i32_1 = arith.constant 0 : i32
    %c0_i32_2 = arith.constant 0 : i32
    return %c0_i32, %c0_i32_0, %c0_i32_1 : i32, i32, i32
  }
  func.func @transform_8(%arg0: i32, %arg1: i32) -> (i32, i32, i32) {
    %c0_i32 = arith.constant 0 : i32
    %c0_i32_0 = arith.constant 0 : i32
    %c0_i32_1 = arith.constant 0 : i32
    %c0_i32_2 = arith.constant 0 : i32
    return %c0_i32, %c0_i32_0, %c0_i32_1 : i32, i32, i32
  }
  func.func @transform_9(%arg0: i32, %arg1: i32) -> (i32, i32, i32) {
    %c0_i32 = arith.constant 0 : i32
    %c0_i32_0 = arith.constant 0 : i32
    %c0_i32_1 = arith.constant 0 : i32
    %c0_i32_2 = arith.constant 0 : i32
    return %c0_i32, %c0_i32_0, %c0_i32_1 : i32, i32, i32
  }
  func.func @transform_10(%arg0: i32, %arg1: i32) -> (i32, i32, i32) {
    %c0_i32 = arith.constant 0 : i32
    %c0_i32_0 = arith.constant 0 : i32
    %c0_i32_1 = arith.constant 0 : i32
    %c0_i32_2 = arith.constant 0 : i32
    return %c0_i32, %c0_i32_0, %c0_i32_1 : i32, i32, i32
  }
  func.func @transform_11(%arg0: i32, %arg1: i32) -> (i32, i32, i32) {
    %c0_i32 = arith.constant 0 : i32
    %c0_i32_0 = arith.constant 0 : i32
    %c0_i32_1 = arith.constant 0 : i32
    %c0_i32_2 = arith.constant 0 : i32
    return %c0_i32, %c0_i32_0, %c0_i32_1 : i32, i32, i32
  }
  func.func @transform_12(%arg0: i32, %arg1: i32) -> (i32, i32, i32) {
    %c0_i32 = arith.constant 0 : i32
    %c0_i32_0 = arith.constant 0 : i32
    %c0_i32_1 = arith.constant 0 : i32
    %c0_i32_2 = arith.constant 0 : i32
    return %c0_i32, %c0_i32_0, %c0_i32_1 : i32, i32, i32
  }
  func.func @transform_13(%arg0: i32, %arg1: i32) -> (i32, i32, i32) {
    %c0_i32 = arith.constant 0 : i32
    %c0_i32_0 = arith.constant 0 : i32
    %c0_i32_1 = arith.constant 0 : i32
    %c0_i32_2 = arith.constant 0 : i32
    return %c0_i32, %c0_i32_0, %c0_i32_1 : i32, i32, i32
  }
  func.func @transform_14(%arg0: i32, %arg1: i32) -> (i32, i32) {
    %c0_i32 = arith.constant 0 : i32
    %c0_i32_0 = arith.constant 0 : i32
    return %arg0, %c0_i32 : i32, i32
  }
}

</mosaic_0001>

<llo_original>
// kernel: transformer_encoder_forward.1
$region0: #{transformer_encoder_forward.1}
  #allocation0 [shape = 'u32[]', space=smem, size = 0x4, offset = 0x4, fixed_abs, tag = 'smem constant byte address 0x4 - core index']
  #allocation1 [shape = 'u32[144,128]{1,0:T(1,128)}', space=vmem, size = 0x12000, scoped, tag = 'internal scratch']
  %s0 = inlined_call_operand.vmem [shape: f32[16,128], index: 0, kind: input, shape index: {}]
  %s1 = inlined_call_operand.vmem [shape: f32[2,1,8], index: 1, kind: input, shape index: {}]
  %s2 = inlined_call_operand.hbm [shape: bf16[4,128,384], index: 2, kind: input, shape index: {}]
  %s3 = inlined_call_operand.vmem [shape: f32[4,1,384], index: 3, kind: input, shape index: {}]
  %s4 = inlined_call_operand.hbm [shape: bf16[4,8,16,128], index: 4, kind: input, shape index: {}]
  %s5 = inlined_call_operand.vmem [shape: f32[4,1,128], index: 5, kind: input, shape index: {}]
  %s6 = inlined_call_operand.vmem [shape: f32[4,1,128], index: 6, kind: input, shape index: {}]
  %s7 = inlined_call_operand.vmem [shape: f32[4,1,128], index: 7, kind: input, shape index: {}]
  %s8 = inlined_call_operand.hbm [shape: bf16[4,128,512], index: 8, kind: input, shape index: {}]
  %s9 = inlined_call_operand.vmem [shape: f32[4,1,512], index: 9, kind: input, shape index: {}]
  %s10 = inlined_call_operand.hbm [shape: bf16[4,512,128], index: 10, kind: input, shape index: {}]
  %s11 = inlined_call_operand.vmem [shape: f32[4,1,128], index: 11, kind: input, shape index: {}]
  %s12 = inlined_call_operand.vmem [shape: f32[4,1,128], index: 12, kind: input, shape index: {}]
  %s13 = inlined_call_operand.vmem [shape: f32[4,1,128], index: 13, kind: input, shape index: {}]
  %s14 = inlined_call_operand.hbm [shape: f32[16,128], index: 14, kind: output, shape index: {}]
  %s15 = sld [smem:[#allocation0]]
  $region109: #{transformer_encoder_forward.1} parent=0
    _
  %s17 = ssub.s32 1, %s15
  %s18 = scalar_select 0, %s17, %s15
  $region1: #{transformer_encoder_forward.1} parent=0
    #allocation2 [shape = 'u8[393216]{0}', space=vmem, size = 0x60000, scoped, tag = 'input window, operand 2, single buffered']
    #allocation3 [shape = 's32[2]{0}', space=sflag, size = 0x8, scoped, tag = 'scoped memory for transformer_encoder_forward.1']
    #allocation4 [shape = 's32[2]{0}', space=sflag, size = 0x8, scoped, tag = 'scoped memory for transformer_encoder_forward.1']
    #allocation5 [shape = 'u8[131072]{0}', space=vmem, size = 0x20000, scoped, tag = 'input window, operand 4, single buffered']
    #allocation6 [shape = 's32[1]{0}', space=sflag, size = 0x4, scoped, tag = 'scoped memory for transformer_encoder_forward.1']
    #allocation7 [shape = 'u8[524288]{0}', space=vmem, size = 0x80000, scoped, tag = 'input window, operand 8, single buffered']
    #allocation8 [shape = 'u8[524288]{0}', space=vmem, size = 0x80000, scoped, tag = 'input window, operand 10, single buffered']
    #allocation9 [shape = 's32[1]{0}', space=sflag, size = 0x4, scoped, tag = 'scoped memory for transformer_encoder_forward.1']
    #allocation10 [shape = 'u8[8192]{0}', space=vmem, size = 0x2000, scoped, tag = 'output window, operand 0']
    %19 = vsyncpa [#allocation3], 0
    %20 = vsyncpa [#allocation6], 0
    %21 = vsyncpa [#allocation9], 0
    %22 = vsyncpa [#allocation4], 0
    %s23 = scalar_lea.sflag [#allocation4], 1
    %24 = vsyncpa %s23, 0
    loop: start=0, step=1, limit=10
    $region2: #{transformer_encoder_forward.1} parent=1 // loop_pre_header
      _
    $region3: #{transformer_encoder_forward.1} parent=1 // loop_header
      %s26 = sphi 0, %s30
      %p27 = scmp.ge.s32.totalorder %s26, 10
      %s33 = sphi 0, %s45
      %s34 = sphi 0, %s41
      %s35 = sphi 0, %s33
      %s36 = sphi 0, %s34
      %s37 = sphi 0, %s35
      %s38 = sphi 0, %s36
      %s48 = sphi 0, %s50
      %s51 = sphi 0, %s48
      %s52 = sphi 0, %s51
      %s68 = sphi 0, %s52
      %s74 = sphi 0, %s76
      %s77 = sphi 0, %s74
      %s78 = sphi 0, %s77
      %s94 = sphi 0, %s78
      %s98 = sphi 0, %s98
      %s100 = sphi 0, %s98
      %s101 = sphi 0, %s100
      %s115 = sphi 0, %s101
      %s119 = sphi 0, %s119
      %s121 = sphi 0, %s119
      %s122 = sphi 0, %s121
      %s136 = sphi 0, %s122
      %s140 = sphi 0, %s140
      %s142 = sphi 0, %s140
      %s143 = sphi 0, %s142
      %s157 = sphi 0, %s143
      %s161 = sphi 0, %s161
      %s163 = sphi 0, %s161
      %s164 = sphi 0, %s163
      %s178 = sphi 0, %s164
      %s182 = sphi 0, %s182
      %s184 = sphi 0, %s182
      %s185 = sphi 0, %s184
      %s199 = sphi 0, %s185
      %s203 = sphi 0, %s203
      %s205 = sphi 0, %s203
      %s206 = sphi 0, %s205
      %s220 = sphi 0, %s206
      %s224 = sphi 0, %s224
      %s226 = sphi 0, %s224
      %s227 = sphi 0, %s226
      %s241 = sphi 0, %s227
      %s245 = sphi 0, %s245
      %s247 = sphi 0, %s245
      %s248 = sphi 0, %s247
      %s262 = sphi 0, %s248
      %s266 = sphi 0, %s266
      %s268 = sphi 0, %s266
      %s269 = sphi 0, %s268
      %s283 = sphi 0, %s269
      %s287 = sphi 0, %s287
      %s289 = sphi 0, %s287
      %s290 = sphi 0, %s289
      %s304 = sphi 0, %s290
      %s308 = sphi 0, %s308
      %s310 = sphi 0, %s308
      %s311 = sphi 0, %s310
      %s325 = sphi 0, %s311
      %s329 = sphi 0, %s329
      %s331 = sphi 0, %s329
      %s332 = sphi 0, %s331
      %s346 = sphi 0, %s332
      %s352 = sphi 0, %s354
      %s355 = sphi 0, %s352
      %s356 = sphi 0, %s355
      %s372 = sphi 0, %s356
    $region4: #{transformer_encoder_forward.1} parent=1 // loop_header_branch
      %29 = sbr.rel (%p27) target = $region8
    $region5: #{transformer_encoder_forward.1} parent=1 // loop_body
      %s31 = ssub.s32 %s26, 1
      %s32 = ssub.s32 %s26, 2
      %s39 = sadd.s32 1, %s34
      %p40 = scmp.ge.s32.totalorder %s39, 4
      %s41 = scalar_select %p40, 0, %s39
      %s42 = sadd.s32 1, %s33
      %s43 = scalar_select %p40, %s42, %s33
      %p44 = scmp.ge.s32.totalorder %s43, 2
      %s45 = scalar_select %p44, 0, %s43
      %s46 = ssub.s32 %s33, %s45
      %p47 = scmp.eq.s32.totalorder %s46, 0
      %s49 = sadd.s32 %s48, 1
      %s50 = scalar_select %p47, %s48, %s49
      %p53 = pneg %p47
      %p54 = scmp.eq.s32.totalorder %s26, 7
      %p55 = por %p53, %p54
      %p56 = scmp.ne.s32.totalorder %s48, %s51
      %p57 = scmp.eq.s32.totalorder %s26, 0
      %p58 = por %p56, %p57
      %p59 = scmp.ne.s32.totalorder %s48, %s51
      %p60 = scmp.eq.s32.totalorder %s31, 7
      %p61 = por %p59, %p60
      %p62 = scmp.ne.s32.totalorder %s51, %s52
      %p63 = scmp.eq.s32.totalorder %s31, 0
      %p64 = por %p62, %p63
      %p65 = scmp.ne.s32.totalorder %s51, %s52
      %p66 = scmp.eq.s32.totalorder %s32, 7
      %p67 = por %p65, %p66
      %p69 = scmp.ne.s32.totalorder %s52, %s68
      %p70 = scmp.eq.s32.totalorder %s32, 0
      %p71 = por %p69, %p70
      %s72 = ssub.s32 %s33, %s45
      %p73 = scmp.eq.s32.totalorder %s72, 0
      %s75 = sadd.s32 %s74, 1
      %s76 = scalar_select %p73, %s74, %s75
      %p79 = pneg %p73
      %p80 = scmp.eq.s32.totalorder %s26, 7
      %p81 = por %p79, %p80
      %p82 = scmp.ne.s32.totalorder %s74, %s77
      %p83 = scmp.eq.s32.totalorder %s26, 0
      %p84 = por %p82, %p83
      %p85 = scmp.ne.s32.totalorder %s74, %s77
      %p86 = scmp.eq.s32.totalorder %s31, 7
      %p87 = por %p85, %p86
      %p88 = scmp.ne.s32.totalorder %s77, %s78
      %p89 = scmp.eq.s32.totalorder %s31, 0
      %p90 = por %p88, %p89
      %p91 = scmp.ne.s32.totalorder %s77, %s78
      %p92 = scmp.eq.s32.totalorder %s32, 7
      %p93 = por %p91, %p92
      %p95 = scmp.ne.s32.totalorder %s78, %s94
      %p96 = scmp.eq.s32.totalorder %s32, 0
      %p97 = por %p95, %p96
      %s99 = sadd.s32 %s98, 1
      %p102 = scmp.eq.s32.totalorder %s26, 7
      %p103 = scmp.ne.s32.totalorder %s98, %s100
      %p104 = scmp.eq.s32.totalorder %s26, 0
      %p105 = por %p103, %p104
      %p106 = scmp.ne.s32.totalorder %s98, %s100
      %p107 = scmp.eq.s32.totalorder %s31, 7
      %p108 = por %p106, %p107
      %p109 = scmp.ne.s32.totalorder %s100, %s101
      %p110 = scmp.eq.s32.totalorder %s31, 0
      %p111 = por %p109, %p110
      %p112 = scmp.ne.s32.totalorder %s100, %s101
      %p113 = scmp.eq.s32.totalorder %s32, 7
      %p114 = por %p112, %p113
      %p116 = scmp.ne.s32.totalorder %s101, %s115
      %p117 = scmp.eq.s32.totalorder %s32, 0
      %p118 = por %p116, %p117
      %s120 = sadd.s32 %s119, 1
      %p123 = scmp.eq.s32.totalorder %s26, 7
      %p124 = scmp.ne.s32.totalorder %s119, %s121
      %p125 = scmp.eq.s32.totalorder %s26, 0
      %p126 = por %p124, %p125
      %p127 = scmp.ne.s32.totalorder %s119, %s121
      %p128 = scmp.eq.s32.totalorder %s31, 7
      %p129 = por %p127, %p128
      %p130 = scmp.ne.s32.totalorder %s121, %s122
      %p131 = scmp.eq.s32.totalorder %s31, 0
      %p132 = por %p130, %p131
      %p133 = scmp.ne.s32.totalorder %s121, %s122
      %p134 = scmp.eq.s32.totalorder %s32, 7
      %p135 = por %p133, %p134
      %p137 = scmp.ne.s32.totalorder %s122, %s136
      %p138 = scmp.eq.s32.totalorder %s32, 0
      %p139 = por %p137, %p138
      %s141 = sadd.s32 %s140, 1
      %p144 = scmp.eq.s32.totalorder %s26, 7
      %p145 = scmp.ne.s32.totalorder %s140, %s142
      %p146 = scmp.eq.s32.totalorder %s26, 0
      %p147 = por %p145, %p146
      %p148 = scmp.ne.s32.totalorder %s140, %s142
      %p149 = scmp.eq.s32.totalorder %s31, 7
      %p150 = por %p148, %p149
      %p151 = scmp.ne.s32.totalorder %s142, %s143
      %p152 = scmp.eq.s32.totalorder %s31, 0
      %p153 = por %p151, %p152
      %p154 = scmp.ne.s32.totalorder %s142, %s143
      %p155 = scmp.eq.s32.totalorder %s32, 7
      %p156 = por %p154, %p155
      %p158 = scmp.ne.s32.totalorder %s143, %s157
      %p159 = scmp.eq.s32.totalorder %s32, 0
      %p160 = por %p158, %p159
      %s162 = sadd.s32 %s161, 1
      %p165 = scmp.eq.s32.totalorder %s26, 7
      %p166 = scmp.ne.s32.totalorder %s161, %s163
      %p167 = scmp.eq.s32.totalorder %s26, 0
      %p168 = por %p166, %p167
      %p169 = scmp.ne.s32.totalorder %s161, %s163
      %p170 = scmp.eq.s32.totalorder %s31, 7
      %p171 = por %p169, %p170
      %p172 = scmp.ne.s32.totalorder %s163, %s164
      %p173 = scmp.eq.s32.totalorder %s31, 0
      %p174 = por %p172, %p173
      %p175 = scmp.ne.s32.totalorder %s163, %s164
      %p176 = scmp.eq.s32.totalorder %s32, 7
      %p177 = por %p175, %p176
      %p179 = scmp.ne.s32.totalorder %s164, %s178
      %p180 = scmp.eq.s32.totalorder %s32, 0
      %p181 = por %p179, %p180
      %s183 = sadd.s32 %s182, 1
      %p186 = scmp.eq.s32.totalorder %s26, 7
      %p187 = scmp.ne.s32.totalorder %s182, %s184
      %p188 = scmp.eq.s32.totalorder %s26, 0
      %p189 = por %p187, %p188
      %p190 = scmp.ne.s32.totalorder %s182, %s184
      %p191 = scmp.eq.s32.totalorder %s31, 7
      %p192 = por %p190, %p191
      %p193 = scmp.ne.s32.totalorder %s184, %s185
      %p194 = scmp.eq.s32.totalorder %s31, 0
      %p195 = por %p193, %p194
      %p196 = scmp.ne.s32.totalorder %s184, %s185
      %p197 = scmp.eq.s32.totalorder %s32, 7
      %p198 = por %p196, %p197
      %p200 = scmp.ne.s32.totalorder %s185, %s199
      %p201 = scmp.eq.s32.totalorder %s32, 0
      %p202 = por %p200, %p201
      %s204 = sadd.s32 %s203, 1
      %p207 = scmp.eq.s32.totalorder %s26, 7
      %p208 = scmp.ne.s32.totalorder %s203, %s205
      %p209 = scmp.eq.s32.totalorder %s26, 0
      %p210 = por %p208, %p209
      %p211 = scmp.ne.s32.totalorder %s203, %s205
      %p212 = scmp.eq.s32.totalorder %s31, 7
      %p213 = por %p211, %p212
      %p214 = scmp.ne.s32.totalorder %s205, %s206
      %p215 = scmp.eq.s32.totalorder %s31, 0
      %p216 = por %p214, %p215
      %p217 = scmp.ne.s32.totalorder %s205, %s206
      %p218 = scmp.eq.s32.totalorder %s32, 7
      %p219 = por %p217, %p218
      %p221 = scmp.ne.s32.totalorder %s206, %s220
      %p222 = scmp.eq.s32.totalorder %s32, 0
      %p223 = por %p221, %p222
      %s225 = sadd.s32 %s224, 1
      %p228 = scmp.eq.s32.totalorder %s26, 7
      %p229 = scmp.ne.s32.totalorder %s224, %s226
      %p230 = scmp.eq.s32.totalorder %s26, 0
      %p231 = por %p229, %p230
      %p232 = scmp.ne.s32.totalorder %s224, %s226
      %p233 = scmp.eq.s32.totalorder %s31, 7
      %p234 = por %p232, %p233
      %p235 = scmp.ne.s32.totalorder %s226, %s227
      %p236 = scmp.eq.s32.totalorder %s31, 0
      %p237 = por %p235, %p236
      %p238 = scmp.ne.s32.totalorder %s226, %s227
      %p239 = scmp.eq.s32.totalorder %s32, 7
      %p240 = por %p238, %p239
      %p242 = scmp.ne.s32.totalorder %s227, %s241
      %p243 = scmp.eq.s32.totalorder %s32, 0
      %p244 = por %p242, %p243
      %s246 = sadd.s32 %s245, 1
      %p249 = scmp.eq.s32.totalorder %s26, 7
      %p250 = scmp.ne.s32.totalorder %s245, %s247
      %p251 = scmp.eq.s32.totalorder %s26, 0
      %p252 = por %p250, %p251
      %p253 = scmp.ne.s32.totalorder %s245, %s247
      %p254 = scmp.eq.s32.totalorder %s31, 7
      %p255 = por %p253, %p254
      %p256 = scmp.ne.s32.totalorder %s247, %s248
      %p257 = scmp.eq.s32.totalorder %s31, 0
      %p258 = por %p256, %p257
      %p259 = scmp.ne.s32.totalorder %s247, %s248
      %p260 = scmp.eq.s32.totalorder %s32, 7
      %p261 = por %p259, %p260
      %p263 = scmp.ne.s32.totalorder %s248, %s262
      %p264 = scmp.eq.s32.totalorder %s32, 0
      %p265 = por %p263, %p264
      %s267 = sadd.s32 %s266, 1
      %p270 = scmp.eq.s32.totalorder %s26, 7
      %p271 = scmp.ne.s32.totalorder %s266, %s268
      %p272 = scmp.eq.s32.totalorder %s26, 0
      %p273 = por %p271, %p272
      %p274 = scmp.ne.s32.totalorder %s266, %s268
      %p275 = scmp.eq.s32.totalorder %s31, 7
      %p276 = por %p274, %p275
      %p277 = scmp.ne.s32.totalorder %s268, %s269
      %p278 = scmp.eq.s32.totalorder %s31, 0
      %p279 = por %p277, %p278
      %p280 = scmp.ne.s32.totalorder %s268, %s269
      %p281 = scmp.eq.s32.totalorder %s32, 7
      %p282 = por %p280, %p281
      %p284 = scmp.ne.s32.totalorder %s269, %s283
      %p285 = scmp.eq.s32.totalorder %s32, 0
      %p286 = por %p284, %p285
      %s288 = sadd.s32 %s287, 1
      %p291 = scmp.eq.s32.totalorder %s26, 7
      %p292 = scmp.ne.s32.totalorder %s287, %s289
      %p293 = scmp.eq.s32.totalorder %s26, 0
      %p294 = por %p292, %p293
      %p295 = scmp.ne.s32.totalorder %s287, %s289
      %p296 = scmp.eq.s32.totalorder %s31, 7
      %p297 = por %p295, %p296
      %p298 = scmp.ne.s32.totalorder %s289, %s290
      %p299 = scmp.eq.s32.totalorder %s31, 0
      %p300 = por %p298, %p299
      %p301 = scmp.ne.s32.totalorder %s289, %s290
      %p302 = scmp.eq.s32.totalorder %s32, 7
      %p303 = por %p301, %p302
      %p305 = scmp.ne.s32.totalorder %s290, %s304
      %p306 = scmp.eq.s32.totalorder %s32, 0
      %p307 = por %p305, %p306
      %s309 = sadd.s32 %s308, 1
      %p312 = scmp.eq.s32.totalorder %s26, 7
      %p313 = scmp.ne.s32.totalorder %s308, %s310
      %p314 = scmp.eq.s32.totalorder %s26, 0
      %p315 = por %p313, %p314
      %p316 = scmp.ne.s32.totalorder %s308, %s310
      %p317 = scmp.eq.s32.totalorder %s31, 7
      %p318 = por %p316, %p317
      %p319 = scmp.ne.s32.totalorder %s310, %s311
      %p320 = scmp.eq.s32.totalorder %s31, 0
      %p321 = por %p319, %p320
      %p322 = scmp.ne.s32.totalorder %s310, %s311
      %p323 = scmp.eq.s32.totalorder %s32, 7
      %p324 = por %p322, %p323
      %p326 = scmp.ne.s32.totalorder %s311, %s325
      %p327 = scmp.eq.s32.totalorder %s32, 0
      %p328 = por %p326, %p327
      %s330 = sadd.s32 %s329, 1
      %p333 = scmp.eq.s32.totalorder %s26, 7
      %p334 = scmp.ne.s32.totalorder %s329, %s331
      %p335 = scmp.eq.s32.totalorder %s26, 0
      %p336 = por %p334, %p335
      %p337 = scmp.ne.s32.totalorder %s329, %s331
      %p338 = scmp.eq.s32.totalorder %s31, 7
      %p339 = por %p337, %p338
      %p340 = scmp.ne.s32.totalorder %s331, %s332
      %p341 = scmp.eq.s32.totalorder %s31, 0
      %p342 = por %p340, %p341
      %p343 = scmp.ne.s32.totalorder %s331, %s332
      %p344 = scmp.eq.s32.totalorder %s32, 7
      %p345 = por %p343, %p344
      %p347 = scmp.ne.s32.totalorder %s332, %s346
      %p348 = scmp.eq.s32.totalorder %s32, 0
      %p349 = por %p347, %p348
      %s350 = ssub.s32 %s33, %s45
      %p351 = scmp.eq.s32.totalorder %s350, 0
      %s353 = sadd.s32 %s352, 1
      %s354 = scalar_select %p351, %s352, %s353
      %p357 = pneg %p351
      %p358 = scmp.eq.s32.totalorder %s26, 7
      %p359 = por %p357, %p358
      %p360 = scmp.ne.s32.totalorder %s352, %s355
      %p361 = scmp.eq.s32.totalorder %s26, 0
      %p362 = por %p360, %p361
      %p363 = scmp.ne.s32.totalorder %s352, %s355
      %p364 = scmp.eq.s32.totalorder %s31, 7
      %p365 = por %p363, %p364
      %p366 = scmp.ne.s32.totalorder %s355, %s356
      %p367 = scmp.eq.s32.totalorder %s31, 0
      %p368 = por %p366, %p367
      %p369 = scmp.ne.s32.totalorder %s355, %s356
      %p370 = scmp.eq.s32.totalorder %s32, 7
      %p371 = por %p369, %p370
      %p373 = scmp.ne.s32.totalorder %s356, %s372
      %p374 = scmp.eq.s32.totalorder %s32, 0
      %p375 = por %p373, %p374
      %p376 = scmp.le.s32.totalorder 1, %s26
      %p377 = scmp.lt.s32.totalorder %s26, 9
      %p378 = pnand %p376, %p377
      %p379 = pneg %p378
      // Predicated region
      $region9: #{transformer_encoder_forward.1} parent=5 // pred_check
        _
      $region10: #{transformer_encoder_forward.1} parent=5 // pred_check_branch
        %381 = sbr.rel (%p378) target = $region12
      $region11: #{transformer_encoder_forward.1} parent=5 // pred_region
        %s382 = ssub.s32 %s26, 1
        // Predicated region
        $region13: #{transformer_encoder_forward.1} parent=11 // pred_check
          %p383 = pneg %p111
        $region14: #{transformer_encoder_forward.1} parent=11 // pred_check_branch
          %385 = sbr.rel (%p383) target = $region16
        $region15: #{transformer_encoder_forward.1} parent=11 // pred_region
          %s387 = ssub.s32 12288, 12288
          %388 = vsyncadd [#allocation3], %s387
          %s389 = sshll.u32 [#allocation2], 4
          %s390 = int_to_ptr.vmem [resolvable:$true] %s389
          %395 = dma.hbm_to_vmem [thread:$0]  %s2, 12288, %s390, [#allocation3], 192, 192, 12
        $region16: #{transformer_encoder_forward.1} parent=11 // pred_fallthru
          _
        // Predicated region
        $region17: #{transformer_encoder_forward.1} parent=11 // pred_check
          %p396 = pneg %p132
        $region18: #{transformer_encoder_forward.1} parent=11 // pred_check_branch
          %398 = sbr.rel (%p396) target = $region20
        $region19: #{transformer_encoder_forward.1} parent=11 // pred_region
          _
        $region20: #{transformer_encoder_forward.1} parent=11 // pred_fallthru
          _
        // Predicated region
        $region21: #{transformer_encoder_forward.1} parent=11 // pred_check
          %p399 = pneg %p153
        $region22: #{transformer_encoder_forward.1} parent=11 // pred_check_branch
          %401 = sbr.rel (%p399) target = $region24
        $region23: #{transformer_encoder_forward.1} parent=11 // pred_region
          %s403 = ssub.s32 4096, 4096
          %404 = vsyncadd [#allocation6], %s403
          %s405 = sshll.u32 [#allocation5], 4
          %s406 = int_to_ptr.vmem [resolvable:$true] %s405
          %411 = dma.hbm_to_vmem [thread:$0]  %s4, 4096, %s406, [#allocation6], 64, 64, 4
        $region24: #{transformer_encoder_forward.1} parent=11 // pred_fallthru
          _
        // Predicated region
        $region25: #{transformer_encoder_forward.1} parent=11 // pred_check
          %p412 = pneg %p174
        $region26: #{transformer_encoder_forward.1} parent=11 // pred_check_branch
          %414 = sbr.rel (%p412) target = $region28
        $region27: #{transformer_encoder_forward.1} parent=11 // pred_region
          _
        $region28: #{transformer_encoder_forward.1} parent=11 // pred_fallthru
          _
        // Predicated region
        $region29: #{transformer_encoder_forward.1} parent=11 // pred_check
          %p415 = pneg %p195
        $region30: #{transformer_encoder_forward.1} parent=11 // pred_check_branch
          %417 = sbr.rel (%p415) target = $region32
        $region31: #{transformer_encoder_forward.1} parent=11 // pred_region
          _
        $region32: #{transformer_encoder_forward.1} parent=11 // pred_fallthru
          _
        // Predicated region
        $region33: #{transformer_encoder_forward.1} parent=11 // pred_check
          %p418 = pneg %p216
        $region34: #{transformer_encoder_forward.1} parent=11 // pred_check_branch
          %420 = sbr.rel (%p418) target = $region36
        $region35: #{transformer_encoder_forward.1} parent=11 // pred_region
          _
        $region36: #{transformer_encoder_forward.1} parent=11 // pred_fallthru
          _
        // Predicated region
        $region37: #{transformer_encoder_forward.1} parent=11 // pred_check
          %p421 = pneg %p237
        $region38: #{transformer_encoder_forward.1} parent=11 // pred_check_branch
          %423 = sbr.rel (%p421) target = $region40
        $region39: #{transformer_encoder_forward.1} parent=11 // pred_region
          %s425 = ssub.s32 16384, 16384
          %426 = vsyncadd [#allocation6], %s425
          %s427 = sshll.u32 [#allocation7], 4
          %s428 = int_to_ptr.vmem [resolvable:$true] %s427
          %433 = dma.hbm_to_vmem [thread:$0]  %s8, 16384, %s428, [#allocation6], 256, 256, 16
        $region40: #{transformer_encoder_forward.1} parent=11 // pred_fallthru
          _
        // Predicated region
        $region41: #{transformer_encoder_forward.1} parent=11 // pred_check
          %p434 = pneg %p258
        $region42: #{transformer_encoder_forward.1} parent=11 // pred_check_branch
          %436 = sbr.rel (%p434) target = $region44
        $region43: #{transformer_encoder_forward.1} parent=11 // pred_region
          _
        $region44: #{transformer_encoder_forward.1} parent=11 // pred_fallthru
          _
        // Predicated region
        $region45: #{transformer_encoder_forward.1} parent=11 // pred_check
          %p437 = pneg %p279
        $region46: #{transformer_encoder_forward.1} parent=11 // pred_check_branch
          %439 = sbr.rel (%p437) target = $region48
        $region47: #{transformer_encoder_forward.1} parent=11 // pred_region
          %s441 = ssub.s32 16384, 16384
          %442 = vsyncadd [#allocation9], %s441
          %s443 = sshll.u32 [#allocation8], 4
          %s444 = int_to_ptr.vmem [resolvable:$true] %s443
          %449 = dma.hbm_to_vmem [thread:$0]  %s10, 16384, %s444, [#allocation9], 64, 64, 4
        $region48: #{transformer_encoder_forward.1} parent=11 // pred_fallthru
          _
        // Predicated region
        $region49: #{transformer_encoder_forward.1} parent=11 // pred_check
          %p450 = pneg %p300
        $region50: #{transformer_encoder_forward.1} parent=11 // pred_check_branch
          %452 = sbr.rel (%p450) target = $region52
        $region51: #{transformer_encoder_forward.1} parent=11 // pred_region
          _
        $region52: #{transformer_encoder_forward.1} parent=11 // pred_fallthru
          _
        // Predicated region
        $region53: #{transformer_encoder_forward.1} parent=11 // pred_check
          %p453 = pneg %p321
        $region54: #{transformer_encoder_forward.1} parent=11 // pred_check_branch
          %455 = sbr.rel (%p453) target = $region56
        $region55: #{transformer_encoder_forward.1} parent=11 // pred_region
          _
        $region56: #{transformer_encoder_forward.1} parent=11 // pred_fallthru
          _
        // Predicated region
        $region57: #{transformer_encoder_forward.1} parent=11 // pred_check
          %p456 = pneg %p342
        $region58: #{transformer_encoder_forward.1} parent=11 // pred_check_branch
          %458 = sbr.rel (%p456) target = $region60
        $region59: #{transformer_encoder_forward.1} parent=11 // pred_region
          _
        $region60: #{transformer_encoder_forward.1} parent=11 // pred_fallthru
          _
      $region12: #{transformer_encoder_forward.1} parent=5 // pred_fallthru
        _
      %p459 = scmp.lt.s32.totalorder %s26, 8
      // Predicated region
      $region61: #{transformer_encoder_forward.1} parent=5 // pred_check
        %p460 = pneg %p459
      $region62: #{transformer_encoder_forward.1} parent=5 // pred_check_branch
        %462 = sbr.rel (%p460) target = $region64
      $region63: #{transformer_encoder_forward.1} parent=5 // pred_region
        // Predicated region
        $region65: #{transformer_encoder_forward.1} parent=63 // pred_check
          %p463 = pneg %p58
        $region66: #{transformer_encoder_forward.1} parent=63 // pred_check_branch
          %465 = sbr.rel (%p463) target = $region68
        $region67: #{transformer_encoder_forward.1} parent=63 // pred_region
          %p466 = scmp.lt.s32.totalorder %s33, 1
          %s467 = scalar_select %p466, %s33, 1
          %s468 = smul.addr %s467, 8
          %s469 = scalar_lea.vmem %s0, %s468
        $region68: #{transformer_encoder_forward.1} parent=63 // pred_fallthru
          _
        // Predicated region
        $region69: #{transformer_encoder_forward.1} parent=63 // pred_check
          %p470 = pneg %p84
        $region70: #{transformer_encoder_forward.1} parent=63 // pred_check_branch
          %472 = sbr.rel (%p470) target = $region72
        $region71: #{transformer_encoder_forward.1} parent=63 // pred_region
          %p473 = scmp.lt.s32.totalorder %s33, 1
          %s474 = scalar_select %p473, %s33, 1
          %s475 = scalar_lea.vmem %s1, %s474
        $region72: #{transformer_encoder_forward.1} parent=63 // pred_fallthru
          _
      $region64: #{transformer_encoder_forward.1} parent=5 // pred_fallthru
        _
      %p476 = scmp.le.s32.totalorder 1, %s26
      %p477 = scmp.lt.s32.totalorder %s26, 9
      %p478 = pnand %p476, %p477
      %p479 = pneg %p478
      // Predicated region
      $region73: #{transformer_encoder_forward.1} parent=5 // pred_check
        _
      $region74: #{transformer_encoder_forward.1} parent=5 // pred_check_branch
        %481 = sbr.rel (%p478) target = $region76
      $region75: #{transformer_encoder_forward.1} parent=5 // pred_region
        %s482 = ssub.s32 %s26, 1
        // Predicated region
        $region77: #{transformer_encoder_forward.1} parent=75 // pred_check
          %p483 = pneg %p111
        $region78: #{transformer_encoder_forward.1} parent=75 // pred_check_branch
          %485 = sbr.rel (%p483) target = $region80
        $region79: #{transformer_encoder_forward.1} parent=75 // pred_region
          %486 = dma.done [#allocation3], 12288
        $region80: #{transformer_encoder_forward.1} parent=75 // pred_fallthru
          _
        // Predicated region
        $region81: #{transformer_encoder_forward.1} parent=75 // pred_check
          %p487 = pneg %p153
        $region82: #{transformer_encoder_forward.1} parent=75 // pred_check_branch
          %489 = sbr.rel (%p487) target = $region84
        $region83: #{transformer_encoder_forward.1} parent=75 // pred_region
          %490 = dma.done [#allocation6], 4096
        $region84: #{transformer_encoder_forward.1} parent=75 // pred_fallthru
          _
        // Predicated region
        $region85: #{transformer_encoder_forward.1} parent=75 // pred_check
          %p491 = pneg %p237
        $region86: #{transformer_encoder_forward.1} parent=75 // pred_check_branch
          %493 = sbr.rel (%p491) target = $region88
        $region87: #{transformer_encoder_forward.1} parent=75 // pred_region
          %494 = dma.done [#allocation6], 16384
        $region88: #{transformer_encoder_forward.1} parent=75 // pred_fallthru
          _
        // Predicated region
        $region89: #{transformer_encoder_forward.1} parent=75 // pred_check
          %p495 = pneg %p279
        $region90: #{transformer_encoder_forward.1} parent=75 // pred_check_branch
          %497 = sbr.rel (%p495) target = $region92
        $region91: #{transformer_encoder_forward.1} parent=75 // pred_region
          %498 = dma.done [#allocation9], 16384
        $region92: #{transformer_encoder_forward.1} parent=75 // pred_fallthru
          _
        %p499 = scmp.lt.s32.totalorder %s35, 1
        %s500 = scalar_select %p499, %s35, 1
        %s501 = smul.addr %s500, 8
        %s502 = scalar_lea.vmem %s0, %s501
        %p503 = pneg %p64
        %p504 = pneg %p61
        %p505 = scmp.lt.s32.totalorder %s35, 1
        %s506 = scalar_select %p505, %s35, 1
        %s507 = scalar_lea.vmem %s1, %s506
        %p508 = pneg %p90
        %p509 = pneg %p87
        %p510 = pneg %p111
        %p511 = pneg %p108
        %p512 = pneg %p132
        %p513 = pneg %p129
        %p514 = pneg %p153
        %p515 = pneg %p150
        %p516 = pneg %p174
        %p517 = pneg %p171
        %p518 = pneg %p195
        %p519 = pneg %p192
        %p520 = pneg %p216
        %p521 = pneg %p213
        %p522 = pneg %p237
        %p523 = pneg %p234
        %p524 = pneg %p258
        %p525 = pneg %p255
        %p526 = pneg %p279
        %p527 = pneg %p276
        %p528 = pneg %p300
        %p529 = pneg %p297
        %p530 = pneg %p321
        %p531 = pneg %p318
        %p532 = pneg %p342
        %p533 = pneg %p339
        %p534 = pneg %p368
        %p535 = pneg %p365
        %s536 = sand.u32 %s355, 1
        %s537 = scalar_lea.sflag [#allocation4], %s536
        %s538 = sand.u32 %s355, 1
        %s539 = smul.addr %s538, 8
        %s540 = scalar_lea.vmem [#allocation10], %s539
        %p541 = scmp.lt.s32.totalorder %s35, 1
        %s542 = scalar_select %p541, %s35, 1
        %s543 = smul.addr %s542, 8
        %s544 = scalar_lea.vmem %s0, %s543
        %p545 = scmp.lt.s32.totalorder %s35, 1
        %s546 = scalar_select %p545, %s35, 1
        %s547 = scalar_lea.vmem %s1, %s546
        %p549 = scmp.eq.s32.totalorder %s36, 0
        // Predicated region
        $region93: #{transformer_encoder_forward.1} parent=75 // pred_check
          %p550 = pneg %p549
        $region94: #{transformer_encoder_forward.1} parent=75 // pred_check_branch
          %552 = sbr.rel (%p550) target = $region96
        $region95: #{transformer_encoder_forward.1} parent=75 // pred_region
          %v553 = vld [vmem:[%s544] sm:$0xff]
          %554 = vst [vmem:[%s540] sm:$0xff] %v553
        $region96: #{transformer_encoder_forward.1} parent=75 // pred_fallthru
          _
        %v555 = vld [vmem:[%s540] sm:$0xff]
        %v556 = vpack.c.bf16 %v555, %v555
        %v557 = vld [vmem:[%s547] sm:$0x1]
        %v558 = vmul.f32 %v557, -1e+09
        %s559 = smul.u32 %s36, 48
        %s560 = smul.addr %s559, 4
        %s561 = scalar_lea.vmem [#allocation2], %s560
        %v562 = vld [vmem:[%s561] sm:$0xff]
        %v563 = vld [vmem:[%s561 + $0x8] sm:$0xf]
        %v564 = vld [vmem:[%s561 + $0xc] sm:$0xff]
        %v565 = vld [vmem:[%s561 + $0x14] sm:$0xf]
        %v566 = vld [vmem:[%s561 + $0x18] sm:$0xff]
        %v567 = vld [vmem:[%s561 + $0x20] sm:$0xf]
        %v568 = vld [vmem:[%s561 + $0x24] sm:$0xff]
        %v569 = vld [vmem:[%s561 + $0x2c] sm:$0xf]
        %v570 = vld [vmem:[%s561 + $0x30] sm:$0xff]
        %v571 = vld [vmem:[%s561 + $0x38] sm:$0xf]
        %v572 = vld [vmem:[%s561 + $0x3c] sm:$0xff]
        %v573 = vld [vmem:[%s561 + $0x44] sm:$0xf]
        %v574 = vld [vmem:[%s561 + $0x48] sm:$0xff]
        %v575 = vld [vmem:[%s561 + $0x50] sm:$0xf]
        %v576 = vld [vmem:[%s561 + $0x54] sm:$0xff]
        %v577 = vld [vmem:[%s561 + $0x5c] sm:$0xf]
        %v578 = vld [vmem:[%s561 + $0x60] sm:$0xff]
        %v579 = vld [vmem:[%s561 + $0x68] sm:$0xf]
        %v580 = vld [vmem:[%s561 + $0x6c] sm:$0xff]
        %v581 = vld [vmem:[%s561 + $0x74] sm:$0xf]
        %v582 = vld [vmem:[%s561 + $0x78] sm:$0xff]
        %v583 = vld [vmem:[%s561 + $0x80] sm:$0xf]
        %v584 = vld [vmem:[%s561 + $0x84] sm:$0xff]
        %v585 = vld [vmem:[%s561 + $0x8c] sm:$0xf]
        %v586 = vld [vmem:[%s561 + $0x90] sm:$0xff]
        %v587 = vld [vmem:[%s561 + $0x98] sm:$0xf]
        %v588 = vld [vmem:[%s561 + $0x9c] sm:$0xff]
        %v589 = vld [vmem:[%s561 + $0xa4] sm:$0xf]
        %v590 = vld [vmem:[%s561 + $0xa8] sm:$0xff]
        %v591 = vld [vmem:[%s561 + $0xb0] sm:$0xf]
        %v592 = vld [vmem:[%s561 + $0xb4] sm:$0xff]
        %v593 = vld [vmem:[%s561 + $0xbc] sm:$0xf]
        %s594 = smul.u32 %s36, 3
        %s595 = scalar_lea.vmem %s3, %s594
        %v596 = vld [vmem:[%s595] sm:$0x7]
        %v598 = vlaneseq
        %v599 = vshrl.u32 %v598, 7
        %v600 = vsub.s32 0, %v599
        %v601 = vrot.slane %v596, %v600
        %v602 = vlaneseq
        %v603 = vshrl.u32 %v602, 7
        %v604 = vsub.s32 1, %v603
        %v605 = vrot.slane %v596, %v604
        %v606 = vlaneseq
        %v607 = vshrl.u32 %v606, 7
        %v608 = vsub.s32 2, %v607
        %v609 = vrot.slane %v596, %v608
        %v645 = vunpack.c.l.b16 %v562
        %v646 = vunpack.c.h.b16 %v562
        %v647 = vunpack.c.l.b16 %v563
        %v648 = vunpack.c.l.b16 %v564
        %v649 = vunpack.c.h.b16 %v564
        %v650 = vunpack.c.l.b16 %v565
        %v651 = vunpack.c.l.b16 %v566
        %v652 = vunpack.c.h.b16 %v566
        %v653 = vunpack.c.l.b16 %v567
        %v654 = vunpack.c.l.b16 %v568
        %v655 = vunpack.c.h.b16 %v568
        %v656 = vunpack.c.l.b16 %v569
        %v657 = vunpack.c.l.b16 %v570
        %v658 = vunpack.c.h.b16 %v570
        %v659 = vunpack.c.l.b16 %v571
        %v660 = vunpack.c.l.b16 %v572
        %v661 = vunpack.c.h.b16 %v572
        %v662 = vunpack.c.l.b16 %v573
        %v663 = vunpack.c.l.b16 %v574
        %v664 = vunpack.c.h.b16 %v574
        %v665 = vunpack.c.l.b16 %v575
        %v666 = vunpack.c.l.b16 %v576
        %v667 = vunpack.c.h.b16 %v576
        %v668 = vunpack.c.l.b16 %v577
        %v669 = vunpack.c.l.b16 %v578
        %v670 = vunpack.c.h.b16 %v578
        %v671 = vunpack.c.l.b16 %v579
        %v672 = vunpack.c.l.b16 %v580
        %v673 = vunpack.c.h.b16 %v580
        %v674 = vunpack.c.l.b16 %v581
        %v675 = vunpack.c.l.b16 %v582
        %v676 = vunpack.c.h.b16 %v582
        %v677 = vunpack.c.l.b16 %v583
        %v678 = vunpack.c.l.b16 %v584
        %v679 = vunpack.c.h.b16 %v584
        %v680 = vunpack.c.l.b16 %v585
        %v681 = vunpack.c.l.b16 %v586
        %v682 = vunpack.c.h.b16 %v586
        %v683 = vunpack.c.l.b16 %v587
        %v684 = vunpack.c.l.b16 %v588
        %v685 = vunpack.c.h.b16 %v588
        %v686 = vunpack.c.l.b16 %v589
        %v687 = vunpack.c.l.b16 %v590
        %v688 = vunpack.c.h.b16 %v590
        %v689 = vunpack.c.l.b16 %v591
        %v690 = vunpack.c.l.b16 %v592
        %v691 = vunpack.c.h.b16 %v592
        %v692 = vunpack.c.l.b16 %v593
        %v693 = vpack.c.b16 %v648, %v645
        %v694 = vpack.c.b16 %v649, %v646
        %v695 = vpack.c.b16 %v650, %v647
        %v696 = vpack.c.b16 %v654, %v651
        %v697 = vpack.c.b16 %v655, %v652
        %v698 = vpack.c.b16 %v656, %v653
        %v699 = vpack.c.b16 %v660, %v657
        %v700 = vpack.c.b16 %v661, %v658
        %v701 = vpack.c.b16 %v662, %v659
        %v702 = vpack.c.b16 %v666, %v663
        %v703 = vpack.c.b16 %v667, %v664
        %v704 = vpack.c.b16 %v668, %v665
        %v705 = vpack.c.b16 %v672, %v669
        %v706 = vpack.c.b16 %v673, %v670
        %v707 = vpack.c.b16 %v674, %v671
        %v708 = vpack.c.b16 %v678, %v675
        %v709 = vpack.c.b16 %v679, %v676
        %v710 = vpack.c.b16 %v680, %v677
        %v711 = vpack.c.b16 %v684, %v681
        %v712 = vpack.c.b16 %v685, %v682
        %v713 = vpack.c.b16 %v686, %v683
        %v714 = vpack.c.b16 %v690, %v687
        %v715 = vpack.c.b16 %v691, %v688
        %v716 = vpack.c.b16 %v692, %v689
        %741 = vmatprep.subr.bf16.mxu0 %v715
        %742 = vmatpush1.bf16.msra.mxu0 %v714
        %743 = vmatprep.subr.bf16.mxu0 %v712
        %744 = vmatpush1.bf16.msra.mxu0 %v711
        %745 = vmatprep.subr.bf16.mxu0 %v709
        %746 = vmatpush1.bf16.msra.mxu0 %v708
        %747 = vmatprep.subr.bf16.mxu0 %v706
        %748 = vmatpush1.bf16.msra.mxu0 %v705
        %749 = vmatprep.subr.bf16.mxu0 %v703
        %750 = vmatpush1.bf16.msra.mxu0 %v702
        %751 = vmatprep.subr.bf16.mxu0 %v700
        %752 = vmatpush1.bf16.msra.mxu0 %v699
        %753 = vmatprep.subr.bf16.mxu0 %v697
        %754 = vmatpush1.bf16.msra.mxu0 %v696
        %755 = vmatprep.subr.bf16.mxu0 %v694
        %756 = vmatpush1.bf16.msra.mxu0 %v693
        %757 = vmatprep.subr.bf16.mxu0 0
        %758 = vmatpush2.bf16.msra.mxu0 0
        %759 = vmatprep.subr.bf16.mxu0 0
        %760 = vmatpush2.bf16.msra.mxu0 0
        %761 = vmatprep.subr.bf16.mxu0 0
        %762 = vmatpush2.bf16.msra.mxu0 0
        %763 = vmatprep.subr.bf16.mxu0 0
        %764 = vmatpush2.bf16.msra.mxu0 0
        %765 = vmatprep.subr.bf16.mxu0 0
        %766 = vmatpush2.bf16.msra.mxu0 0
        %767 = vmatprep.subr.bf16.mxu0 0
        %768 = vmatpush2.bf16.msra.mxu0 0
        %769 = vmatprep.subr.bf16.mxu0 0
        %770 = vmatpush2.bf16.msra.mxu0 0
        %771 = vmatprep.subr.bf16.mxu0 0
        %772 = vmatpush2.bf16.msra.mxu0 0
        %773 = vmatprep.mubr.bf16.mxu0 0
        %774 = vmatmul.mubr.bf16.gmra.mxu0 %v556
        %v775 = vpop.f32.mrf.mxu0
        %v776 = vadd.f32 %v601, %v775
        %v777 = vpop.f32.mrf.mxu0
        %v778 = vadd.f32 %v605, %v777
        %v779 = vpop.f32.mrf.mxu0
        %v780 = vpop.f32.mrf.mxu0
        %781 = vdwg.mxu0
        %782 = vmatprep.subr.bf16.mxu0 0
        %783 = vmatpush1.bf16.msra.mxu0 %v716
        %784 = vmatprep.subr.bf16.mxu0 0
        %785 = vmatpush1.bf16.msra.mxu0 %v713
        %786 = vmatprep.subr.bf16.mxu0 0
        %787 = vmatpush1.bf16.msra.mxu0 %v710
        %788 = vmatprep.subr.bf16.mxu0 0
        %789 = vmatpush1.bf16.msra.mxu0 %v707
        %790 = vmatprep.subr.bf16.mxu0 0
        %791 = vmatpush1.bf16.msra.mxu0 %v704
        %792 = vmatprep.subr.bf16.mxu0 0
        %793 = vmatpush1.bf16.msra.mxu0 %v701
        %794 = vmatprep.subr.bf16.mxu0 0
        %795 = vmatpush1.bf16.msra.mxu0 %v698
        %796 = vmatprep.subr.bf16.mxu0 0
        %797 = vmatpush1.bf16.msra.mxu0 %v695
        %798 = vmatprep.subr.bf16.mxu0 0
        %799 = vmatpush2.bf16.msra.mxu0 0
        %800 = vmatprep.subr.bf16.mxu0 0
        %801 = vmatpush2.bf16.msra.mxu0 0
        %802 = vmatprep.subr.bf16.mxu0 0
        %803 = vmatpush2.bf16.msra.mxu0 0
        %804 = vmatprep.subr.bf16.mxu0 0
        %805 = vmatpush2.bf16.msra.mxu0 0
        %806 = vmatprep.subr.bf16.mxu0 0
        %807 = vmatpush2.bf16.msra.mxu0 0
        %808 = vmatprep.subr.bf16.mxu0 0
        %809 = vmatpush2.bf16.msra.mxu0 0
        %810 = vmatprep.subr.bf16.mxu0 0
        %811 = vmatpush2.bf16.msra.mxu0 0
        %812 = vmatprep.subr.bf16.mxu0 0
        %813 = vmatpush2.bf16.msra.mxu0 0
        %814 = vmatprep.mubr.bf16.mxu0 0
        %815 = vmatmul.mubr.bf16.gmra.mxu0 %v556
        %v816 = vpop.f32.mrf.mxu0
        %v817 = vadd.f32 %v609, %v816
        %v818 = vpop.f32.mrf.mxu0
        %v819 = vpop.f32.mrf.mxu0
        %v820 = vpop.f32.mrf.mxu0
        %821 = vdwg.mxu0
        %v822 = vpack.c.bf16 %v776, %v776
        %v823 = vpack.c.bf16 %v778, %v778
        %v824 = vpack.c.bf16 %v817, %v817
        %826 = vrot.lane.b32.xlu0 %v822, 112
        %v827 = vpop.permute.xlu0 %826
        %828 = vrot.lane.b32.xlu0 %v822, 96
        %v829 = vpop.permute.xlu0 %828
        %830 = vrot.lane.b32.xlu0 %v822, 80
        %v831 = vpop.permute.xlu0 %830
        %832 = vrot.lane.b32.xlu0 %v822, 64
        %v833 = vpop.permute.xlu0 %832
        %834 = vrot.lane.b32.xlu0 %v822, 48
        %v835 = vpop.permute.xlu0 %834
        %836 = vrot.lane.b32.xlu0 %v822, 32
        %v837 = vpop.permute.xlu0 %836
        %838 = vrot.lane.b32.xlu0 %v822, 16
        %v839 = vpop.permute.xlu0 %838
        %841 = vrot.lane.b32.xlu0 %v823, 112
        %v842 = vpop.permute.xlu0 %841
        %843 = vrot.lane.b32.xlu0 %v823, 96
        %v844 = vpop.permute.xlu0 %843
        %845 = vrot.lane.b32.xlu0 %v823, 80
        %v846 = vpop.permute.xlu0 %845
        %847 = vrot.lane.b32.xlu0 %v823, 64
        %v848 = vpop.permute.xlu0 %847
        %849 = vrot.lane.b32.xlu0 %v823, 48
        %v850 = vpop.permute.xlu0 %849
        %851 = vrot.lane.b32.xlu0 %v823, 32
        %v852 = vpop.permute.xlu0 %851
        %853 = vrot.lane.b32.xlu0 %v823, 16
        %v854 = vpop.permute.xlu0 %853
        %856 = vrot.lane.b32.xlu0 %v824, 112
        %v857 = vpop.permute.xlu0 %856
        %858 = vrot.lane.b32.xlu0 %v824, 96
        %v859 = vpop.permute.xlu0 %858
        %860 = vrot.lane.b32.xlu0 %v824, 80
        %v861 = vpop.permute.xlu0 %860
        %862 = vrot.lane.b32.xlu0 %v824, 64
        %v863 = vpop.permute.xlu0 %862
        %864 = vrot.lane.b32.xlu0 %v824, 48
        %v865 = vpop.permute.xlu0 %864
        %866 = vrot.lane.b32.xlu0 %v824, 32
        %v867 = vpop.permute.xlu0 %866
        %868 = vrot.lane.b32.xlu0 %v824, 16
        %v869 = vpop.permute.xlu0 %868
        %v871 = vlaneseq
        %v872 = vshrl.u32 %v871, 7
        %v873 = vsub.s32 0, %v872
        %v874 = vrot.slane %v558, %v873
        %vm876 = vcmask 130048
        %v878 = vsel %vm876, %v822, 0
        %v881 = vsel %vm876, %v823, 0
        %883 = vmatprep.subr.bf16.mxu0 0
        %884 = vmatpush1.bf16.xpose.msra.mxu0 0
        %885 = vmatprep.subr.bf16.mxu0 0
        %886 = vmatpush1.bf16.xpose.msra.mxu0 0
        %887 = vmatprep.subr.bf16.mxu0 0
        %888 = vmatpush1.bf16.xpose.msra.mxu0 0
        %889 = vmatprep.subr.bf16.mxu0 0
        %890 = vmatpush1.bf16.xpose.msra.mxu0 0
        %891 = vmatprep.subr.bf16.mxu0 0
        %892 = vmatpush1.bf16.xpose.msra.mxu0 0
        %893 = vmatprep.subr.bf16.mxu0 0
        %894 = vmatpush1.bf16.xpose.msra.mxu0 0
        %895 = vmatprep.subr.bf16.mxu0 0
        %896 = vmatpush1.bf16.xpose.msra.mxu0 0
        %897 = vmatprep.subr.bf16.mxu0 0
        %898 = vmatpush1.bf16.xpose.msra.mxu0 %v881
        %899 = vmatprep.subr.bf16.mxu0 0
        %900 = vmatpush2.bf16.xpose.msra.mxu0 0
        %901 = vmatprep.subr.bf16.mxu0 0
        %902 = vmatpush2.bf16.xpose.msra.mxu0 0
        %903 = vmatprep.subr.bf16.mxu0 0
        %904 = vmatpush2.bf16.xpose.msra.mxu0 0
        %905 = vmatprep.subr.bf16.mxu0 0
        %906 = vmatpush2.bf16.xpose.msra.mxu0 0
        %907 = vmatprep.subr.bf16.mxu0 0
        %908 = vmatpush2.bf16.xpose.msra.mxu0 0
        %909 = vmatprep.subr.bf16.mxu0 0
        %910 = vmatpush2.bf16.xpose.msra.mxu0 0
        %911 = vmatprep.subr.bf16.mxu0 0
        %912 = vmatpush2.bf16.xpose.msra.mxu0 0
        %913 = vmatprep.subr.bf16.mxu0 0
        %914 = vmatpush2.bf16.xpose.msra.mxu0 0
        %915 = vmatprep.mubr.bf16.mxu0 0
        %916 = vmatmul.mubr.bf16.gmra.mxu0 %v878
        %v917 = vpop.f32.mrf.mxu0
        %v918 = vadd.f32 %v874, %v917
        %v919 = vpop.f32.mrf.mxu0
        %v920 = vpop.f32.mrf.mxu0
        %v921 = vpop.f32.mrf.mxu0
        %922 = vdwg.mxu0
        %v924 = vsel %vm876, %v827, 0
        %v927 = vsel %vm876, %v842, 0
        %929 = vmatprep.subr.bf16.mxu0 0
        %930 = vmatpush1.bf16.xpose.msra.mxu0 0
        %931 = vmatprep.subr.bf16.mxu0 0
        %932 = vmatpush1.bf16.xpose.msra.mxu0 0
        %933 = vmatprep.subr.bf16.mxu0 0
        %934 = vmatpush1.bf16.xpose.msra.mxu0 0
        %935 = vmatprep.subr.bf16.mxu0 0
        %936 = vmatpush1.bf16.xpose.msra.mxu0 0
        %937 = vmatprep.subr.bf16.mxu0 0
        %938 = vmatpush1.bf16.xpose.msra.mxu0 0
        %939 = vmatprep.subr.bf16.mxu0 0
        %940 = vmatpush1.bf16.xpose.msra.mxu0 0
        %941 = vmatprep.subr.bf16.mxu0 0
        %942 = vmatpush1.bf16.xpose.msra.mxu0 0
        %943 = vmatprep.subr.bf16.mxu0 0
        %944 = vmatpush1.bf16.xpose.msra.mxu0 %v927
        %945 = vmatprep.subr.bf16.mxu0 0
        %946 = vmatpush2.bf16.xpose.msra.mxu0 0
        %947 = vmatprep.subr.bf16.mxu0 0
        %948 = vmatpush2.bf16.xpose.msra.mxu0 0
        %949 = vmatprep.subr.bf16.mxu0 0
        %950 = vmatpush2.bf16.xpose.msra.mxu0 0
        %951 = vmatprep.subr.bf16.mxu0 0
        %952 = vmatpush2.bf16.xpose.msra.mxu0 0
        %953 = vmatprep.subr.bf16.mxu0 0
        %954 = vmatpush2.bf16.xpose.msra.mxu0 0
        %955 = vmatprep.subr.bf16.mxu0 0
        %956 = vmatpush2.bf16.xpose.msra.mxu0 0
        %957 = vmatprep.subr.bf16.mxu0 0
        %958 = vmatpush2.bf16.xpose.msra.mxu0 0
        %959 = vmatprep.subr.bf16.mxu0 0
        %960 = vmatpush2.bf16.xpose.msra.mxu0 0
        %961 = vmatprep.mubr.bf16.mxu0 0
        %962 = vmatmul.mubr.bf16.gmra.mxu0 %v924
        %v963 = vpop.f32.mrf.mxu0
        %v964 = vadd.f32 %v874, %v963
        %v965 = vpop.f32.mrf.mxu0
        %v966 = vpop.f32.mrf.mxu0
        %v967 = vpop.f32.mrf.mxu0
        %968 = vdwg.mxu0
        %v970 = vsel %vm876, %v829, 0
        %v973 = vsel %vm876, %v844, 0
        %975 = vmatprep.subr.bf16.mxu0 0
        %976 = vmatpush1.bf16.xpose.msra.mxu0 0
        %977 = vmatprep.subr.bf16.mxu0 0
        %978 = vmatpush1.bf16.xpose.msra.mxu0 0
        %979 = vmatprep.subr.bf16.mxu0 0
        %980 = vmatpush1.bf16.xpose.msra.mxu0 0
        %981 = vmatprep.subr.bf16.mxu0 0
        %982 = vmatpush1.bf16.xpose.msra.mxu0 0
        %983 = vmatprep.subr.bf16.mxu0 0
        %984 = vmatpush1.bf16.xpose.msra.mxu0 0
        %985 = vmatprep.subr.bf16.mxu0 0
        %986 = vmatpush1.bf16.xpose.msra.mxu0 0
        %987 = vmatprep.subr.bf16.mxu0 0
        %988 = vmatpush1.bf16.xpose.msra.mxu0 0
        %989 = vmatprep.subr.bf16.mxu0 0
        %990 = vmatpush1.bf16.xpose.msra.mxu0 %v973
        %991 = vmatprep.subr.bf16.mxu0 0
        %992 = vmatpush2.bf16.xpose.msra.mxu0 0
        %993 = vmatprep.subr.bf16.mxu0 0
        %994 = vmatpush2.bf16.xpose.msra.mxu0 0
        %995 = vmatprep.subr.bf16.mxu0 0
        %996 = vmatpush2.bf16.xpose.msra.mxu0 0
        %997 = vmatprep.subr.bf16.mxu0 0
        %998 = vmatpush2.bf16.xpose.msra.mxu0 0
        %999 = vmatprep.subr.bf16.mxu0 0
        %1000 = vmatpush2.bf16.xpose.msra.mxu0 0
        %1001 = vmatprep.subr.bf16.mxu0 0
        %1002 = vmatpush2.bf16.xpose.msra.mxu0 0
        %1003 = vmatprep.subr.bf16.mxu0 0
        %1004 = vmatpush2.bf16.xpose.msra.mxu0 0
        %1005 = vmatprep.subr.bf16.mxu0 0
        %1006 = vmatpush2.bf16.xpose.msra.mxu0 0
        %1007 = vmatprep.mubr.bf16.mxu0 0
        %1008 = vmatmul.mubr.bf16.gmra.mxu0 %v970
        %v1009 = vpop.f32.mrf.mxu0
        %v1010 = vadd.f32 %v874, %v1009
        %v1011 = vpop.f32.mrf.mxu0
        %v1012 = vpop.f32.mrf.mxu0
        %v1013 = vpop.f32.mrf.mxu0
        %1014 = vdwg.mxu0
        %v1016 = vsel %vm876, %v831, 0
        %v1019 = vsel %vm876, %v846, 0
        %1021 = vmatprep.subr.bf16.mxu0 0
        %1022 = vmatpush1.bf16.xpose.msra.mxu0 0
        %1023 = vmatprep.subr.bf16.mxu0 0
        %1024 = vmatpush1.bf16.xpose.msra.mxu0 0
        %1025 = vmatprep.subr.bf16.mxu0 0
        %1026 = vmatpush1.bf16.xpose.msra.mxu0 0
        %1027 = vmatprep.subr.bf16.mxu0 0
        %1028 = vmatpush1.bf16.xpose.msra.mxu0 0
        %1029 = vmatprep.subr.bf16.mxu0 0
        %1030 = vmatpush1.bf16.xpose.msra.mxu0 0
        %1031 = vmatprep.subr.bf16.mxu0 0
        %1032 = vmatpush1.bf16.xpose.msra.mxu0 0
        %1033 = vmatprep.subr.bf16.mxu0 0
        %1034 = vmatpush1.bf16.xpose.msra.mxu0 0
        %1035 = vmatprep.subr.bf16.mxu0 0
        %1036 = vmatpush1.bf16.xpose.msra.mxu0 %v1019
        %1037 = vmatprep.subr.bf16.mxu0 0
        %1038 = vmatpush2.bf16.xpose.msra.mxu0 0
        %1039 = vmatprep.subr.bf16.mxu0 0
        %1040 = vmatpush2.bf16.xpose.msra.mxu0 0
        %1041 = vmatprep.subr.bf16.mxu0 0
        %1042 = vmatpush2.bf16.xpose.msra.mxu0 0
        %1043 = vmatprep.subr.bf16.mxu0 0
        %1044 = vmatpush2.bf16.xpose.msra.mxu0 0
        %1045 = vmatprep.subr.bf16.mxu0 0
        %1046 = vmatpush2.bf16.xpose.msra.mxu0 0
        %1047 = vmatprep.subr.bf16.mxu0 0
        %1048 = vmatpush2.bf16.xpose.msra.mxu0 0
        %1049 = vmatprep.subr.bf16.mxu0 0
        %1050 = vmatpush2.bf16.xpose.msra.mxu0 0
        %1051 = vmatprep.subr.bf16.mxu0 0
        %1052 = vmatpush2.bf16.xpose.msra.mxu0 0
        %1053 = vmatprep.mubr.bf16.mxu0 0
        %1054 = vmatmul.mubr.bf16.gmra.mxu0 %v1016
        %v1055 = vpop.f32.mrf.mxu0
        %v1056 = vadd.f32 %v874, %v1055
        %v1057 = vpop.f32.mrf.mxu0
        %v1058 = vpop.f32.mrf.mxu0
        %v1059 = vpop.f32.mrf.mxu0
        %1060 = vdwg.mxu0
        %v1062 = vsel %vm876, %v833, 0
        %v1065 = vsel %vm876, %v848, 0
        %1067 = vmatprep.subr.bf16.mxu0 0
        %1068 = vmatpush1.bf16.xpose.msra.mxu0 0
        %1069 = vmatprep.subr.bf16.mxu0 0
        %1070 = vmatpush1.bf16.xpose.msra.mxu0 0
        %1071 = vmatprep.subr.bf16.mxu0 0
        %1072 = vmatpush1.bf16.xpose.msra.mxu0 0
        %1073 = vmatprep.subr.bf16.mxu0 0
        %1074 = vmatpush1.bf16.xpose.msra.mxu0 0
        %1075 = vmatprep.subr.bf16.mxu0 0
        %1076 = vmatpush1.bf16.xpose.msra.mxu0 0
        %1077 = vmatprep.subr.bf16.mxu0 0
        %1078 = vmatpush1.bf16.xpose.msra.mxu0 0
        %1079 = vmatprep.subr.bf16.mxu0 0
        %1080 = vmatpush1.bf16.xpose.msra.mxu0 0
        %1081 = vmatprep.subr.bf16.mxu0 0
        %1082 = vmatpush1.bf16.xpose.msra.mxu0 %v1065
        %1083 = vmatprep.subr.bf16.mxu0 0
        %1084 = vmatpush2.bf16.xpose.msra.mxu0 0
        %1085 = vmatprep.subr.bf16.mxu0 0
        %1086 = vmatpush2.bf16.xpose.msra.mxu0 0
        %1087 = vmatprep.subr.bf16.mxu0 0
        %1088 = vmatpush2.bf16.xpose.msra.mxu0 0
        %1089 = vmatprep.subr.bf16.mxu0 0
        %1090 = vmatpush2.bf16.xpose.msra.mxu0 0
        %1091 = vmatprep.subr.bf16.mxu0 0
        %1092 = vmatpush2.bf16.xpose.msra.mxu0 0
        %1093 = vmatprep.subr.bf16.mxu0 0
        %1094 = vmatpush2.bf16.xpose.msra.mxu0 0
        %1095 = vmatprep.subr.bf16.mxu0 0
        %1096 = vmatpush2.bf16.xpose.msra.mxu0 0
        %1097 = vmatprep.subr.bf16.mxu0 0
        %1098 = vmatpush2.bf16.xpose.msra.mxu0 0
        %1099 = vmatprep.mubr.bf16.mxu0 0
        %1100 = vmatmul.mubr.bf16.gmra.mxu0 %v1062
        %v1101 = vpop.f32.mrf.mxu0
        %v1102 = vadd.f32 %v874, %v1101
        %v1103 = vpop.f32.mrf.mxu0
        %v1104 = vpop.f32.mrf.mxu0
        %v1105 = vpop.f32.mrf.mxu0
        %1106 = vdwg.mxu0
        %v1108 = vsel %vm876, %v835, 0
        %v1111 = vsel %vm876, %v850, 0
        %1113 = vmatprep.subr.bf16.mxu0 0
        %1114 = vmatpush1.bf16.xpose.msra.mxu0 0
        %1115 = vmatprep.subr.bf16.mxu0 0
        %1116 = vmatpush1.bf16.xpose.msra.mxu0 0
        %1117 = vmatprep.subr.bf16.mxu0 0
        %1118 = vmatpush1.bf16.xpose.msra.mxu0 0
        %1119 = vmatprep.subr.bf16.mxu0 0
        %1120 = vmatpush1.bf16.xpose.msra.mxu0 0
        %1121 = vmatprep.subr.bf16.mxu0 0
        %1122 = vmatpush1.bf16.xpose.msra.mxu0 0
        %1123 = vmatprep.subr.bf16.mxu0 0
        %1124 = vmatpush1.bf16.xpose.msra.mxu0 0
        %1125 = vmatprep.subr.bf16.mxu0 0
        %1126 = vmatpush1.bf16.xpose.msra.mxu0 0
        %1127 = vmatprep.subr.bf16.mxu0 0
        %1128 = vmatpush1.bf16.xpose.msra.mxu0 %v1111
        %1129 = vmatprep.subr.bf16.mxu0 0
        %1130 = vmatpush2.bf16.xpose.msra.mxu0 0
        %1131 = vmatprep.subr.bf16.mxu0 0
        %1132 = vmatpush2.bf16.xpose.msra.mxu0 0
        %1133 = vmatprep.subr.bf16.mxu0 0
        %1134 = vmatpush2.bf16.xpose.msra.mxu0 0
        %1135 = vmatprep.subr.bf16.mxu0 0
        %1136 = vmatpush2.bf16.xpose.msra.mxu0 0
        %1137 = vmatprep.subr.bf16.mxu0 0
        %1138 = vmatpush2.bf16.xpose.msra.mxu0 0
        %1139 = vmatprep.subr.bf16.mxu0 0
        %1140 = vmatpush2.bf16.xpose.msra.mxu0 0
        %1141 = vmatprep.subr.bf16.mxu0 0
        %1142 = vmatpush2.bf16.xpose.msra.mxu0 0
        %1143 = vmatprep.subr.bf16.mxu0 0
        %1144 = vmatpush2.bf16.xpose.msra.mxu0 0
        %1145 = vmatprep.mubr.bf16.mxu0 0
        %1146 = vmatmul.mubr.bf16.gmra.mxu0 %v1108
        %v1147 = vpop.f32.mrf.mxu0
        %v1148 = vadd.f32 %v874, %v1147
        %v1149 = vpop.f32.mrf.mxu0
        %v1150 = vpop.f32.mrf.mxu0
        %v1151 = vpop.f32.mrf.mxu0
        %1152 = vdwg.mxu0
        %v1154 = vsel %vm876, %v837, 0
        %v1157 = vsel %vm876, %v852, 0
        %1159 = vmatprep.subr.bf16.mxu0 0
        %1160 = vmatpush1.bf16.xpose.msra.mxu0 0
        %1161 = vmatprep.subr.bf16.mxu0 0
        %1162 = vmatpush1.bf16.xpose.msra.mxu0 0
        %1163 = vmatprep.subr.bf16.mxu0 0
        %1164 = vmatpush1.bf16.xpose.msra.mxu0 0
        %1165 = vmatprep.subr.bf16.mxu0 0
        %1166 = vmatpush1.bf16.xpose.msra.mxu0 0
        %1167 = vmatprep.subr.bf16.mxu0 0
        %1168 = vmatpush1.bf16.xpose.msra.mxu0 0
        %1169 = vmatprep.subr.bf16.mxu0 0
        %1170 = vmatpush1.bf16.xpose.msra.mxu0 0
        %1171 = vmatprep.subr.bf16.mxu0 0
        %1172 = vmatpush1.bf16.xpose.msra.mxu0 0
        %1173 = vmatprep.subr.bf16.mxu0 0
        %1174 = vmatpush1.bf16.xpose.msra.mxu0 %v1157
        %1175 = vmatprep.subr.bf16.mxu0 0
        %1176 = vmatpush2.bf16.xpose.msra.mxu0 0
        %1177 = vmatprep.subr.bf16.mxu0 0
        %1178 = vmatpush2.bf16.xpose.msra.mxu0 0
        %1179 = vmatprep.subr.bf16.mxu0 0
        %1180 = vmatpush2.bf16.xpose.msra.mxu0 0
        %1181 = vmatprep.subr.bf16.mxu0 0
        %1182 = vmatpush2.bf16.xpose.msra.mxu0 0
        %1183 = vmatprep.subr.bf16.mxu0 0
        %1184 = vmatpush2.bf16.xpose.msra.mxu0 0
        %1185 = vmatprep.subr.bf16.mxu0 0
        %1186 = vmatpush2.bf16.xpose.msra.mxu0 0
        %1187 = vmatprep.subr.bf16.mxu0 0
        %1188 = vmatpush2.bf16.xpose.msra.mxu0 0
        %1189 = vmatprep.subr.bf16.mxu0 0
        %1190 = vmatpush2.bf16.xpose.msra.mxu0 0
        %1191 = vmatprep.mubr.bf16.mxu0 0
        %1192 = vmatmul.mubr.bf16.gmra.mxu0 %v1154
        %v1193 = vpop.f32.mrf.mxu0
        %v1194 = vadd.f32 %v874, %v1193
        %v1195 = vpop.f32.mrf.mxu0
        %v1196 = vpop.f32.mrf.mxu0
        %v1197 = vpop.f32.mrf.mxu0
        %1198 = vdwg.mxu0
        %v1200 = vsel %vm876, %v839, 0
        %v1203 = vsel %vm876, %v854, 0
        %1205 = vmatprep.subr.bf16.mxu0 0
        %1206 = vmatpush1.bf16.xpose.msra.mxu0 0
        %1207 = vmatprep.subr.bf16.mxu0 0
        %1208 = vmatpush1.bf16.xpose.msra.mxu0 0
        %1209 = vmatprep.subr.bf16.mxu0 0
        %1210 = vmatpush1.bf16.xpose.msra.mxu0 0
        %1211 = vmatprep.subr.bf16.mxu0 0
        %1212 = vmatpush1.bf16.xpose.msra.mxu0 0
        %1213 = vmatprep.subr.bf16.mxu0 0
        %1214 = vmatpush1.bf16.xpose.msra.mxu0 0
        %1215 = vmatprep.subr.bf16.mxu0 0
        %1216 = vmatpush1.bf16.xpose.msra.mxu0 0
        %1217 = vmatprep.subr.bf16.mxu0 0
        %1218 = vmatpush1.bf16.xpose.msra.mxu0 0
        %1219 = vmatprep.subr.bf16.mxu0 0
        %1220 = vmatpush1.bf16.xpose.msra.mxu0 %v1203
        %1221 = vmatprep.subr.bf16.mxu0 0
        %1222 = vmatpush2.bf16.xpose.msra.mxu0 0
        %1223 = vmatprep.subr.bf16.mxu0 0
        %1224 = vmatpush2.bf16.xpose.msra.mxu0 0
        %1225 = vmatprep.subr.bf16.mxu0 0
        %1226 = vmatpush2.bf16.xpose.msra.mxu0 0
        %1227 = vmatprep.subr.bf16.mxu0 0
        %1228 = vmatpush2.bf16.xpose.msra.mxu0 0
        %1229 = vmatprep.subr.bf16.mxu0 0
        %1230 = vmatpush2.bf16.xpose.msra.mxu0 0
        %1231 = vmatprep.subr.bf16.mxu0 0
        %1232 = vmatpush2.bf16.xpose.msra.mxu0 0
        %1233 = vmatprep.subr.bf16.mxu0 0
        %1234 = vmatpush2.bf16.xpose.msra.mxu0 0
        %1235 = vmatprep.subr.bf16.mxu0 0
        %1236 = vmatpush2.bf16.xpose.msra.mxu0 0
        %1237 = vmatprep.mubr.bf16.mxu0 0
        %1238 = vmatmul.mubr.bf16.gmra.mxu0 %v1200
        %v1239 = vpop.f32.mrf.mxu0
        %v1240 = vadd.f32 %v874, %v1239
        %v1241 = vpop.f32.mrf.mxu0
        %v1242 = vpop.f32.mrf.mxu0
        %v1243 = vpop.f32.mrf.mxu0
        %1244 = vdwg.mxu0
        %vm1245 = vcmask 64512
        %v1246 = vsel %vm1245, %v918, -inf
        %1247 = vmax.xlane.f32.xlu0 %v1246
        %v1248 = vpop.xlane.xlu0 %1247
        %v1249 = vsel %vm1245, %v964, -inf
        %1250 = vmax.xlane.f32.xlu0 %v1249
        %v1251 = vpop.xlane.xlu0 %1250
        %v1252 = vsel %vm1245, %v1010, -inf
        %1253 = vmax.xlane.f32.xlu0 %v1252
        %v1254 = vpop.xlane.xlu0 %1253
        %v1255 = vsel %vm1245, %v1056, -inf
        %1256 = vmax.xlane.f32.xlu0 %v1255
        %v1257 = vpop.xlane.xlu0 %1256
        %v1258 = vsel %vm1245, %v1102, -inf
        %1259 = vmax.xlane.f32.xlu0 %v1258
        %v1260 = vpop.xlane.xlu0 %1259
        %v1261 = vsel %vm1245, %v1148, -inf
        %1262 = vmax.xlane.f32.xlu0 %v1261
        %v1263 = vpop.xlane.xlu0 %1262
        %v1264 = vsel %vm1245, %v1194, -inf
        %1265 = vmax.xlane.f32.xlu0 %v1264
        %v1266 = vpop.xlane.xlu0 %1265
        %v1267 = vsel %vm1245, %v1240, -inf
        %1268 = vmax.xlane.f32.xlu0 %v1267
        %v1269 = vpop.xlane.xlu0 %1268
        %v1270 = vsub.f32 %v918, %v1248
        %v1271 = vsub.f32 %v964, %v1251
        %v1272 = vsub.f32 %v1010, %v1254
        %v1273 = vsub.f32 %v1056, %v1257
        %v1274 = vsub.f32 %v1102, %v1260
        %v1275 = vsub.f32 %v1148, %v1263
        %v1276 = vsub.f32 %v1194, %v1266
        %v1277 = vsub.f32 %v1240, %v1269
        %v1278 = vmul.f32 %v1270, 1.442695
        %v1279 = vpow.pop %v1278
        %v1280 = vmul.f32 %v1271, 1.442695
        %v1281 = vpow.pop %v1280
        %v1282 = vmul.f32 %v1272, 1.442695
        %v1283 = vpow.pop %v1282
        %v1284 = vmul.f32 %v1273, 1.442695
        %v1285 = vpow.pop %v1284
        %v1286 = vmul.f32 %v1274, 1.442695
        %v1287 = vpow.pop %v1286
        %v1288 = vmul.f32 %v1275, 1.442695
        %v1289 = vpow.pop %v1288
        %v1290 = vmul.f32 %v1276, 1.442695
        %v1291 = vpow.pop %v1290
        %v1292 = vmul.f32 %v1277, 1.442695
        %v1293 = vpow.pop %v1292
        %v1294 = vsel %vm1245, %v1279, 0.0
        %1295 = vadd.xlane.f32.xlu0 %v1294
        %v1296 = vpop.xlane.xlu0 %1295
        %v1297 = vsel %vm1245, %v1281, 0.0
        %1298 = vadd.xlane.f32.xlu0 %v1297
        %v1299 = vpop.xlane.xlu0 %1298
        %v1300 = vsel %vm1245, %v1283, 0.0
        %1301 = vadd.xlane.f32.xlu0 %v1300
        %v1302 = vpop.xlane.xlu0 %1301
        %v1303 = vsel %vm1245, %v1285, 0.0
        %1304 = vadd.xlane.f32.xlu0 %v1303
        %v1305 = vpop.xlane.xlu0 %1304
        %v1306 = vsel %vm1245, %v1287, 0.0
        %1307 = vadd.xlane.f32.xlu0 %v1306
        %v1308 = vpop.xlane.xlu0 %1307
        %v1309 = vsel %vm1245, %v1289, 0.0
        %1310 = vadd.xlane.f32.xlu0 %v1309
        %v1311 = vpop.xlane.xlu0 %1310
        %v1312 = vsel %vm1245, %v1291, 0.0
        %1313 = vadd.xlane.f32.xlu0 %v1312
        %v1314 = vpop.xlane.xlu0 %1313
        %v1315 = vsel %vm1245, %v1293, 0.0
        %1316 = vadd.xlane.f32.xlu0 %v1315
        %v1317 = vpop.xlane.xlu0 %1316
        %v1318 = vrcp.pop %v1296
        %v1319 = vrcp.pop %v1299
        %v1320 = vrcp.pop %v1302
        %v1321 = vrcp.pop %v1305
        %v1322 = vrcp.pop %v1308
        %v1323 = vrcp.pop %v1311
        %v1324 = vrcp.pop %v1314
        %v1325 = vrcp.pop %v1317
        %v1326 = vmul.f32 %v1279, %v1318
        %v1327 = vmul.f32 %v1281, %v1319
        %v1328 = vmul.f32 %v1283, %v1320
        %v1329 = vmul.f32 %v1285, %v1321
        %v1330 = vmul.f32 %v1287, %v1322
        %v1331 = vmul.f32 %v1289, %v1323
        %v1332 = vmul.f32 %v1291, %v1324
        %v1333 = vmul.f32 %v1293, %v1325
        %v1334 = vpack.c.bf16 %v1326, %v1326
        %v1335 = vpack.c.bf16 %v1327, %v1327
        %v1336 = vpack.c.bf16 %v1328, %v1328
        %v1337 = vpack.c.bf16 %v1329, %v1329
        %v1338 = vpack.c.bf16 %v1330, %v1330
        %v1339 = vpack.c.bf16 %v1331, %v1331
        %v1340 = vpack.c.bf16 %v1332, %v1332
        %v1341 = vpack.c.bf16 %v1333, %v1333
        %v1343 = vsel %vm1245, %v1334, 0
        %vm1345 = vcmask 1043456
        %v1347 = vsel %vm1345, %v824, 0
        %1349 = vmatprep.subr.bf16.mxu0 0
        %1350 = vmatpush1.bf16.msra.mxu0 0
        %1351 = vmatprep.subr.bf16.mxu0 0
        %1352 = vmatpush1.bf16.msra.mxu0 0
        %1353 = vmatprep.subr.bf16.mxu0 0
        %1354 = vmatpush1.bf16.msra.mxu0 0
        %1355 = vmatprep.subr.bf16.mxu0 0
        %1356 = vmatpush1.bf16.msra.mxu0 0
        %1357 = vmatprep.subr.bf16.mxu0 0
        %1358 = vmatpush1.bf16.msra.mxu0 0
        %1359 = vmatprep.subr.bf16.mxu0 0
        %1360 = vmatpush1.bf16.msra.mxu0 0
        %1361 = vmatprep.subr.bf16.mxu0 0
        %1362 = vmatpush1.bf16.msra.mxu0 0
        %1363 = vmatprep.subr.bf16.mxu0 0
        %1364 = vmatpush1.bf16.msra.mxu0 %v1347
        %1365 = vmatprep.subr.bf16.mxu0 0
        %1366 = vmatpush2.bf16.msra.mxu0 0
        %1367 = vmatprep.subr.bf16.mxu0 0
        %1368 = vmatpush2.bf16.msra.mxu0 0
        %1369 = vmatprep.subr.bf16.mxu0 0
        %1370 = vmatpush2.bf16.msra.mxu0 0
        %1371 = vmatprep.subr.bf16.mxu0 0
        %1372 = vmatpush2.bf16.msra.mxu0 0
        %1373 = vmatprep.subr.bf16.mxu0 0
        %1374 = vmatpush2.bf16.msra.mxu0 0
        %1375 = vmatprep.subr.bf16.mxu0 0
        %1376 = vmatpush2.bf16.msra.mxu0 0
        %1377 = vmatprep.subr.bf16.mxu0 0
        %1378 = vmatpush2.bf16.msra.mxu0 0
        %1379 = vmatprep.subr.bf16.mxu0 0
        %1380 = vmatpush2.bf16.msra.mxu0 0
        %1381 = vmatprep.mubr.bf16.mxu0 0
        %1382 = vmatmul.mubr.bf16.gmra.mxu0 %v1343
        %v1383 = vpop.f32.mrf.mxu0
        %v1384 = vadd.f32 0.0, %v1383
        %v1385 = vpop.f32.mrf.mxu0
        %v1386 = vpop.f32.mrf.mxu0
        %v1387 = vpop.f32.mrf.mxu0
        %1388 = vdwg.mxu0
        %v1390 = vsel %vm1245, %v1335, 0
        %v1393 = vsel %vm1345, %v857, 0
        %1395 = vmatprep.subr.bf16.mxu0 0
        %1396 = vmatpush1.bf16.msra.mxu0 0
        %1397 = vmatprep.subr.bf16.mxu0 0
        %1398 = vmatpush1.bf16.msra.mxu0 0
        %1399 = vmatprep.subr.bf16.mxu0 0
        %1400 = vmatpush1.bf16.msra.mxu0 0
        %1401 = vmatprep.subr.bf16.mxu0 0
        %1402 = vmatpush1.bf16.msra.mxu0 0
        %1403 = vmatprep.subr.bf16.mxu0 0
        %1404 = vmatpush1.bf16.msra.mxu0 0
        %1405 = vmatprep.subr.bf16.mxu0 0
        %1406 = vmatpush1.bf16.msra.mxu0 0
        %1407 = vmatprep.subr.bf16.mxu0 0
        %1408 = vmatpush1.bf16.msra.mxu0 0
        %1409 = vmatprep.subr.bf16.mxu0 0
        %1410 = vmatpush1.bf16.msra.mxu0 %v1393
        %1411 = vmatprep.subr.bf16.mxu0 0
        %1412 = vmatpush2.bf16.msra.mxu0 0
        %1413 = vmatprep.subr.bf16.mxu0 0
        %1414 = vmatpush2.bf16.msra.mxu0 0
        %1415 = vmatprep.subr.bf16.mxu0 0
        %1416 = vmatpush2.bf16.msra.mxu0 0
        %1417 = vmatprep.subr.bf16.mxu0 0
        %1418 = vmatpush2.bf16.msra.mxu0 0
        %1419 = vmatprep.subr.bf16.mxu0 0
        %1420 = vmatpush2.bf16.msra.mxu0 0
        %1421 = vmatprep.subr.bf16.mxu0 0
        %1422 = vmatpush2.bf16.msra.mxu0 0
        %1423 = vmatprep.subr.bf16.mxu0 0
        %1424 = vmatpush2.bf16.msra.mxu0 0
        %1425 = vmatprep.subr.bf16.mxu0 0
        %1426 = vmatpush2.bf16.msra.mxu0 0
        %1427 = vmatprep.mubr.bf16.mxu0 0
        %1428 = vmatmul.mubr.bf16.gmra.mxu0 %v1390
        %v1429 = vpop.f32.mrf.mxu0
        %v1430 = vadd.f32 0.0, %v1429
        %v1431 = vpop.f32.mrf.mxu0
        %v1432 = vpop.f32.mrf.mxu0
        %v1433 = vpop.f32.mrf.mxu0
        %1434 = vdwg.mxu0
        %v1436 = vsel %vm1245, %v1336, 0
        %v1439 = vsel %vm1345, %v859, 0
        %1441 = vmatprep.subr.bf16.mxu0 0
        %1442 = vmatpush1.bf16.msra.mxu0 0
        %1443 = vmatprep.subr.bf16.mxu0 0
        %1444 = vmatpush1.bf16.msra.mxu0 0
        %1445 = vmatprep.subr.bf16.mxu0 0
        %1446 = vmatpush1.bf16.msra.mxu0 0
        %1447 = vmatprep.subr.bf16.mxu0 0
        %1448 = vmatpush1.bf16.msra.mxu0 0
        %1449 = vmatprep.subr.bf16.mxu0 0
        %1450 = vmatpush1.bf16.msra.mxu0 0
        %1451 = vmatprep.subr.bf16.mxu0 0
        %1452 = vmatpush1.bf16.msra.mxu0 0
        %1453 = vmatprep.subr.bf16.mxu0 0
        %1454 = vmatpush1.bf16.msra.mxu0 0
        %1455 = vmatprep.subr.bf16.mxu0 0
        %1456 = vmatpush1.bf16.msra.mxu0 %v1439
        %1457 = vmatprep.subr.bf16.mxu0 0
        %1458 = vmatpush2.bf16.msra.mxu0 0
        %1459 = vmatprep.subr.bf16.mxu0 0
        %1460 = vmatpush2.bf16.msra.mxu0 0
        %1461 = vmatprep.subr.bf16.mxu0 0
        %1462 = vmatpush2.bf16.msra.mxu0 0
        %1463 = vmatprep.subr.bf16.mxu0 0
        %1464 = vmatpush2.bf16.msra.mxu0 0
        %1465 = vmatprep.subr.bf16.mxu0 0
        %1466 = vmatpush2.bf16.msra.mxu0 0
        %1467 = vmatprep.subr.bf16.mxu0 0
        %1468 = vmatpush2.bf16.msra.mxu0 0
        %1469 = vmatprep.subr.bf16.mxu0 0
        %1470 = vmatpush2.bf16.msra.mxu0 0
        %1471 = vmatprep.subr.bf16.mxu0 0
        %1472 = vmatpush2.bf16.msra.mxu0 0
        %1473 = vmatprep.mubr.bf16.mxu0 0
        %1474 = vmatmul.mubr.bf16.gmra.mxu0 %v1436
        %v1475 = vpop.f32.mrf.mxu0
        %v1476 = vadd.f32 0.0, %v1475
        %v1477 = vpop.f32.mrf.mxu0
        %v1478 = vpop.f32.mrf.mxu0
        %v1479 = vpop.f32.mrf.mxu0
        %1480 = vdwg.mxu0
        %v1482 = vsel %vm1245, %v1337, 0
        %v1485 = vsel %vm1345, %v861, 0
        %1487 = vmatprep.subr.bf16.mxu0 0
        %1488 = vmatpush1.bf16.msra.mxu0 0
        %1489 = vmatprep.subr.bf16.mxu0 0
        %1490 = vmatpush1.bf16.msra.mxu0 0
        %1491 = vmatprep.subr.bf16.mxu0 0
        %1492 = vmatpush1.bf16.msra.mxu0 0
        %1493 = vmatprep.subr.bf16.mxu0 0
        %1494 = vmatpush1.bf16.msra.mxu0 0
        %1495 = vmatprep.subr.bf16.mxu0 0
        %1496 = vmatpush1.bf16.msra.mxu0 0
        %1497 = vmatprep.subr.bf16.mxu0 0
        %1498 = vmatpush1.bf16.msra.mxu0 0
        %1499 = vmatprep.subr.bf16.mxu0 0
        %1500 = vmatpush1.bf16.msra.mxu0 0
        %1501 = vmatprep.subr.bf16.mxu0 0
        %1502 = vmatpush1.bf16.msra.mxu0 %v1485
        %1503 = vmatprep.subr.bf16.mxu0 0
        %1504 = vmatpush2.bf16.msra.mxu0 0
        %1505 = vmatprep.subr.bf16.mxu0 0
        %1506 = vmatpush2.bf16.msra.mxu0 0
        %1507 = vmatprep.subr.bf16.mxu0 0
        %1508 = vmatpush2.bf16.msra.mxu0 0
        %1509 = vmatprep.subr.bf16.mxu0 0
        %1510 = vmatpush2.bf16.msra.mxu0 0
        %1511 = vmatprep.subr.bf16.mxu0 0
        %1512 = vmatpush2.bf16.msra.mxu0 0
        %1513 = vmatprep.subr.bf16.mxu0 0
        %1514 = vmatpush2.bf16.msra.mxu0 0
        %1515 = vmatprep.subr.bf16.mxu0 0
        %1516 = vmatpush2.bf16.msra.mxu0 0
        %1517 = vmatprep.subr.bf16.mxu0 0
        %1518 = vmatpush2.bf16.msra.mxu0 0
        %1519 = vmatprep.mubr.bf16.mxu0 0
        %1520 = vmatmul.mubr.bf16.gmra.mxu0 %v1482
        %v1521 = vpop.f32.mrf.mxu0
        %v1522 = vadd.f32 0.0, %v1521
        %v1523 = vpop.f32.mrf.mxu0
        %v1524 = vpop.f32.mrf.mxu0
        %v1525 = vpop.f32.mrf.mxu0
        %1526 = vdwg.mxu0
        %v1528 = vsel %vm1245, %v1338, 0
        %v1531 = vsel %vm1345, %v863, 0
        %1533 = vmatprep.subr.bf16.mxu0 0
        %1534 = vmatpush1.bf16.msra.mxu0 0
        %1535 = vmatprep.subr.bf16.mxu0 0
        %1536 = vmatpush1.bf16.msra.mxu0 0
        %1537 = vmatprep.subr.bf16.mxu0 0
        %1538 = vmatpush1.bf16.msra.mxu0 0
        %1539 = vmatprep.subr.bf16.mxu0 0
        %1540 = vmatpush1.bf16.msra.mxu0 0
        %1541 = vmatprep.subr.bf16.mxu0 0
        %1542 = vmatpush1.bf16.msra.mxu0 0
        %1543 = vmatprep.subr.bf16.mxu0 0
        %1544 = vmatpush1.bf16.msra.mxu0 0
        %1545 = vmatprep.subr.bf16.mxu0 0
        %1546 = vmatpush1.bf16.msra.mxu0 0
        %1547 = vmatprep.subr.bf16.mxu0 0
        %1548 = vmatpush1.bf16.msra.mxu0 %v1531
        %1549 = vmatprep.subr.bf16.mxu0 0
        %1550 = vmatpush2.bf16.msra.mxu0 0
        %1551 = vmatprep.subr.bf16.mxu0 0
        %1552 = vmatpush2.bf16.msra.mxu0 0
        %1553 = vmatprep.subr.bf16.mxu0 0
        %1554 = vmatpush2.bf16.msra.mxu0 0
        %1555 = vmatprep.subr.bf16.mxu0 0
        %1556 = vmatpush2.bf16.msra.mxu0 0
        %1557 = vmatprep.subr.bf16.mxu0 0
        %1558 = vmatpush2.bf16.msra.mxu0 0
        %1559 = vmatprep.subr.bf16.mxu0 0
        %1560 = vmatpush2.bf16.msra.mxu0 0
        %1561 = vmatprep.subr.bf16.mxu0 0
        %1562 = vmatpush2.bf16.msra.mxu0 0
        %1563 = vmatprep.subr.bf16.mxu0 0
        %1564 = vmatpush2.bf16.msra.mxu0 0
        %1565 = vmatprep.mubr.bf16.mxu0 0
        %1566 = vmatmul.mubr.bf16.gmra.mxu0 %v1528
        %v1567 = vpop.f32.mrf.mxu0
        %v1568 = vadd.f32 0.0, %v1567
        %v1569 = vpop.f32.mrf.mxu0
        %v1570 = vpop.f32.mrf.mxu0
        %v1571 = vpop.f32.mrf.mxu0
        %1572 = vdwg.mxu0
        %v1574 = vsel %vm1245, %v1339, 0
        %v1577 = vsel %vm1345, %v865, 0
        %1579 = vmatprep.subr.bf16.mxu0 0
        %1580 = vmatpush1.bf16.msra.mxu0 0
        %1581 = vmatprep.subr.bf16.mxu0 0
        %1582 = vmatpush1.bf16.msra.mxu0 0
        %1583 = vmatprep.subr.bf16.mxu0 0
        %1584 = vmatpush1.bf16.msra.mxu0 0
        %1585 = vmatprep.subr.bf16.mxu0 0
        %1586 = vmatpush1.bf16.msra.mxu0 0
        %1587 = vmatprep.subr.bf16.mxu0 0
        %1588 = vmatpush1.bf16.msra.mxu0 0
        %1589 = vmatprep.subr.bf16.mxu0 0
        %1590 = vmatpush1.bf16.msra.mxu0 0
        %1591 = vmatprep.subr.bf16.mxu0 0
        %1592 = vmatpush1.bf16.msra.mxu0 0
        %1593 = vmatprep.subr.bf16.mxu0 0
        %1594 = vmatpush1.bf16.msra.mxu0 %v1577
        %1595 = vmatprep.subr.bf16.mxu0 0
        %1596 = vmatpush2.bf16.msra.mxu0 0
        %1597 = vmatprep.subr.bf16.mxu0 0
        %1598 = vmatpush2.bf16.msra.mxu0 0
        %1599 = vmatprep.subr.bf16.mxu0 0
        %1600 = vmatpush2.bf16.msra.mxu0 0
        %1601 = vmatprep.subr.bf16.mxu0 0
        %1602 = vmatpush2.bf16.msra.mxu0 0
        %1603 = vmatprep.subr.bf16.mxu0 0
        %1604 = vmatpush2.bf16.msra.mxu0 0
        %1605 = vmatprep.subr.bf16.mxu0 0
        %1606 = vmatpush2.bf16.msra.mxu0 0
        %1607 = vmatprep.subr.bf16.mxu0 0
        %1608 = vmatpush2.bf16.msra.mxu0 0
        %1609 = vmatprep.subr.bf16.mxu0 0
        %1610 = vmatpush2.bf16.msra.mxu0 0
        %1611 = vmatprep.mubr.bf16.mxu0 0
        %1612 = vmatmul.mubr.bf16.gmra.mxu0 %v1574
        %v1613 = vpop.f32.mrf.mxu0
        %v1614 = vadd.f32 0.0, %v1613
        %v1615 = vpop.f32.mrf.mxu0
        %v1616 = vpop.f32.mrf.mxu0
        %v1617 = vpop.f32.mrf.mxu0
        %1618 = vdwg.mxu0
        %v1620 = vsel %vm1245, %v1340, 0
        %v1623 = vsel %vm1345, %v867, 0
        %1625 = vmatprep.subr.bf16.mxu0 0
        %1626 = vmatpush1.bf16.msra.mxu0 0
        %1627 = vmatprep.subr.bf16.mxu0 0
        %1628 = vmatpush1.bf16.msra.mxu0 0
        %1629 = vmatprep.subr.bf16.mxu0 0
        %1630 = vmatpush1.bf16.msra.mxu0 0
        %1631 = vmatprep.subr.bf16.mxu0 0
        %1632 = vmatpush1.bf16.msra.mxu0 0
        %1633 = vmatprep.subr.bf16.mxu0 0
        %1634 = vmatpush1.bf16.msra.mxu0 0
        %1635 = vmatprep.subr.bf16.mxu0 0
        %1636 = vmatpush1.bf16.msra.mxu0 0
        %1637 = vmatprep.subr.bf16.mxu0 0
        %1638 = vmatpush1.bf16.msra.mxu0 0
        %1639 = vmatprep.subr.bf16.mxu0 0
        %1640 = vmatpush1.bf16.msra.mxu0 %v1623
        %1641 = vmatprep.subr.bf16.mxu0 0
        %1642 = vmatpush2.bf16.msra.mxu0 0
        %1643 = vmatprep.subr.bf16.mxu0 0
        %1644 = vmatpush2.bf16.msra.mxu0 0
        %1645 = vmatprep.subr.bf16.mxu0 0
        %1646 = vmatpush2.bf16.msra.mxu0 0
        %1647 = vmatprep.subr.bf16.mxu0 0
        %1648 = vmatpush2.bf16.msra.mxu0 0
        %1649 = vmatprep.subr.bf16.mxu0 0
        %1650 = vmatpush2.bf16.msra.mxu0 0
        %1651 = vmatprep.subr.bf16.mxu0 0
        %1652 = vmatpush2.bf16.msra.mxu0 0
        %1653 = vmatprep.subr.bf16.mxu0 0
        %1654 = vmatpush2.bf16.msra.mxu0 0
        %1655 = vmatprep.subr.bf16.mxu0 0
        %1656 = vmatpush2.bf16.msra.mxu0 0
        %1657 = vmatprep.mubr.bf16.mxu0 0
        %1658 = vmatmul.mubr.bf16.gmra.mxu0 %v1620
        %v1659 = vpop.f32.mrf.mxu0
        %v1660 = vadd.f32 0.0, %v1659
        %v1661 = vpop.f32.mrf.mxu0
        %v1662 = vpop.f32.mrf.mxu0
        %v1663 = vpop.f32.mrf.mxu0
        %1664 = vdwg.mxu0
        %v1666 = vsel %vm1245, %v1341, 0
        %v1669 = vsel %vm1345, %v869, 0
        %1671 = vmatprep.subr.bf16.mxu0 0
        %1672 = vmatpush1.bf16.msra.mxu0 0
        %1673 = vmatprep.subr.bf16.mxu0 0
        %1674 = vmatpush1.bf16.msra.mxu0 0
        %1675 = vmatprep.subr.bf16.mxu0 0
        %1676 = vmatpush1.bf16.msra.mxu0 0
        %1677 = vmatprep.subr.bf16.mxu0 0
        %1678 = vmatpush1.bf16.msra.mxu0 0
        %1679 = vmatprep.subr.bf16.mxu0 0
        %1680 = vmatpush1.bf16.msra.mxu0 0
        %1681 = vmatprep.subr.bf16.mxu0 0
        %1682 = vmatpush1.bf16.msra.mxu0 0
        %1683 = vmatprep.subr.bf16.mxu0 0
        %1684 = vmatpush1.bf16.msra.mxu0 0
        %1685 = vmatprep.subr.bf16.mxu0 0
        %1686 = vmatpush1.bf16.msra.mxu0 %v1669
        %1687 = vmatprep.subr.bf16.mxu0 0
        %1688 = vmatpush2.bf16.msra.mxu0 0
        %1689 = vmatprep.subr.bf16.mxu0 0
        %1690 = vmatpush2.bf16.msra.mxu0 0
        %1691 = vmatprep.subr.bf16.mxu0 0
        %1692 = vmatpush2.bf16.msra.mxu0 0
        %1693 = vmatprep.subr.bf16.mxu0 0
        %1694 = vmatpush2.bf16.msra.mxu0 0
        %1695 = vmatprep.subr.bf16.mxu0 0
        %1696 = vmatpush2.bf16.msra.mxu0 0
        %1697 = vmatprep.subr.bf16.mxu0 0
        %1698 = vmatpush2.bf16.msra.mxu0 0
        %1699 = vmatprep.subr.bf16.mxu0 0
        %1700 = vmatpush2.bf16.msra.mxu0 0
        %1701 = vmatprep.subr.bf16.mxu0 0
        %1702 = vmatpush2.bf16.msra.mxu0 0
        %1703 = vmatprep.mubr.bf16.mxu0 0
        %1704 = vmatmul.mubr.bf16.gmra.mxu0 %v1666
        %v1705 = vpop.f32.mrf.mxu0
        %v1706 = vadd.f32 0.0, %v1705
        %v1707 = vpop.f32.mrf.mxu0
        %v1708 = vpop.f32.mrf.mxu0
        %v1709 = vpop.f32.mrf.mxu0
        %1710 = vdwg.mxu0
        %v1711 = vpack.c.bf16 %v1384, %v1384
        %v1712 = vpack.c.bf16 %v1430, %v1430
        %v1713 = vpack.c.bf16 %v1476, %v1476
        %v1714 = vpack.c.bf16 %v1522, %v1522
        %v1715 = vpack.c.bf16 %v1568, %v1568
        %v1716 = vpack.c.bf16 %v1614, %v1614
        %v1717 = vpack.c.bf16 %v1660, %v1660
        %v1718 = vpack.c.bf16 %v1706, %v1706
        %s1719 = smul.u32 %s36, 16
        %s1720 = smul.addr %s1719, 4
        %s1721 = scalar_lea.vmem [#allocation5], %s1720
        %v1722 = vld [vmem:[%s1721] sm:$0xf]
        %v1723 = vld [vmem:[%s1721 + $0x4] sm:$0xf]
        %v1724 = vld [vmem:[%s1721 + $0x8] sm:$0xf]
        %v1725 = vld [vmem:[%s1721 + $0xc] sm:$0xf]
        %v1726 = vld [vmem:[%s1721 + $0x10] sm:$0xf]
        %v1727 = vld [vmem:[%s1721 + $0x14] sm:$0xf]
        %v1728 = vld [vmem:[%s1721 + $0x18] sm:$0xf]
        %v1729 = vld [vmem:[%s1721 + $0x1c] sm:$0xf]
        %v1730 = vld [vmem:[%s1721 + $0x20] sm:$0xf]
        %v1731 = vld [vmem:[%s1721 + $0x24] sm:$0xf]
        %v1732 = vld [vmem:[%s1721 + $0x28] sm:$0xf]
        %v1733 = vld [vmem:[%s1721 + $0x2c] sm:$0xf]
        %v1734 = vld [vmem:[%s1721 + $0x30] sm:$0xf]
        %v1735 = vld [vmem:[%s1721 + $0x34] sm:$0xf]
        %v1736 = vld [vmem:[%s1721 + $0x38] sm:$0xf]
        %v1737 = vld [vmem:[%s1721 + $0x3c] sm:$0xf]
        %v1740 = vunpack.c.l.b16 %v1722
        %v1741 = vunpack.c.l.b16 %v1723
        %v1742 = vpack.c.b16 %v1741, %v1740
        %v1745 = vsel %vm876, %v1711, 0
        %1747 = vmatprep.subr.bf16.mxu0 0
        %1748 = vmatpush1.bf16.msra.mxu0 0
        %1749 = vmatprep.subr.bf16.mxu0 0
        %1750 = vmatpush1.bf16.msra.mxu0 0
        %1751 = vmatprep.subr.bf16.mxu0 0
        %1752 = vmatpush1.bf16.msra.mxu0 0
        %1753 = vmatprep.subr.bf16.mxu0 0
        %1754 = vmatpush1.bf16.msra.mxu0 0
        %1755 = vmatprep.subr.bf16.mxu0 0
        %1756 = vmatpush1.bf16.msra.mxu0 0
        %1757 = vmatprep.subr.bf16.mxu0 0
        %1758 = vmatpush1.bf16.msra.mxu0 0
        %1759 = vmatprep.subr.bf16.mxu0 0
        %1760 = vmatpush1.bf16.msra.mxu0 0
        %1761 = vmatprep.subr.bf16.mxu0 0
        %1762 = vmatpush1.bf16.msra.mxu0 %v1742
        %1763 = vmatprep.subr.bf16.mxu0 0
        %1764 = vmatpush2.bf16.msra.mxu0 0
        %1765 = vmatprep.subr.bf16.mxu0 0
        %1766 = vmatpush2.bf16.msra.mxu0 0
        %1767 = vmatprep.subr.bf16.mxu0 0
        %1768 = vmatpush2.bf16.msra.mxu0 0
        %1769 = vmatprep.subr.bf16.mxu0 0
        %1770 = vmatpush2.bf16.msra.mxu0 0
        %1771 = vmatprep.subr.bf16.mxu0 0
        %1772 = vmatpush2.bf16.msra.mxu0 0
        %1773 = vmatprep.subr.bf16.mxu0 0
        %1774 = vmatpush2.bf16.msra.mxu0 0
        %1775 = vmatprep.subr.bf16.mxu0 0
        %1776 = vmatpush2.bf16.msra.mxu0 0
        %1777 = vmatprep.subr.bf16.mxu0 0
        %1778 = vmatpush2.bf16.msra.mxu0 0
        %1779 = vmatprep.mubr.bf16.mxu0 0
        %1780 = vmatmul.mubr.bf16.gmra.mxu0 %v1745
        %v1781 = vpop.f32.mrf.mxu0
        %v1782 = vadd.f32 0.0, %v1781
        %v1783 = vpop.f32.mrf.mxu0
        %v1784 = vpop.f32.mrf.mxu0
        %v1785 = vpop.f32.mrf.mxu0
        %1786 = vdwg.mxu0
        %v1789 = vunpack.c.l.b16 %v1724
        %v1790 = vunpack.c.l.b16 %v1725
        %v1791 = vpack.c.b16 %v1790, %v1789
        %v1794 = vsel %vm876, %v1712, 0
        %1796 = vmatprep.subr.bf16.mxu0 0
        %1797 = vmatpush1.bf16.msra.mxu0 0
        %1798 = vmatprep.subr.bf16.mxu0 0
        %1799 = vmatpush1.bf16.msra.mxu0 0
        %1800 = vmatprep.subr.bf16.mxu0 0
        %1801 = vmatpush1.bf16.msra.mxu0 0
        %1802 = vmatprep.subr.bf16.mxu0 0
        %1803 = vmatpush1.bf16.msra.mxu0 0
        %1804 = vmatprep.subr.bf16.mxu0 0
        %1805 = vmatpush1.bf16.msra.mxu0 0
        %1806 = vmatprep.subr.bf16.mxu0 0
        %1807 = vmatpush1.bf16.msra.mxu0 0
        %1808 = vmatprep.subr.bf16.mxu0 0
        %1809 = vmatpush1.bf16.msra.mxu0 0
        %1810 = vmatprep.subr.bf16.mxu0 0
        %1811 = vmatpush1.bf16.msra.mxu0 %v1791
        %1812 = vmatprep.subr.bf16.mxu0 0
        %1813 = vmatpush2.bf16.msra.mxu0 0
        %1814 = vmatprep.subr.bf16.mxu0 0
        %1815 = vmatpush2.bf16.msra.mxu0 0
        %1816 = vmatprep.subr.bf16.mxu0 0
        %1817 = vmatpush2.bf16.msra.mxu0 0
        %1818 = vmatprep.subr.bf16.mxu0 0
        %1819 = vmatpush2.bf16.msra.mxu0 0
        %1820 = vmatprep.subr.bf16.mxu0 0
        %1821 = vmatpush2.bf16.msra.mxu0 0
        %1822 = vmatprep.subr.bf16.mxu0 0
        %1823 = vmatpush2.bf16.msra.mxu0 0
        %1824 = vmatprep.subr.bf16.mxu0 0
        %1825 = vmatpush2.bf16.msra.mxu0 0
        %1826 = vmatprep.subr.bf16.mxu0 0
        %1827 = vmatpush2.bf16.msra.mxu0 0
        %1828 = vmatprep.mubr.bf16.mxu0 0
        %1829 = vmatmul.mubr.bf16.gmra.mxu0 %v1794
        %v1830 = vpop.f32.mrf.mxu0
        %v1831 = vadd.f32 0.0, %v1830
        %v1832 = vpop.f32.mrf.mxu0
        %v1833 = vpop.f32.mrf.mxu0
        %v1834 = vpop.f32.mrf.mxu0
        %1835 = vdwg.mxu0
        %v1838 = vunpack.c.l.b16 %v1726
        %v1839 = vunpack.c.l.b16 %v1727
        %v1840 = vpack.c.b16 %v1839, %v1838
        %v1843 = vsel %vm876, %v1713, 0
        %1845 = vmatprep.subr.bf16.mxu0 0
        %1846 = vmatpush1.bf16.msra.mxu0 0
        %1847 = vmatprep.subr.bf16.mxu0 0
        %1848 = vmatpush1.bf16.msra.mxu0 0
        %1849 = vmatprep.subr.bf16.mxu0 0
        %1850 = vmatpush1.bf16.msra.mxu0 0
        %1851 = vmatprep.subr.bf16.mxu0 0
        %1852 = vmatpush1.bf16.msra.mxu0 0
        %1853 = vmatprep.subr.bf16.mxu0 0
        %1854 = vmatpush1.bf16.msra.mxu0 0
        %1855 = vmatprep.subr.bf16.mxu0 0
        %1856 = vmatpush1.bf16.msra.mxu0 0
        %1857 = vmatprep.subr.bf16.mxu0 0
        %1858 = vmatpush1.bf16.msra.mxu0 0
        %1859 = vmatprep.subr.bf16.mxu0 0
        %1860 = vmatpush1.bf16.msra.mxu0 %v1840
        %1861 = vmatprep.subr.bf16.mxu0 0
        %1862 = vmatpush2.bf16.msra.mxu0 0
        %1863 = vmatprep.subr.bf16.mxu0 0
        %1864 = vmatpush2.bf16.msra.mxu0 0
        %1865 = vmatprep.subr.bf16.mxu0 0
        %1866 = vmatpush2.bf16.msra.mxu0 0
        %1867 = vmatprep.subr.bf16.mxu0 0
        %1868 = vmatpush2.bf16.msra.mxu0 0
        %1869 = vmatprep.subr.bf16.mxu0 0
        %1870 = vmatpush2.bf16.msra.mxu0 0
        %1871 = vmatprep.subr.bf16.mxu0 0
        %1872 = vmatpush2.bf16.msra.mxu0 0
        %1873 = vmatprep.subr.bf16.mxu0 0
        %1874 = vmatpush2.bf16.msra.mxu0 0
        %1875 = vmatprep.subr.bf16.mxu0 0
        %1876 = vmatpush2.bf16.msra.mxu0 0
        %1877 = vmatprep.mubr.bf16.mxu0 0
        %1878 = vmatmul.mubr.bf16.gmra.mxu0 %v1843
        %v1879 = vpop.f32.mrf.mxu0
        %v1880 = vadd.f32 0.0, %v1879
        %v1881 = vpop.f32.mrf.mxu0
        %v1882 = vpop.f32.mrf.mxu0
        %v1883 = vpop.f32.mrf.mxu0
        %1884 = vdwg.mxu0
        %v1887 = vunpack.c.l.b16 %v1728
        %v1888 = vunpack.c.l.b16 %v1729
        %v1889 = vpack.c.b16 %v1888, %v1887
        %v1892 = vsel %vm876, %v1714, 0
        %1894 = vmatprep.subr.bf16.mxu0 0
        %1895 = vmatpush1.bf16.msra.mxu0 0
        %1896 = vmatprep.subr.bf16.mxu0 0
        %1897 = vmatpush1.bf16.msra.mxu0 0
        %1898 = vmatprep.subr.bf16.mxu0 0
        %1899 = vmatpush1.bf16.msra.mxu0 0
        %1900 = vmatprep.subr.bf16.mxu0 0
        %1901 = vmatpush1.bf16.msra.mxu0 0
        %1902 = vmatprep.subr.bf16.mxu0 0
        %1903 = vmatpush1.bf16.msra.mxu0 0
        %1904 = vmatprep.subr.bf16.mxu0 0
        %1905 = vmatpush1.bf16.msra.mxu0 0
        %1906 = vmatprep.subr.bf16.mxu0 0
        %1907 = vmatpush1.bf16.msra.mxu0 0
        %1908 = vmatprep.subr.bf16.mxu0 0
        %1909 = vmatpush1.bf16.msra.mxu0 %v1889
        %1910 = vmatprep.subr.bf16.mxu0 0
        %1911 = vmatpush2.bf16.msra.mxu0 0
        %1912 = vmatprep.subr.bf16.mxu0 0
        %1913 = vmatpush2.bf16.msra.mxu0 0
        %1914 = vmatprep.subr.bf16.mxu0 0
        %1915 = vmatpush2.bf16.msra.mxu0 0
        %1916 = vmatprep.subr.bf16.mxu0 0
        %1917 = vmatpush2.bf16.msra.mxu0 0
        %1918 = vmatprep.subr.bf16.mxu0 0
        %1919 = vmatpush2.bf16.msra.mxu0 0
        %1920 = vmatprep.subr.bf16.mxu0 0
        %1921 = vmatpush2.bf16.msra.mxu0 0
        %1922 = vmatprep.subr.bf16.mxu0 0
        %1923 = vmatpush2.bf16.msra.mxu0 0
        %1924 = vmatprep.subr.bf16.mxu0 0
        %1925 = vmatpush2.bf16.msra.mxu0 0
        %1926 = vmatprep.mubr.bf16.mxu0 0
        %1927 = vmatmul.mubr.bf16.gmra.mxu0 %v1892
        %v1928 = vpop.f32.mrf.mxu0
        %v1929 = vadd.f32 0.0, %v1928
        %v1930 = vpop.f32.mrf.mxu0
        %v1931 = vpop.f32.mrf.mxu0
        %v1932 = vpop.f32.mrf.mxu0
        %1933 = vdwg.mxu0
        %v1936 = vunpack.c.l.b16 %v1730
        %v1937 = vunpack.c.l.b16 %v1731
        %v1938 = vpack.c.b16 %v1937, %v1936
        %v1941 = vsel %vm876, %v1715, 0
        %1943 = vmatprep.subr.bf16.mxu0 0
        %1944 = vmatpush1.bf16.msra.mxu0 0
        %1945 = vmatprep.subr.bf16.mxu0 0
        %1946 = vmatpush1.bf16.msra.mxu0 0
        %1947 = vmatprep.subr.bf16.mxu0 0
        %1948 = vmatpush1.bf16.msra.mxu0 0
        %1949 = vmatprep.subr.bf16.mxu0 0
        %1950 = vmatpush1.bf16.msra.mxu0 0
        %1951 = vmatprep.subr.bf16.mxu0 0
        %1952 = vmatpush1.bf16.msra.mxu0 0
        %1953 = vmatprep.subr.bf16.mxu0 0
        %1954 = vmatpush1.bf16.msra.mxu0 0
        %1955 = vmatprep.subr.bf16.mxu0 0
        %1956 = vmatpush1.bf16.msra.mxu0 0
        %1957 = vmatprep.subr.bf16.mxu0 0
        %1958 = vmatpush1.bf16.msra.mxu0 %v1938
        %1959 = vmatprep.subr.bf16.mxu0 0
        %1960 = vmatpush2.bf16.msra.mxu0 0
        %1961 = vmatprep.subr.bf16.mxu0 0
        %1962 = vmatpush2.bf16.msra.mxu0 0
        %1963 = vmatprep.subr.bf16.mxu0 0
        %1964 = vmatpush2.bf16.msra.mxu0 0
        %1965 = vmatprep.subr.bf16.mxu0 0
        %1966 = vmatpush2.bf16.msra.mxu0 0
        %1967 = vmatprep.subr.bf16.mxu0 0
        %1968 = vmatpush2.bf16.msra.mxu0 0
        %1969 = vmatprep.subr.bf16.mxu0 0
        %1970 = vmatpush2.bf16.msra.mxu0 0
        %1971 = vmatprep.subr.bf16.mxu0 0
        %1972 = vmatpush2.bf16.msra.mxu0 0
        %1973 = vmatprep.subr.bf16.mxu0 0
        %1974 = vmatpush2.bf16.msra.mxu0 0
        %1975 = vmatprep.mubr.bf16.mxu0 0
        %1976 = vmatmul.mubr.bf16.gmra.mxu0 %v1941
        %v1977 = vpop.f32.mrf.mxu0
        %v1978 = vadd.f32 0.0, %v1977
        %v1979 = vpop.f32.mrf.mxu0
        %v1980 = vpop.f32.mrf.mxu0
        %v1981 = vpop.f32.mrf.mxu0
        %1982 = vdwg.mxu0
        %v1985 = vunpack.c.l.b16 %v1732
        %v1986 = vunpack.c.l.b16 %v1733
        %v1987 = vpack.c.b16 %v1986, %v1985
        %v1990 = vsel %vm876, %v1716, 0
        %1992 = vmatprep.subr.bf16.mxu0 0
        %1993 = vmatpush1.bf16.msra.mxu0 0
        %1994 = vmatprep.subr.bf16.mxu0 0
        %1995 = vmatpush1.bf16.msra.mxu0 0
        %1996 = vmatprep.subr.bf16.mxu0 0
        %1997 = vmatpush1.bf16.msra.mxu0 0
        %1998 = vmatprep.subr.bf16.mxu0 0
        %1999 = vmatpush1.bf16.msra.mxu0 0
        %2000 = vmatprep.subr.bf16.mxu0 0
        %2001 = vmatpush1.bf16.msra.mxu0 0
        %2002 = vmatprep.subr.bf16.mxu0 0
        %2003 = vmatpush1.bf16.msra.mxu0 0
        %2004 = vmatprep.subr.bf16.mxu0 0
        %2005 = vmatpush1.bf16.msra.mxu0 0
        %2006 = vmatprep.subr.bf16.mxu0 0
        %2007 = vmatpush1.bf16.msra.mxu0 %v1987
        %2008 = vmatprep.subr.bf16.mxu0 0
        %2009 = vmatpush2.bf16.msra.mxu0 0
        %2010 = vmatprep.subr.bf16.mxu0 0
        %2011 = vmatpush2.bf16.msra.mxu0 0
        %2012 = vmatprep.subr.bf16.mxu0 0
        %2013 = vmatpush2.bf16.msra.mxu0 0
        %2014 = vmatprep.subr.bf16.mxu0 0
        %2015 = vmatpush2.bf16.msra.mxu0 0
        %2016 = vmatprep.subr.bf16.mxu0 0
        %2017 = vmatpush2.bf16.msra.mxu0 0
        %2018 = vmatprep.subr.bf16.mxu0 0
        %2019 = vmatpush2.bf16.msra.mxu0 0
        %2020 = vmatprep.subr.bf16.mxu0 0
        %2021 = vmatpush2.bf16.msra.mxu0 0
        %2022 = vmatprep.subr.bf16.mxu0 0
        %2023 = vmatpush2.bf16.msra.mxu0 0
        %2024 = vmatprep.mubr.bf16.mxu0 0
        %2025 = vmatmul.mubr.bf16.gmra.mxu0 %v1990
        %v2026 = vpop.f32.mrf.mxu0
        %v2027 = vadd.f32 0.0, %v2026
        %v2028 = vpop.f32.mrf.mxu0
        %v2029 = vpop.f32.mrf.mxu0
        %v2030 = vpop.f32.mrf.mxu0
        %2031 = vdwg.mxu0
        %v2034 = vunpack.c.l.b16 %v1734
        %v2035 = vunpack.c.l.b16 %v1735
        %v2036 = vpack.c.b16 %v2035, %v2034
        %v2039 = vsel %vm876, %v1717, 0
        %2041 = vmatprep.subr.bf16.mxu0 0
        %2042 = vmatpush1.bf16.msra.mxu0 0
        %2043 = vmatprep.subr.bf16.mxu0 0
        %2044 = vmatpush1.bf16.msra.mxu0 0
        %2045 = vmatprep.subr.bf16.mxu0 0
        %2046 = vmatpush1.bf16.msra.mxu0 0
        %2047 = vmatprep.subr.bf16.mxu0 0
        %2048 = vmatpush1.bf16.msra.mxu0 0
        %2049 = vmatprep.subr.bf16.mxu0 0
        %2050 = vmatpush1.bf16.msra.mxu0 0
        %2051 = vmatprep.subr.bf16.mxu0 0
        %2052 = vmatpush1.bf16.msra.mxu0 0
        %2053 = vmatprep.subr.bf16.mxu0 0
        %2054 = vmatpush1.bf16.msra.mxu0 0
        %2055 = vmatprep.subr.bf16.mxu0 0
        %2056 = vmatpush1.bf16.msra.mxu0 %v2036
        %2057 = vmatprep.subr.bf16.mxu0 0
        %2058 = vmatpush2.bf16.msra.mxu0 0
        %2059 = vmatprep.subr.bf16.mxu0 0
        %2060 = vmatpush2.bf16.msra.mxu0 0
        %2061 = vmatprep.subr.bf16.mxu0 0
        %2062 = vmatpush2.bf16.msra.mxu0 0
        %2063 = vmatprep.subr.bf16.mxu0 0
        %2064 = vmatpush2.bf16.msra.mxu0 0
        %2065 = vmatprep.subr.bf16.mxu0 0
        %2066 = vmatpush2.bf16.msra.mxu0 0
        %2067 = vmatprep.subr.bf16.mxu0 0
        %2068 = vmatpush2.bf16.msra.mxu0 0
        %2069 = vmatprep.subr.bf16.mxu0 0
        %2070 = vmatpush2.bf16.msra.mxu0 0
        %2071 = vmatprep.subr.bf16.mxu0 0
        %2072 = vmatpush2.bf16.msra.mxu0 0
        %2073 = vmatprep.mubr.bf16.mxu0 0
        %2074 = vmatmul.mubr.bf16.gmra.mxu0 %v2039
        %v2075 = vpop.f32.mrf.mxu0
        %v2076 = vadd.f32 0.0, %v2075
        %v2077 = vpop.f32.mrf.mxu0
        %v2078 = vpop.f32.mrf.mxu0
        %v2079 = vpop.f32.mrf.mxu0
        %2080 = vdwg.mxu0
        %v2083 = vunpack.c.l.b16 %v1736
        %v2084 = vunpack.c.l.b16 %v1737
        %v2085 = vpack.c.b16 %v2084, %v2083
        %v2088 = vsel %vm876, %v1718, 0
        %2090 = vmatprep.subr.bf16.mxu0 0
        %2091 = vmatpush1.bf16.msra.mxu0 0
        %2092 = vmatprep.subr.bf16.mxu0 0
        %2093 = vmatpush1.bf16.msra.mxu0 0
        %2094 = vmatprep.subr.bf16.mxu0 0
        %2095 = vmatpush1.bf16.msra.mxu0 0
        %2096 = vmatprep.subr.bf16.mxu0 0
        %2097 = vmatpush1.bf16.msra.mxu0 0
        %2098 = vmatprep.subr.bf16.mxu0 0
        %2099 = vmatpush1.bf16.msra.mxu0 0
        %2100 = vmatprep.subr.bf16.mxu0 0
        %2101 = vmatpush1.bf16.msra.mxu0 0
        %2102 = vmatprep.subr.bf16.mxu0 0
        %2103 = vmatpush1.bf16.msra.mxu0 0
        %2104 = vmatprep.subr.bf16.mxu0 0
        %2105 = vmatpush1.bf16.msra.mxu0 %v2085
        %2106 = vmatprep.subr.bf16.mxu0 0
        %2107 = vmatpush2.bf16.msra.mxu0 0
        %2108 = vmatprep.subr.bf16.mxu0 0
        %2109 = vmatpush2.bf16.msra.mxu0 0
        %2110 = vmatprep.subr.bf16.mxu0 0
        %2111 = vmatpush2.bf16.msra.mxu0 0
        %2112 = vmatprep.subr.bf16.mxu0 0
        %2113 = vmatpush2.bf16.msra.mxu0 0
        %2114 = vmatprep.subr.bf16.mxu0 0
        %2115 = vmatpush2.bf16.msra.mxu0 0
        %2116 = vmatprep.subr.bf16.mxu0 0
        %2117 = vmatpush2.bf16.msra.mxu0 0
        %2118 = vmatprep.subr.bf16.mxu0 0
        %2119 = vmatpush2.bf16.msra.mxu0 0
        %2120 = vmatprep.subr.bf16.mxu0 0
        %2121 = vmatpush2.bf16.msra.mxu0 0
        %2122 = vmatprep.mubr.bf16.mxu0 0
        %2123 = vmatmul.mubr.bf16.gmra.mxu0 %v2088
        %v2124 = vpop.f32.mrf.mxu0
        %v2125 = vadd.f32 0.0, %v2124
        %v2126 = vpop.f32.mrf.mxu0
        %v2127 = vpop.f32.mrf.mxu0
        %v2128 = vpop.f32.mrf.mxu0
        %2129 = vdwg.mxu0
        %v2130 = vadd.f32 %v1782, %v1831
        %v2131 = vadd.f32 %v2130, %v1880
        %v2132 = vadd.f32 %v2131, %v1929
        %v2133 = vadd.f32 %v2132, %v1978
        %v2134 = vadd.f32 %v2133, %v2027
        %v2135 = vadd.f32 %v2134, %v2076
        %v2136 = vadd.f32 %v2135, %v2125
        %s2137 = scalar_lea.vmem %s5, %s36
        %v2138 = vld [vmem:[%s2137] sm:$0x1]
        %v2140 = vlaneseq
        %v2141 = vshrl.u32 %v2140, 7
        %v2142 = vsub.s32 0, %v2141
        %v2143 = vrot.slane %v2138, %v2142
        %v2145 = vadd.f32 %v2136, %v2143
        %v2146 = vadd.f32 %v555, %v2145
        %2147 = vadd.xlane.f32.xlu0 %v2146
        %v2148 = vpop.xlane.xlu0 %2147
        %v2149 = vrcp.pop 128.0
        %v2150 = vmul.f32 %v2148, %v2149
        %v2151 = vsub.f32 %v2146, %v2150
        %v2152 = vmul.f32 %v2151, %v2151
        %2153 = vadd.xlane.f32.xlu0 %v2152
        %v2154 = vpop.xlane.xlu0 %2153
        %v2155 = vmul.f32 %v2154, %v2149
        %v2156 = vadd.f32 %v2155, 1e-06
        %v2157 = vrsqrt.pop %v2156
        %v2158 = vmul.f32 %v2151, %v2157
        %s2159 = scalar_lea.vmem %s6, %s36
        %v2160 = vld [vmem:[%s2159] sm:$0x1]
        %v2162 = vlaneseq
        %v2163 = vshrl.u32 %v2162, 7
        %v2164 = vsub.s32 0, %v2163
        %v2165 = vrot.slane %v2160, %v2164
        %v2167 = vmul.f32 %v2158, %v2165
        %s2168 = scalar_lea.vmem %s7, %s36
        %v2169 = vld [vmem:[%s2168] sm:$0x1]
        %v2171 = vlaneseq
        %v2172 = vshrl.u32 %v2171, 7
        %v2173 = vsub.s32 0, %v2172
        %v2174 = vrot.slane %v2169, %v2173
        %v2176 = vadd.f32 %v2167, %v2174
        %v2177 = vpack.c.bf16 %v2176, %v2176
        %s2178 = smul.u32 %s36, 64
        %s2179 = smul.addr %s2178, 4
        %s2180 = scalar_lea.vmem [#allocation7], %s2179
        %v2181 = vld [vmem:[%s2180] sm:$0xff]
        %v2182 = vld [vmem:[%s2180 + $0x8] sm:$0xff]
        %v2183 = vld [vmem:[%s2180 + $0x10] sm:$0xff]
        %v2184 = vld [vmem:[%s2180 + $0x18] sm:$0xff]
        %v2185 = vld [vmem:[%s2180 + $0x20] sm:$0xff]
        %v2186 = vld [vmem:[%s2180 + $0x28] sm:$0xff]
        %v2187 = vld [vmem:[%s2180 + $0x30] sm:$0xff]
        %v2188 = vld [vmem:[%s2180 + $0x38] sm:$0xff]
        %v2189 = vld [vmem:[%s2180 + $0x40] sm:$0xff]
        %v2190 = vld [vmem:[%s2180 + $0x48] sm:$0xff]
        %v2191 = vld [vmem:[%s2180 + $0x50] sm:$0xff]
        %v2192 = vld [vmem:[%s2180 + $0x58] sm:$0xff]
        %v2193 = vld [vmem:[%s2180 + $0x60] sm:$0xff]
        %v2194 = vld [vmem:[%s2180 + $0x68] sm:$0xff]
        %v2195 = vld [vmem:[%s2180 + $0x70] sm:$0xff]
        %v2196 = vld [vmem:[%s2180 + $0x78] sm:$0xff]
        %v2197 = vld [vmem:[%s2180 + $0x80] sm:$0xff]
        %v2198 = vld [vmem:[%s2180 + $0x88] sm:$0xff]
        %v2199 = vld [vmem:[%s2180 + $0x90] sm:$0xff]
        %v2200 = vld [vmem:[%s2180 + $0x98] sm:$0xff]
        %v2201 = vld [vmem:[%s2180 + $0xa0] sm:$0xff]
        %v2202 = vld [vmem:[%s2180 + $0xa8] sm:$0xff]
        %v2203 = vld [vmem:[%s2180 + $0xb0] sm:$0xff]
        %v2204 = vld [vmem:[%s2180 + $0xb8] sm:$0xff]
        %v2205 = vld [vmem:[%s2180 + $0xc0] sm:$0xff]
        %v2206 = vld [vmem:[%s2180 + $0xc8] sm:$0xff]
        %v2207 = vld [vmem:[%s2180 + $0xd0] sm:$0xff]
        %v2208 = vld [vmem:[%s2180 + $0xd8] sm:$0xff]
        %v2209 = vld [vmem:[%s2180 + $0xe0] sm:$0xff]
        %v2210 = vld [vmem:[%s2180 + $0xe8] sm:$0xff]
        %v2211 = vld [vmem:[%s2180 + $0xf0] sm:$0xff]
        %v2212 = vld [vmem:[%s2180 + $0xf8] sm:$0xff]
        %s2213 = smul.u32 %s36, 4
        %s2214 = scalar_lea.vmem %s9, %s2213
        %v2215 = vld [vmem:[%s2214] sm:$0xf]
        %v2217 = vlaneseq
        %v2218 = vshrl.u32 %v2217, 7
        %v2219 = vsub.s32 0, %v2218
        %v2220 = vrot.slane %v2215, %v2219
        %v2221 = vlaneseq
        %v2222 = vshrl.u32 %v2221, 7
        %v2223 = vsub.s32 1, %v2222
        %v2224 = vrot.slane %v2215, %v2223
        %v2225 = vlaneseq
        %v2226 = vshrl.u32 %v2225, 7
        %v2227 = vsub.s32 2, %v2226
        %v2228 = vrot.slane %v2215, %v2227
        %v2229 = vlaneseq
        %v2230 = vshrl.u32 %v2229, 7
        %v2231 = vsub.s32 3, %v2230
        %v2232 = vrot.slane %v2215, %v2231
        %v2269 = vunpack.c.l.b16 %v2181
        %v2270 = vunpack.c.h.b16 %v2181
        %v2271 = vunpack.c.l.b16 %v2182
        %v2272 = vunpack.c.h.b16 %v2182
        %v2273 = vunpack.c.l.b16 %v2183
        %v2274 = vunpack.c.h.b16 %v2183
        %v2275 = vunpack.c.l.b16 %v2184
        %v2276 = vunpack.c.h.b16 %v2184
        %v2277 = vunpack.c.l.b16 %v2185
        %v2278 = vunpack.c.h.b16 %v2185
        %v2279 = vunpack.c.l.b16 %v2186
        %v2280 = vunpack.c.h.b16 %v2186
        %v2281 = vunpack.c.l.b16 %v2187
        %v2282 = vunpack.c.h.b16 %v2187
        %v2283 = vunpack.c.l.b16 %v2188
        %v2284 = vunpack.c.h.b16 %v2188
        %v2285 = vunpack.c.l.b16 %v2189
        %v2286 = vunpack.c.h.b16 %v2189
        %v2287 = vunpack.c.l.b16 %v2190
        %v2288 = vunpack.c.h.b16 %v2190
        %v2289 = vunpack.c.l.b16 %v2191
        %v2290 = vunpack.c.h.b16 %v2191
        %v2291 = vunpack.c.l.b16 %v2192
        %v2292 = vunpack.c.h.b16 %v2192
        %v2293 = vunpack.c.l.b16 %v2193
        %v2294 = vunpack.c.h.b16 %v2193
        %v2295 = vunpack.c.l.b16 %v2194
        %v2296 = vunpack.c.h.b16 %v2194
        %v2297 = vunpack.c.l.b16 %v2195
        %v2298 = vunpack.c.h.b16 %v2195
        %v2299 = vunpack.c.l.b16 %v2196
        %v2300 = vunpack.c.h.b16 %v2196
        %v2301 = vunpack.c.l.b16 %v2197
        %v2302 = vunpack.c.h.b16 %v2197
        %v2303 = vunpack.c.l.b16 %v2198
        %v2304 = vunpack.c.h.b16 %v2198
        %v2305 = vunpack.c.l.b16 %v2199
        %v2306 = vunpack.c.h.b16 %v2199
        %v2307 = vunpack.c.l.b16 %v2200
        %v2308 = vunpack.c.h.b16 %v2200
        %v2309 = vunpack.c.l.b16 %v2201
        %v2310 = vunpack.c.h.b16 %v2201
        %v2311 = vunpack.c.l.b16 %v2202
        %v2312 = vunpack.c.h.b16 %v2202
        %v2313 = vunpack.c.l.b16 %v2203
        %v2314 = vunpack.c.h.b16 %v2203
        %v2315 = vunpack.c.l.b16 %v2204
        %v2316 = vunpack.c.h.b16 %v2204
        %v2317 = vunpack.c.l.b16 %v2205
        %v2318 = vunpack.c.h.b16 %v2205
        %v2319 = vunpack.c.l.b16 %v2206
        %v2320 = vunpack.c.h.b16 %v2206
        %v2321 = vunpack.c.l.b16 %v2207
        %v2322 = vunpack.c.h.b16 %v2207
        %v2323 = vunpack.c.l.b16 %v2208
        %v2324 = vunpack.c.h.b16 %v2208
        %v2325 = vunpack.c.l.b16 %v2209
        %v2326 = vunpack.c.h.b16 %v2209
        %v2327 = vunpack.c.l.b16 %v2210
        %v2328 = vunpack.c.h.b16 %v2210
        %v2329 = vunpack.c.l.b16 %v2211
        %v2330 = vunpack.c.h.b16 %v2211
        %v2331 = vunpack.c.l.b16 %v2212
        %v2332 = vunpack.c.h.b16 %v2212
        %v2333 = vpack.c.b16 %v2273, %v2269
        %v2334 = vpack.c.b16 %v2274, %v2270
        %v2335 = vpack.c.b16 %v2275, %v2271
        %v2336 = vpack.c.b16 %v2276, %v2272
        %v2337 = vpack.c.b16 %v2281, %v2277
        %v2338 = vpack.c.b16 %v2282, %v2278
        %v2339 = vpack.c.b16 %v2283, %v2279
        %v2340 = vpack.c.b16 %v2284, %v2280
        %v2341 = vpack.c.b16 %v2289, %v2285
        %v2342 = vpack.c.b16 %v2290, %v2286
        %v2343 = vpack.c.b16 %v2291, %v2287
        %v2344 = vpack.c.b16 %v2292, %v2288
        %v2345 = vpack.c.b16 %v2297, %v2293
        %v2346 = vpack.c.b16 %v2298, %v2294
        %v2347 = vpack.c.b16 %v2299, %v2295
        %v2348 = vpack.c.b16 %v2300, %v2296
        %v2349 = vpack.c.b16 %v2305, %v2301
        %v2350 = vpack.c.b16 %v2306, %v2302
        %v2351 = vpack.c.b16 %v2307, %v2303
        %v2352 = vpack.c.b16 %v2308, %v2304
        %v2353 = vpack.c.b16 %v2313, %v2309
        %v2354 = vpack.c.b16 %v2314, %v2310
        %v2355 = vpack.c.b16 %v2315, %v2311
        %v2356 = vpack.c.b16 %v2316, %v2312
        %v2357 = vpack.c.b16 %v2321, %v2317
        %v2358 = vpack.c.b16 %v2322, %v2318
        %v2359 = vpack.c.b16 %v2323, %v2319
        %v2360 = vpack.c.b16 %v2324, %v2320
        %v2361 = vpack.c.b16 %v2329, %v2325
        %v2362 = vpack.c.b16 %v2330, %v2326
        %v2363 = vpack.c.b16 %v2331, %v2327
        %v2364 = vpack.c.b16 %v2332, %v2328
        %2397 = vmatprep.subr.bf16.mxu0 %v2362
        %2398 = vmatpush1.bf16.msra.mxu0 %v2361
        %2399 = vmatprep.subr.bf16.mxu0 %v2358
        %2400 = vmatpush1.bf16.msra.mxu0 %v2357
        %2401 = vmatprep.subr.bf16.mxu0 %v2354
        %2402 = vmatpush1.bf16.msra.mxu0 %v2353
        %2403 = vmatprep.subr.bf16.mxu0 %v2350
        %2404 = vmatpush1.bf16.msra.mxu0 %v2349
        %2405 = vmatprep.subr.bf16.mxu0 %v2346
        %2406 = vmatpush1.bf16.msra.mxu0 %v2345
        %2407 = vmatprep.subr.bf16.mxu0 %v2342
        %2408 = vmatpush1.bf16.msra.mxu0 %v2341
        %2409 = vmatprep.subr.bf16.mxu0 %v2338
        %2410 = vmatpush1.bf16.msra.mxu0 %v2337
        %2411 = vmatprep.subr.bf16.mxu0 %v2334
        %2412 = vmatpush1.bf16.msra.mxu0 %v2333
        %2413 = vmatprep.subr.bf16.mxu0 0
        %2414 = vmatpush2.bf16.msra.mxu0 0
        %2415 = vmatprep.subr.bf16.mxu0 0
        %2416 = vmatpush2.bf16.msra.mxu0 0
        %2417 = vmatprep.subr.bf16.mxu0 0
        %2418 = vmatpush2.bf16.msra.mxu0 0
        %2419 = vmatprep.subr.bf16.mxu0 0
        %2420 = vmatpush2.bf16.msra.mxu0 0
        %2421 = vmatprep.subr.bf16.mxu0 0
        %2422 = vmatpush2.bf16.msra.mxu0 0
        %2423 = vmatprep.subr.bf16.mxu0 0
        %2424 = vmatpush2.bf16.msra.mxu0 0
        %2425 = vmatprep.subr.bf16.mxu0 0
        %2426 = vmatpush2.bf16.msra.mxu0 0
        %2427 = vmatprep.subr.bf16.mxu0 0
        %2428 = vmatpush2.bf16.msra.mxu0 0
        %2429 = vmatprep.mubr.bf16.mxu0 0
        %2430 = vmatmul.mubr.bf16.gmra.mxu0 %v2177
        %v2431 = vpop.f32.mrf.mxu0
        %v2432 = vadd.f32 %v2220, %v2431
        %v2433 = vpop.f32.mrf.mxu0
        %v2434 = vadd.f32 %v2224, %v2433
        %v2435 = vpop.f32.mrf.mxu0
        %v2436 = vpop.f32.mrf.mxu0
        %2437 = vdwg.mxu0
        %2438 = vmatprep.subr.bf16.mxu0 %v2364
        %2439 = vmatpush1.bf16.msra.mxu0 %v2363
        %2440 = vmatprep.subr.bf16.mxu0 %v2360
        %2441 = vmatpush1.bf16.msra.mxu0 %v2359
        %2442 = vmatprep.subr.bf16.mxu0 %v2356
        %2443 = vmatpush1.bf16.msra.mxu0 %v2355
        %2444 = vmatprep.subr.bf16.mxu0 %v2352
        %2445 = vmatpush1.bf16.msra.mxu0 %v2351
        %2446 = vmatprep.subr.bf16.mxu0 %v2348
        %2447 = vmatpush1.bf16.msra.mxu0 %v2347
        %2448 = vmatprep.subr.bf16.mxu0 %v2344
        %2449 = vmatpush1.bf16.msra.mxu0 %v2343
        %2450 = vmatprep.subr.bf16.mxu0 %v2340
        %2451 = vmatpush1.bf16.msra.mxu0 %v2339
        %2452 = vmatprep.subr.bf16.mxu0 %v2336
        %2453 = vmatpush1.bf16.msra.mxu0 %v2335
        %2454 = vmatprep.subr.bf16.mxu0 0
        %2455 = vmatpush2.bf16.msra.mxu0 0
        %2456 = vmatprep.subr.bf16.mxu0 0
        %2457 = vmatpush2.bf16.msra.mxu0 0
        %2458 = vmatprep.subr.bf16.mxu0 0
        %2459 = vmatpush2.bf16.msra.mxu0 0
        %2460 = vmatprep.subr.bf16.mxu0 0
        %2461 = vmatpush2.bf16.msra.mxu0 0
        %2462 = vmatprep.subr.bf16.mxu0 0
        %2463 = vmatpush2.bf16.msra.mxu0 0
        %2464 = vmatprep.subr.bf16.mxu0 0
        %2465 = vmatpush2.bf16.msra.mxu0 0
        %2466 = vmatprep.subr.bf16.mxu0 0
        %2467 = vmatpush2.bf16.msra.mxu0 0
        %2468 = vmatprep.subr.bf16.mxu0 0
        %2469 = vmatpush2.bf16.msra.mxu0 0
        %2470 = vmatprep.mubr.bf16.mxu0 0
        %2471 = vmatmul.mubr.bf16.gmra.mxu0 %v2177
        %v2472 = vpop.f32.mrf.mxu0
        %v2473 = vadd.f32 %v2228, %v2472
        %v2474 = vpop.f32.mrf.mxu0
        %v2475 = vadd.f32 %v2232, %v2474
        %v2476 = vpop.f32.mrf.mxu0
        %v2477 = vpop.f32.mrf.mxu0
        %2478 = vdwg.mxu0
        %v2479 = vmax.f32 %v2432, 0.0
        %v2480 = vmax.f32 %v2434, 0.0
        %v2481 = vmax.f32 %v2473, 0.0
        %v2482 = vmax.f32 %v2475, 0.0
        %v2483 = vpack.c.bf16 %v2479, %v2479
        %v2484 = vpack.c.bf16 %v2480, %v2480
        %v2485 = vpack.c.bf16 %v2481, %v2481
        %v2486 = vpack.c.bf16 %v2482, %v2482
        %s2487 = smul.addr %s2178, 4
        %s2488 = scalar_lea.vmem [#allocation8], %s2487
        %v2489 = vld [vmem:[%s2488] sm:$0xf]
        %v2490 = vld [vmem:[%s2488 + $0x4] sm:$0xf]
        %v2491 = vld [vmem:[%s2488 + $0x8] sm:$0xf]
        %v2492 = vld [vmem:[%s2488 + $0xc] sm:$0xf]
        %v2493 = vld [vmem:[%s2488 + $0x10] sm:$0xf]
        %v2494 = vld [vmem:[%s2488 + $0x14] sm:$0xf]
        %v2495 = vld [vmem:[%s2488 + $0x18] sm:$0xf]
        %v2496 = vld [vmem:[%s2488 + $0x1c] sm:$0xf]
        %v2497 = vld [vmem:[%s2488 + $0x20] sm:$0xf]
        %v2498 = vld [vmem:[%s2488 + $0x24] sm:$0xf]
        %v2499 = vld [vmem:[%s2488 + $0x28] sm:$0xf]
        %v2500 = vld [vmem:[%s2488 + $0x2c] sm:$0xf]
        %v2501 = vld [vmem:[%s2488 + $0x30] sm:$0xf]
        %v2502 = vld [vmem:[%s2488 + $0x34] sm:$0xf]
        %v2503 = vld [vmem:[%s2488 + $0x38] sm:$0xf]
        %v2504 = vld [vmem:[%s2488 + $0x3c] sm:$0xf]
        %v2505 = vld [vmem:[%s2488 + $0x40] sm:$0xf]
        %v2506 = vld [vmem:[%s2488 + $0x44] sm:$0xf]
        %v2507 = vld [vmem:[%s2488 + $0x48] sm:$0xf]
        %v2508 = vld [vmem:[%s2488 + $0x4c] sm:$0xf]
        %v2509 = vld [vmem:[%s2488 + $0x50] sm:$0xf]
        %v2510 = vld [vmem:[%s2488 + $0x54] sm:$0xf]
        %v2511 = vld [vmem:[%s2488 + $0x58] sm:$0xf]
        %v2512 = vld [vmem:[%s2488 + $0x5c] sm:$0xf]
        %v2513 = vld [vmem:[%s2488 + $0x60] sm:$0xf]
        %v2514 = vld [vmem:[%s2488 + $0x64] sm:$0xf]
        %v2515 = vld [vmem:[%s2488 + $0x68] sm:$0xf]
        %v2516 = vld [vmem:[%s2488 + $0x6c] sm:$0xf]
        %v2517 = vld [vmem:[%s2488 + $0x70] sm:$0xf]
        %v2518 = vld [vmem:[%s2488 + $0x74] sm:$0xf]
        %v2519 = vld [vmem:[%s2488 + $0x78] sm:$0xf]
        %v2520 = vld [vmem:[%s2488 + $0x7c] sm:$0xf]
        %v2521 = vld [vmem:[%s2488 + $0x80] sm:$0xf]
        %v2522 = vld [vmem:[%s2488 + $0x84] sm:$0xf]
        %v2523 = vld [vmem:[%s2488 + $0x88] sm:$0xf]
        %v2524 = vld [vmem:[%s2488 + $0x8c] sm:$0xf]
        %v2525 = vld [vmem:[%s2488 + $0x90] sm:$0xf]
        %v2526 = vld [vmem:[%s2488 + $0x94] sm:$0xf]
        %v2527 = vld [vmem:[%s2488 + $0x98] sm:$0xf]
        %v2528 = vld [vmem:[%s2488 + $0x9c] sm:$0xf]
        %v2529 = vld [vmem:[%s2488 + $0xa0] sm:$0xf]
        %v2530 = vld [vmem:[%s2488 + $0xa4] sm:$0xf]
        %v2531 = vld [vmem:[%s2488 + $0xa8] sm:$0xf]
        %v2532 = vld [vmem:[%s2488 + $0xac] sm:$0xf]
        %v2533 = vld [vmem:[%s2488 + $0xb0] sm:$0xf]
        %v2534 = vld [vmem:[%s2488 + $0xb4] sm:$0xf]
        %v2535 = vld [vmem:[%s2488 + $0xb8] sm:$0xf]
        %v2536 = vld [vmem:[%s2488 + $0xbc] sm:$0xf]
        %v2537 = vld [vmem:[%s2488 + $0xc0] sm:$0xf]
        %v2538 = vld [vmem:[%s2488 + $0xc4] sm:$0xf]
        %v2539 = vld [vmem:[%s2488 + $0xc8] sm:$0xf]
        %v2540 = vld [vmem:[%s2488 + $0xcc] sm:$0xf]
        %v2541 = vld [vmem:[%s2488 + $0xd0] sm:$0xf]
        %v2542 = vld [vmem:[%s2488 + $0xd4] sm:$0xf]
        %v2543 = vld [vmem:[%s2488 + $0xd8] sm:$0xf]
        %v2544 = vld [vmem:[%s2488 + $0xdc] sm:$0xf]
        %v2545 = vld [vmem:[%s2488 + $0xe0] sm:$0xf]
        %v2546 = vld [vmem:[%s2488 + $0xe4] sm:$0xf]
        %v2547 = vld [vmem:[%s2488 + $0xe8] sm:$0xf]
        %v2548 = vld [vmem:[%s2488 + $0xec] sm:$0xf]
        %v2549 = vld [vmem:[%s2488 + $0xf0] sm:$0xf]
        %v2550 = vld [vmem:[%s2488 + $0xf4] sm:$0xf]
        %v2551 = vld [vmem:[%s2488 + $0xf8] sm:$0xf]
        %v2552 = vld [vmem:[%s2488 + $0xfc] sm:$0xf]
        %s2553 = scalar_lea.vmem %s11, %s36
        %v2554 = vld [vmem:[%s2553] sm:$0x1]
        %v2556 = vlaneseq
        %v2557 = vshrl.u32 %v2556, 7
        %v2558 = vsub.s32 0, %v2557
        %v2559 = vrot.slane %v2554, %v2558
        %v2625 = vunpack.c.l.b16 %v2489
        %v2626 = vunpack.c.l.b16 %v2490
        %v2627 = vunpack.c.l.b16 %v2491
        %v2628 = vunpack.c.l.b16 %v2492
        %v2629 = vunpack.c.l.b16 %v2493
        %v2630 = vunpack.c.l.b16 %v2494
        %v2631 = vunpack.c.l.b16 %v2495
        %v2632 = vunpack.c.l.b16 %v2496
        %v2633 = vunpack.c.l.b16 %v2497
        %v2634 = vunpack.c.l.b16 %v2498
        %v2635 = vunpack.c.l.b16 %v2499
        %v2636 = vunpack.c.l.b16 %v2500
        %v2637 = vunpack.c.l.b16 %v2501
        %v2638 = vunpack.c.l.b16 %v2502
        %v2639 = vunpack.c.l.b16 %v2503
        %v2640 = vunpack.c.l.b16 %v2504
        %v2641 = vunpack.c.l.b16 %v2505
        %v2642 = vunpack.c.l.b16 %v2506
        %v2643 = vunpack.c.l.b16 %v2507
        %v2644 = vunpack.c.l.b16 %v2508
        %v2645 = vunpack.c.l.b16 %v2509
        %v2646 = vunpack.c.l.b16 %v2510
        %v2647 = vunpack.c.l.b16 %v2511
        %v2648 = vunpack.c.l.b16 %v2512
        %v2649 = vunpack.c.l.b16 %v2513
        %v2650 = vunpack.c.l.b16 %v2514
        %v2651 = vunpack.c.l.b16 %v2515
        %v2652 = vunpack.c.l.b16 %v2516
        %v2653 = vunpack.c.l.b16 %v2517
        %v2654 = vunpack.c.l.b16 %v2518
        %v2655 = vunpack.c.l.b16 %v2519
        %v2656 = vunpack.c.l.b16 %v2520
        %v2657 = vunpack.c.l.b16 %v2521
        %v2658 = vunpack.c.l.b16 %v2522
        %v2659 = vunpack.c.l.b16 %v2523
        %v2660 = vunpack.c.l.b16 %v2524
        %v2661 = vunpack.c.l.b16 %v2525
        %v2662 = vunpack.c.l.b16 %v2526
        %v2663 = vunpack.c.l.b16 %v2527
        %v2664 = vunpack.c.l.b16 %v2528
        %v2665 = vunpack.c.l.b16 %v2529
        %v2666 = vunpack.c.l.b16 %v2530
        %v2667 = vunpack.c.l.b16 %v2531
        %v2668 = vunpack.c.l.b16 %v2532
        %v2669 = vunpack.c.l.b16 %v2533
        %v2670 = vunpack.c.l.b16 %v2534
        %v2671 = vunpack.c.l.b16 %v2535
        %v2672 = vunpack.c.l.b16 %v2536
        %v2673 = vunpack.c.l.b16 %v2537
        %v2674 = vunpack.c.l.b16 %v2538
        %v2675 = vunpack.c.l.b16 %v2539
        %v2676 = vunpack.c.l.b16 %v2540
        %v2677 = vunpack.c.l.b16 %v2541
        %v2678 = vunpack.c.l.b16 %v2542
        %v2679 = vunpack.c.l.b16 %v2543
        %v2680 = vunpack.c.l.b16 %v2544
        %v2681 = vunpack.c.l.b16 %v2545
        %v2682 = vunpack.c.l.b16 %v2546
        %v2683 = vunpack.c.l.b16 %v2547
        %v2684 = vunpack.c.l.b16 %v2548
        %v2685 = vunpack.c.l.b16 %v2549
        %v2686 = vunpack.c.l.b16 %v2550
        %v2687 = vunpack.c.l.b16 %v2551
        %v2688 = vunpack.c.l.b16 %v2552
        %v2689 = vpack.c.b16 %v2626, %v2625
        %v2690 = vpack.c.b16 %v2628, %v2627
        %v2691 = vpack.c.b16 %v2630, %v2629
        %v2692 = vpack.c.b16 %v2632, %v2631
        %v2693 = vpack.c.b16 %v2634, %v2633
        %v2694 = vpack.c.b16 %v2636, %v2635
        %v2695 = vpack.c.b16 %v2638, %v2637
        %v2696 = vpack.c.b16 %v2640, %v2639
        %v2697 = vpack.c.b16 %v2642, %v2641
        %v2698 = vpack.c.b16 %v2644, %v2643
        %v2699 = vpack.c.b16 %v2646, %v2645
        %v2700 = vpack.c.b16 %v2648, %v2647
        %v2701 = vpack.c.b16 %v2650, %v2649
        %v2702 = vpack.c.b16 %v2652, %v2651
        %v2703 = vpack.c.b16 %v2654, %v2653
        %v2704 = vpack.c.b16 %v2656, %v2655
        %v2705 = vpack.c.b16 %v2658, %v2657
        %v2706 = vpack.c.b16 %v2660, %v2659
        %v2707 = vpack.c.b16 %v2662, %v2661
        %v2708 = vpack.c.b16 %v2664, %v2663
        %v2709 = vpack.c.b16 %v2666, %v2665
        %v2710 = vpack.c.b16 %v2668, %v2667
        %v2711 = vpack.c.b16 %v2670, %v2669
        %v2712 = vpack.c.b16 %v2672, %v2671
        %v2713 = vpack.c.b16 %v2674, %v2673
        %v2714 = vpack.c.b16 %v2676, %v2675
        %v2715 = vpack.c.b16 %v2678, %v2677
        %v2716 = vpack.c.b16 %v2680, %v2679
        %v2717 = vpack.c.b16 %v2682, %v2681
        %v2718 = vpack.c.b16 %v2684, %v2683
        %v2719 = vpack.c.b16 %v2686, %v2685
        %v2720 = vpack.c.b16 %v2688, %v2687
        %2753 = vmatprep.subr.bf16.mxu0 0
        %2754 = vmatpush1.bf16.msra.mxu0 %v2696
        %2755 = vmatprep.subr.bf16.mxu0 0
        %2756 = vmatpush1.bf16.msra.mxu0 %v2695
        %2757 = vmatprep.subr.bf16.mxu0 0
        %2758 = vmatpush1.bf16.msra.mxu0 %v2694
        %2759 = vmatprep.subr.bf16.mxu0 0
        %2760 = vmatpush1.bf16.msra.mxu0 %v2693
        %2761 = vmatprep.subr.bf16.mxu0 0
        %2762 = vmatpush1.bf16.msra.mxu0 %v2692
        %2763 = vmatprep.subr.bf16.mxu0 0
        %2764 = vmatpush1.bf16.msra.mxu0 %v2691
        %2765 = vmatprep.subr.bf16.mxu0 0
        %2766 = vmatpush1.bf16.msra.mxu0 %v2690
        %2767 = vmatprep.subr.bf16.mxu0 0
        %2768 = vmatpush1.bf16.msra.mxu0 %v2689
        %2769 = vmatprep.subr.bf16.mxu0 0
        %2770 = vmatpush2.bf16.msra.mxu0 %v2704
        %2771 = vmatprep.subr.bf16.mxu0 0
        %2772 = vmatpush2.bf16.msra.mxu0 %v2703
        %2773 = vmatprep.subr.bf16.mxu0 0
        %2774 = vmatpush2.bf16.msra.mxu0 %v2702
        %2775 = vmatprep.subr.bf16.mxu0 0
        %2776 = vmatpush2.bf16.msra.mxu0 %v2701
        %2777 = vmatprep.subr.bf16.mxu0 0
        %2778 = vmatpush2.bf16.msra.mxu0 %v2700
        %2779 = vmatprep.subr.bf16.mxu0 0
        %2780 = vmatpush2.bf16.msra.mxu0 %v2699
        %2781 = vmatprep.subr.bf16.mxu0 0
        %2782 = vmatpush2.bf16.msra.mxu0 %v2698
        %2783 = vmatprep.subr.bf16.mxu0 0
        %2784 = vmatpush2.bf16.msra.mxu0 %v2697
        %2785 = vmatprep.mubr.bf16.mxu0 %v2484
        %2786 = vmatmul.mubr.bf16.gmra.mxu0 %v2483
        %v2787 = vpop.f32.mrf.mxu0
        %v2788 = vadd.f32 %v2559, %v2787
        %v2789 = vpop.f32.mrf.mxu0
        %v2790 = vpop.f32.mrf.mxu0
        %v2791 = vpop.f32.mrf.mxu0
        %2792 = vdwg.mxu0
        %2793 = vmatprep.subr.bf16.mxu0 0
        %2794 = vmatpush1.bf16.msra.mxu0 %v2712
        %2795 = vmatprep.subr.bf16.mxu0 0
        %2796 = vmatpush1.bf16.msra.mxu0 %v2711
        %2797 = vmatprep.subr.bf16.mxu0 0
        %2798 = vmatpush1.bf16.msra.mxu0 %v2710
        %2799 = vmatprep.subr.bf16.mxu0 0
        %2800 = vmatpush1.bf16.msra.mxu0 %v2709
        %2801 = vmatprep.subr.bf16.mxu0 0
        %2802 = vmatpush1.bf16.msra.mxu0 %v2708
        %2803 = vmatprep.subr.bf16.mxu0 0
        %2804 = vmatpush1.bf16.msra.mxu0 %v2707
        %2805 = vmatprep.subr.bf16.mxu0 0
        %2806 = vmatpush1.bf16.msra.mxu0 %v2706
        %2807 = vmatprep.subr.bf16.mxu0 0
        %2808 = vmatpush1.bf16.msra.mxu0 %v2705
        %2809 = vmatprep.subr.bf16.mxu0 0
        %2810 = vmatpush2.bf16.msra.mxu0 %v2720
        %2811 = vmatprep.subr.bf16.mxu0 0
        %2812 = vmatpush2.bf16.msra.mxu0 %v2719
        %2813 = vmatprep.subr.bf16.mxu0 0
        %2814 = vmatpush2.bf16.msra.mxu0 %v2718
        %2815 = vmatprep.subr.bf16.mxu0 0
        %2816 = vmatpush2.bf16.msra.mxu0 %v2717
        %2817 = vmatprep.subr.bf16.mxu0 0
        %2818 = vmatpush2.bf16.msra.mxu0 %v2716
        %2819 = vmatprep.subr.bf16.mxu0 0
        %2820 = vmatpush2.bf16.msra.mxu0 %v2715
        %2821 = vmatprep.subr.bf16.mxu0 0
        %2822 = vmatpush2.bf16.msra.mxu0 %v2714
        %2823 = vmatprep.subr.bf16.mxu0 0
        %2824 = vmatpush2.bf16.msra.mxu0 %v2713
        %2825 = vmatprep.mubr.bf16.mxu0 %v2486
        %2826 = vmatmul.mubr.bf16.gmra.mxu0 %v2485
        %v2827 = vpop.f32.mrf.mxu0
        %v2828 = vadd.f32 %v2788, %v2827
        %v2829 = vpop.f32.mrf.mxu0
        %v2830 = vpop.f32.mrf.mxu0
        %v2831 = vpop.f32.mrf.mxu0
        %2832 = vdwg.mxu0
        %v2833 = vadd.f32 %v2176, %v2828
        %2834 = vadd.xlane.f32.xlu0 %v2833
        %v2835 = vpop.xlane.xlu0 %2834
        %v2836 = vmul.f32 %v2835, %v2149
        %v2837 = vsub.f32 %v2833, %v2836
        %v2838 = vmul.f32 %v2837, %v2837
        %2839 = vadd.xlane.f32.xlu0 %v2838
        %v2840 = vpop.xlane.xlu0 %2839
        %v2841 = vmul.f32 %v2840, %v2149
        %v2842 = vadd.f32 %v2841, 1e-06
        %v2843 = vrsqrt.pop %v2842
        %v2844 = vmul.f32 %v2837, %v2843
        %s2845 = scalar_lea.vmem %s12, %s36
        %v2846 = vld [vmem:[%s2845] sm:$0x1]
        %v2848 = vlaneseq
        %v2849 = vshrl.u32 %v2848, 7
        %v2850 = vsub.s32 0, %v2849
        %v2851 = vrot.slane %v2846, %v2850
        %v2853 = vmul.f32 %v2844, %v2851
        %s2854 = scalar_lea.vmem %s13, %s36
        %v2855 = vld [vmem:[%s2854] sm:$0x1]
        %v2857 = vlaneseq
        %v2858 = vshrl.u32 %v2857, 7
        %v2859 = vsub.s32 0, %v2858
        %v2860 = vrot.slane %v2855, %v2859
        %v2862 = vadd.f32 %v2853, %v2860
        %2863 = vst [vmem:[%s540] sm:$0xff] %v2862
        %s2864 = sand.u32 %s355, 1
        %s2865 = scalar_lea.sflag [#allocation4], %s2864
        %s2866 = sand.u32 %s355, 1
        %s2867 = smul.addr %s2866, 8
        %s2868 = scalar_lea.vmem [#allocation10], %s2867
        // Predicated region
        $region97: #{transformer_encoder_forward.1} parent=75 // pred_check
          %p2869 = pneg %p365
        $region98: #{transformer_encoder_forward.1} parent=75 // pred_check_branch
          %2871 = sbr.rel (%p2869) target = $region100
        $region99: #{transformer_encoder_forward.1} parent=75 // pred_region
          %s2873 = ssub.s32 128, 128
          %2874 = vsyncadd %s2865, %s2873
          %s2875 = smul.addr %s35, 128
          %s2876 = scalar_lea.hbm %s14, %s2875
          %s2878 = sshll.u32 %s2868, 4
          %s2879 = int_to_ptr.vmem [resolvable:$true] %s2878
          %2881 = dma.vmem_to_hbm [thread:$0]  %s2879, 128, %s2876, %s2865
        $region100: #{transformer_encoder_forward.1} parent=75 // pred_fallthru
          _
      $region76: #{transformer_encoder_forward.1} parent=5 // pred_fallthru
        _
      %p2882 = scmp.le.s32.totalorder 2, %s26
      // Predicated region
      $region101: #{transformer_encoder_forward.1} parent=5 // pred_check
        %p2883 = pneg %p2882
      $region102: #{transformer_encoder_forward.1} parent=5 // pred_check_branch
        %2885 = sbr.rel (%p2883) target = $region104
      $region103: #{transformer_encoder_forward.1} parent=5 // pred_region
        %s2886 = ssub.s32 %s26, 2
        // Predicated region
        $region105: #{transformer_encoder_forward.1} parent=103 // pred_check
          %p2887 = pneg %p371
        $region106: #{transformer_encoder_forward.1} parent=103 // pred_check_branch
          %2889 = sbr.rel (%p2887) target = $region108
        $region107: #{transformer_encoder_forward.1} parent=103 // pred_region
          %s2890 = sand.u32 %s356, 1
          %s2891 = scalar_lea.sflag [#allocation4], %s2890
          %s2892 = sand.u32 %s356, 1
          %s2893 = smul.addr %s2892, 8
          %s2894 = scalar_lea.vmem [#allocation10], %s2893
          %2895 = dma.done %s2891, 128
        $region108: #{transformer_encoder_forward.1} parent=103 // pred_fallthru
          _
      $region104: #{transformer_encoder_forward.1} parent=5 // pred_fallthru
        _
    $region6: #{transformer_encoder_forward.1} parent=1 // loop_footer
      %s30 = sadd.s32 1, %s26
    $region7: #{transformer_encoder_forward.1} parent=1 // loop_footer_branch
      %25 = sbr.rel target = $region3
    $region8: #{transformer_encoder_forward.1} parent=1 // loop_exit
      _
    %2896 = vsyncpa [#allocation3], 1
    %s2897 = scalar_lea.sflag [#allocation3], 1
    %2898 = vsyncpa %s2897, 1
    %2899 = vsyncpa [#allocation6], 1
    %2900 = vsyncpa [#allocation9], 1
    %2901 = vsyncpa [#allocation4], 1
    %s2902 = scalar_lea.sflag [#allocation4], 1
    %2903 = vsyncpa %s2902, 1

</llo_original>
